<compile_context>
chip_gen: v7x
topology: tpu7x:2x2x1
jax: 0.10.0
libtpu: 0.0.40
codegen_flags: <defaults>
</compile_context>

<pallas_src>
import jax
import jax.numpy as jnp
from jax.experimental import pallas as pl
from jax.experimental.pallas import tpu as pltpu

COMPUTE_DTYPE = jnp.bfloat16          # MXU input dtype (accumulation is f32)
VMEM_LIMIT = 32 * 1024 * 1024
GROUP = 8                             # flatten rows per head matmul (K = GROUP*Cf)


def _round_up(x, m):
    return (x + m - 1) // m * m


def _const_index(ndim):
    return lambda t: (0,) * ndim


# ---------------------------------------------------------------------------
# Static geometry + per-layer row schedule
# ---------------------------------------------------------------------------
def make_geometry(obs_shape, num_layers=4, num_filters=32):
    C, H, W = obs_shape
    assert num_layers >= 2
    Hp, Wp = (H + 1) // 2, (W + 1) // 2             # space-to-depth grid
    ho = [(H - 3) // 2 + 1]
    wo = [(W - 3) // 2 + 1]
    for _ in range(num_layers - 1):
        ho.append(ho[-1] - 2)
        wo.append(wo[-1] - 2)
    assert ho[-1] > 0 and wo[-1] > 0, "observation too small for the conv stack"
    pitch = wo[0]                                    # row pitch shared by all layers
    slab = _round_up(ho[0] * pitch, max(8, GROUP))   # per-sample activation rows
    return dict(C=C, H=H, W=W, Hp=Hp, Wp=Wp, ho=ho, wo=wo, pitch=pitch,
                slab=slab, num_layers=num_layers, num_filters=num_filters)


def _schedule(geom):
    """Head groups that contain >=1 valid flatten position, plus the per-layer
    rows (per sample) that are actually consumed downstream."""
    pitch, slab, L = geom["pitch"], geom["slab"], geom["num_layers"]
    HoL, WoL = geom["ho"][-1], geom["wo"][-1]
    active = tuple(
        j for j in range(slab // GROUP)
        if any((m // pitch) < HoL and (m % pitch) < WoL
               for m in range(j * GROUP, (j + 1) * GROUP)))
    need = [0] * L
    need[L - 1] = (active[-1] + 1) * GROUP
    for l in range(L - 2, -1, -1):
        need[l] = min(slab, _round_up(need[l + 1] + 2 * pitch + 2, 8))
    return active, tuple(need)


# ---------------------------------------------------------------------------
# Fused kernel: conv stack (VMEM-resident activations) + FC + LayerNorm + tanh
# ---------------------------------------------------------------------------
def make_fused_kernel(geom, b_tile, F, F_pad, active, need):
    Cf, L = geom["num_filters"], geom["num_layers"]
    pitch, slab = geom["pitch"], geom["slab"]
    MV = slab * b_tile                               # per-sample data rows (stacked)
    BUF_ROWS = _round_up(MV + (2 * pitch + 2) * b_tile, 8)
    S_ROWS = _round_up(need[1] * b_tile + 2 * pitch * b_tile, 8)

    def kernel(x_ref, *args):
        conv = args[:2 * L]                                   # w0,b0,...,wL-1,bL-1
        fcw_ref, fcb_ref, gamma_ref, beta_ref = args[2 * L:2 * L + 4]
        o_ref = args[2 * L + 4]
        buf_a, buf_b, s_conv, s_head = args[2 * L + 5:]

        # Rows past slab*b_tile are read only by out-of-image ("garbage")
        # output positions whose head weights are zero -> keep them finite.
        tail = jnp.zeros((BUF_ROWS - MV, Cf), COMPUTE_DTYPE)
        buf_a[MV:BUF_ROWS, :] = tail
        buf_b[MV:BUF_ROWS, :] = tail

        # ---- layer 0: stride-2 3x3 == one K = 16*C matmul on prebuilt im2col
        m0 = need[0] * b_tile
        y = jnp.dot(x_ref[0], conv[0][...], preferred_element_type=jnp.float32)
        buf_a[0:m0, :] = jnp.maximum(y + conv[1][...], 0.0).astype(COMPUTE_DTYPE)

        # ---- layers 1..L-1: stride-1 3x3.  Stage the 3 kw-shifted copies side
        # by side once per layer so each kh tap-row is one (rows,3*Cf)@(3*Cf,Cf)
        # MXU matmul, accumulated through a single chain.
        src, dst = buf_a, buf_b
        for l in range(1, L):
            w_ref, b_ref = conv[2 * l], conv[2 * l + 1]
            ml = need[l] * b_tile
            s_rows = ml + 2 * pitch * b_tile
            for kw in range(3):
                s_conv[0:s_rows, kw * Cf:(kw + 1) * Cf] = \
                    src[kw * b_tile:kw * b_tile + s_rows, :]
            acc = None
            for kh in range(3):
                base = kh * pitch * b_tile
                p = jnp.dot(s_conv[base:base + ml, :], w_ref[kh],
                            preferred_element_type=jnp.float32)
                acc = p if acc is None else acc + p
            dst[0:ml, :] = jnp.maximum(acc + b_ref[...], 0.0).astype(COMPUTE_DTYPE)
            src, dst = dst, src

        # ---- fused head: tanh(LayerNorm(flatten @ fc_w + fc_b)) -------------
        # GROUP flatten rows per matmul (K = GROUP*Cf); all-garbage groups are
        # skipped; F padded to 128 lanes for a dense output store.
        h = jnp.zeros((b_tile, F_pad), jnp.float32)
        for i, j in enumerate(active):
            r0 = j * GROUP * b_tile
            for t in range(GROUP):
                s_head[:, t * Cf:(t + 1) * Cf] = \
                    src[r0 + t * b_tile:r0 + (t + 1) * b_tile, :]
            h = h + jnp.dot(s_head[...], fcw_ref[i],
                            preferred_element_type=jnp.float32)
        yfc = h + fcb_ref[...]
        # columns [F, F_pad) of yfc are exactly zero -> LN stats over true F only
        mean = jnp.sum(yfc, axis=-1, keepdims=True) * (1.0 / F)
        d = yfc - mean
        var = (jnp.sum(d * d, axis=-1, keepdims=True)
               - (F_pad - F) * (mean * mean)) * (1.0 / F)
        o_ref[0] = jnp.tanh(d * jax.lax.rsqrt(var + 1e-5) * gamma_ref[...]
                            + beta_ref[...])

    return kernel, BUF_ROWS, S_ROWS


# ---------------------------------------------------------------------------
# Parameter init (PyTorch layout) and one-time layout transforms
# ---------------------------------------------------------------------------
def init_pixel_encoder_params(key, obs_shape, feature_dim,
                              num_layers=4, num_filters=32):
    C, H, W = obs_shape
    keys = jax.random.split(key, 2 * num_layers + 2)
    params = {"convs": []}
    cin = C
    oh, ow = H, W
    for i in range(num_layers):
        w = 0.05 * jax.random.normal(keys[2 * i], (num_filters, cin, 3, 3), jnp.float32)
        b = 0.01 * jax.random.normal(keys[2 * i + 1], (num_filters,), jnp.float32)
        params["convs"].append((w, b))
        s = 2 if i == 0 else 1
        oh, ow = (oh - 3) // s + 1, (ow - 3) // s + 1
        cin = num_filters
    flat = num_filters * oh * ow
    params["fc_w"] = 0.05 * jax.random.normal(keys[-2], (feature_dim, flat), jnp.float32)
    params["fc_b"] = 0.01 * jax.random.normal(keys[-1], (feature_dim,), jnp.float32)
    params["ln_g"] = jnp.ones((feature_dim,), jnp.float32)
    params["ln_b"] = jnp.zeros((feature_dim,), jnp.float32)
    return params


def prepare_params(params, geom):
    C, Cf, L = geom["C"], geom["num_filters"], geom["num_layers"]
    pitch, slab = geom["pitch"], geom["slab"]
    HoL, WoL = geom["ho"][-1], geom["wo"][-1]
    active, _ = _schedule(geom)

    # layer 0: stride-2 3x3 conv as one K = 16*C matmul over the 2x2-tap im2col
    # of the space-to-depth view; /255 preprocess folded into the weights.
    w0, b0 = params["convs"][0]                        # (Cf, C, 3, 3)
    W0 = jnp.zeros((2, 2, 2, 2, C, Cf), jnp.float32)   # (dh, dw, rp, cp, c, f)
    for dh in range(2):
        for dw in range(2):
            for rp in range(2):
                for cp in range(2):
                    kh, kw = 2 * dh + rp, 2 * dw + cp
                    if kh < 3 and kw < 3:
                        W0 = W0.at[dh, dw, rp, cp].set(
                            jnp.transpose(w0[:, :, kh, kw], (1, 0)))
    conv_w = [(W0 / 255.0).reshape(16 * C, Cf).astype(COMPUTE_DTYPE)]
    conv_b = [b0.reshape(1, Cf).astype(jnp.float32)]

    # layers 1..L-1: (Cout, Cin, 3, 3) -> (kh, kw*Cin + ci, co)
    for l in range(1, L):
        w, b = params["convs"][l]
        conv_w.append(jnp.transpose(w, (2, 3, 1, 0)).reshape(3, 3 * Cf, Cf)
                      .astype(COMPUTE_DTYPE))
        conv_b.append(b.reshape(1, Cf).astype(jnp.float32))

    # head: permute fc columns to the kernel flatten order (m = h*pitch + w,
    # then channel), zero pitch-garbage / pad rows, keep only GROUP-row groups
    # with a valid position, pad F to a lane-dense multiple of 128.
    Wt = params["fc_w"]                                # (F, Cf*HoL*WoL)
    F = int(Wt.shape[0])
    F_pad = _round_up(F, 128)
    m = jnp.arange(slab)
    hh, ww = m // pitch, m % pitch
    valid = (hh < HoL) & (ww < WoL)
    col = jnp.arange(Cf)[None, :] * (HoL * WoL) + (hh * WoL + ww)[:, None]
    col = jnp.where(valid[:, None], col, 0)
    gathered = jnp.take(Wt, col.reshape(-1), axis=1).reshape(F, slab, Cf)
    gathered = jnp.where(valid[None, :, None], gathered, 0.0)
    head_w = jnp.transpose(gathered, (1, 2, 0)).reshape(slab // GROUP, GROUP * Cf, F)
    head_w = head_w[jnp.asarray(active)]
    head_w = jnp.pad(head_w, ((0, 0), (0, 0), (0, F_pad - F))).astype(COMPUTE_DTYPE)

    def _pad_row(v):
        return jnp.pad(v.reshape(1, F).astype(jnp.float32), ((0, 0), (0, F_pad - F)))

    return dict(conv_w=conv_w, conv_b=conv_b, head_w=head_w,
                head_b=_pad_row(params["fc_b"]),
                ln_g=_pad_row(params["ln_g"]),
                ln_b=_pad_row(params["ln_b"]),
                F=F, F_pad=F_pad)


# ---------------------------------------------------------------------------
# XLA glue (layout only) + forward
# ---------------------------------------------------------------------------
def _choose_batch_tile(N):
    # <= 8 samples per grid step, >= 2 grid steps whenever N >= 2 so both v7x
    # TensorCores get balanced work; bigger tiles amortize per-step overhead
    # and give every matmul a fat M dimension.
    return max(1, min(8, N // 2))


def _build_layer0_im2col(obs, geom, b_tile, n_pad, rows0):
    """(N,C,H,W) -> (T, rows0*b_tile, 16*C) bf16: 2x2-tap im2col of the
    space-to-depth view, rows interleaved m-major within each batch tile."""
    N = obs.shape[0]
    C, H, W, Hp, Wp = geom["C"], geom["H"], geom["W"], geom["Hp"], geom["Wp"]
    ho0, wo0 = geom["ho"][0], geom["wo"][0]
    x = obs.astype(COMPUTE_DTYPE)                          # cast before transpose
    x = jnp.transpose(x, (0, 2, 3, 1))                     # NHWC
    x = jnp.pad(x, ((0, n_pad - N), (0, 2 * Hp - H), (0, 2 * Wp - W), (0, 0)))
    x = x.reshape(n_pad, Hp, 2, Wp, 2, C)
    x = jnp.transpose(x, (0, 1, 3, 2, 4, 5)).reshape(n_pad, Hp, Wp, 4 * C)
    taps = [x[:, dh:dh + ho0, dw:dw + wo0, :]
            for dh in range(2) for dw in range(2)]
    x = jnp.concatenate(taps, axis=-1).reshape(n_pad, ho0 * wo0, 16 * C)
    if rows0 >= ho0 * wo0:
        x = jnp.pad(x, ((0, 0), (0, rows0 - ho0 * wo0), (0, 0)))
    else:
        x = x[:, :rows0, :]
    T = n_pad // b_tile
    x = x.reshape(T, b_tile, rows0, 16 * C)
    x = jnp.transpose(x, (0, 2, 1, 3)).reshape(T, rows0 * b_tile, 16 * C)
    return x


def pixel_encoder_forward(prepared, geom, obs_nchw):
    N = obs_nchw.shape[0]
    Cf = geom["num_filters"]
    F, F_pad = prepared["F"], prepared["F_pad"]
    active, need = _schedule(geom)

    b_tile = _choose_batch_tile(N)
    n_pad = _round_up(N, b_tile)
    T = n_pad // b_tile
    C16 = 16 * geom["C"]
    m0 = need[0] * b_tile

    x = _build_layer0_im2col(obs_nchw, geom, b_tile, n_pad, need[0])
    kernel, buf_rows, s_rows = make_fused_kernel(geom, b_tile, F, F_pad, active, need)

    in_specs = [pl.BlockSpec((1, m0, C16), lambda t: (t, 0, 0))]
    args = [x]
    for w, b in zip(prepared["conv_w"], prepared["conv_b"]):
        in_specs.append(pl.BlockSpec(w.shape, _const_index(w.ndim)))
        in_specs.append(pl.BlockSpec(b.shape, _const_index(b.ndim)))
        args.extend([w, b])
    for p in (prepared["head_w"], prepared["head_b"],
              prepared["ln_g"], prepared["ln_b"]):
        in_specs.append(pl.BlockSpec(p.shape, _const_index(p.ndim)))
        args.append(p)

    out = pl.pallas_call(
        kernel,
        out_shape=jax.ShapeDtypeStruct((T, b_tile, F_pad), jnp.float32),
        grid=(T,),
        in_specs=in_specs,
        out_specs=pl.BlockSpec((1, b_tile, F_pad), lambda t: (t, 0, 0)),
        scratch_shapes=[pltpu.VMEM((buf_rows, Cf), COMPUTE_DTYPE),
                        pltpu.VMEM((buf_rows, Cf), COMPUTE_DTYPE),
                        pltpu.VMEM((s_rows, 3 * Cf), COMPUTE_DTYPE),
                        pltpu.VMEM((b_tile, GROUP * Cf), COMPUTE_DTYPE)],
        compiler_params=pltpu.CompilerParams(
            dimension_semantics=("parallel",),
            vmem_limit_bytes=VMEM_LIMIT),
    )(*args)

    return out.reshape(n_pad, F_pad)[:N, :F]


# ---------------------------------------------------------------------------
# Pure-JAX f32 reference (tolerance check)
# ---------------------------------------------------------------------------
def reference_forward(params, obs_nchw):
    x = obs_nchw.astype(jnp.float32) / 255.0
    for i, (w, b) in enumerate(params["convs"]):
        s = 2 if i == 0 else 1
        x = jax.lax.conv_general_dilated(
            x, w, window_strides=(s, s), padding="VALID",
            dimension_numbers=("NCHW", "OIHW", "NCHW"))
        x = jnp.maximum(x + b[None, :, None, None], 0.0)
    h = x.reshape(x.shape[0], -1)
    y = h @ params["fc_w"].T + params["fc_b"]
    mean = y.mean(-1, keepdims=True)
    var = ((y - mean) ** 2).mean(-1, keepdims=True)
    yhat = (y - mean) * jax.lax.rsqrt(var + 1e-5)
    return jnp.tanh(yhat * params["ln_g"] + params["ln_b"])


# ---------------------------------------------------------------------------
if __name__ == "__main__":
    key = jax.random.PRNGKey(0)
    k_obs, k_par = jax.random.split(key)

    obs_shape = (3, 21, 21)          # (C, H, W) -> conv stack output is 4x4
    feature_dim = 32
    batch = 2
    obs = jax.random.uniform(k_obs, (batch,) + obs_shape, jnp.float32, 0.0, 255.0)

    params = init_pixel_encoder_params(k_par, obs_shape, feature_dim,
                                       num_layers=4, num_filters=32)
    geom = make_geometry(obs_shape, num_layers=4, num_filters=32)
    prepared = prepare_params(params, geom)

    fwd = jax.jit(lambda o: pixel_encoder_forward(prepared, geom, o))
    out = jax.block_until_ready(fwd(obs))

    assert out.shape == (batch, feature_dim)
    assert out.dtype == jnp.float32
    assert bool(jnp.all(jnp.isfinite(out)))

    # validate against f32 reference (bf16 MXU inputs -> loose tolerance)
    ref = jax.block_until_ready(reference_forward(params, obs))
    err = float(jnp.max(jnp.abs(out - ref)))
    assert err < 0.15, f"mismatch vs reference: max abs err {err}"

    print("KERNEL_OK")
</pallas_src>

<mosaic_0001>
module attributes {stable_mosaic.version = 11 : i64} {
  func.func @kernel(%arg0: i32, %arg1: memref<1x104x48xbf16, #tpu.memory_space<vmem>>, %arg2: memref<48x32xbf16, #tpu.memory_space<vmem>>, %arg3: memref<1x32xf32, #tpu.memory_space<vmem>>, %arg4: memref<3x96x32xbf16, #tpu.memory_space<vmem>>, %arg5: memref<1x32xf32, #tpu.memory_space<vmem>>, %arg6: memref<3x96x32xbf16, #tpu.memory_space<vmem>>, %arg7: memref<1x32xf32, #tpu.memory_space<vmem>>, %arg8: memref<3x96x32xbf16, #tpu.memory_space<vmem>>, %arg9: memref<1x32xf32, #tpu.memory_space<vmem>>, %arg10: memref<5x256x128xbf16, #tpu.memory_space<vmem>>, %arg11: memref<1x128xf32, #tpu.memory_space<vmem>>, %arg12: memref<1x128xf32, #tpu.memory_space<vmem>>, %arg13: memref<1x128xf32, #tpu.memory_space<vmem>>, %arg14: memref<1x1x128xf32, #tpu.memory_space<vmem>>, %arg15: memref<128x32xbf16, #tpu.memory_space<vmem>>, %arg16: memref<128x32xbf16, #tpu.memory_space<vmem>>, %arg17: memref<112x96xbf16, #tpu.memory_space<vmem>>, %arg18: memref<1x256xbf16, #tpu.memory_space<vmem>>) attributes {dimension_semantics = [#tpu.dimension_semantics<parallel>], iteration_bounds = array<i64: 2>, scalar_prefetch = 0 : i64, scratch_operands = 4 : i64, tpu.core_type = #tpu.core_type<tc>, window_params = [{transform_indices = @transform_0, window_bounds = array<i64: 1, 104, 48>}, {pipeline_mode = #tpu.pipeline_mode<synchronous>, transform_indices = @transform_1, window_bounds = array<i64: 48, 32>}, {pipeline_mode = #tpu.pipeline_mode<synchronous>, transform_indices = @transform_2, window_bounds = array<i64: 1, 32>}, {pipeline_mode = #tpu.pipeline_mode<synchronous>, transform_indices = @transform_3, window_bounds = array<i64: 3, 96, 32>}, {pipeline_mode = #tpu.pipeline_mode<synchronous>, transform_indices = @transform_4, window_bounds = array<i64: 1, 32>}, {pipeline_mode = #tpu.pipeline_mode<synchronous>, transform_indices = @transform_5, window_bounds = array<i64: 3, 96, 32>}, {pipeline_mode = #tpu.pipeline_mode<synchronous>, transform_indices = @transform_6, window_bounds = array<i64: 1, 32>}, {pipeline_mode = #tpu.pipeline_mode<synchronous>, transform_indices = @transform_7, window_bounds = array<i64: 3, 96, 32>}, {pipeline_mode = #tpu.pipeline_mode<synchronous>, transform_indices = @transform_8, window_bounds = array<i64: 1, 32>}, {pipeline_mode = #tpu.pipeline_mode<synchronous>, transform_indices = @transform_9, window_bounds = array<i64: 5, 256, 128>}, {pipeline_mode = #tpu.pipeline_mode<synchronous>, transform_indices = @transform_10, window_bounds = array<i64: 1, 128>}, {pipeline_mode = #tpu.pipeline_mode<synchronous>, transform_indices = @transform_11, window_bounds = array<i64: 1, 128>}, {pipeline_mode = #tpu.pipeline_mode<synchronous>, transform_indices = @transform_12, window_bounds = array<i64: 1, 128>}, {transform_indices = @transform_13, window_bounds = array<i64: 1, 1, 128>}]} {
    %cst = arith.constant 0.000000e+00 : bf16
    %0 = vector.broadcast %cst : bf16 to vector<24x32xbf16>
    %c104 = arith.constant 104 : index
    %c0 = arith.constant 0 : index
    %1 = vector.load %arg15[%c104, %c0] : memref<128x32xbf16, #tpu.memory_space<vmem>>, vector<24x32xbf16>
    tpu.vector_store %arg15[%c104, %c0], %0 {strides = array<i32>} : memref<128x32xbf16, #tpu.memory_space<vmem>>, vector<24x32xbf16>,
    %c104_0 = arith.constant 104 : index
    %c0_1 = arith.constant 0 : index
    %2 = vector.load %arg16[%c104_0, %c0_1] : memref<128x32xbf16, #tpu.memory_space<vmem>>, vector<24x32xbf16>
    tpu.vector_store %arg16[%c104_0, %c0_1], %0 {strides = array<i32>} : memref<128x32xbf16, #tpu.memory_space<vmem>>, vector<24x32xbf16>,
    %c0_2 = arith.constant 0 : index
    %c0_3 = arith.constant 0 : index
    %c0_4 = arith.constant 0 : index
    %3 = vector.load %arg1[%c0_2, %c0_3, %c0_4] : memref<1x104x48xbf16, #tpu.memory_space<vmem>>, vector<1x104x48xbf16>
    %4 = vector.shape_cast %3 : vector<1x104x48xbf16> to vector<104x48xbf16>
    %c0_5 = arith.constant 0 : index
    %c0_6 = arith.constant 0 : index
    %5 = vector.load %arg2[%c0_5, %c0_6] : memref<48x32xbf16, #tpu.memory_space<vmem>>, vector<48x32xbf16>
    %cst_7 = arith.constant dense<0.000000e+00> : vector<104x32xf32>
    %6 = tpu.matmul %4, %5, %cst_7 {dimension_numbers = #tpu.dot_dimension_numbers<[1], [0], [0], [1], [0, 0, 1, 1], [], []>} : vector<104x48xbf16>, vector<48x32xbf16>, vector<104x32xf32> -> vector<104x32xf32>
    %c0_8 = arith.constant 0 : index
    %c0_9 = arith.constant 0 : index
    %7 = vector.load %arg3[%c0_8, %c0_9] : memref<1x32xf32, #tpu.memory_space<vmem>>, vector<1x32xf32>
    %8 = vector.broadcast %7 : vector<1x32xf32> to vector<104x32xf32>
    %9 = arith.addf %6, %8 : vector<104x32xf32>
    %cst_10 = arith.constant 0.000000e+00 : f32
    %10 = vector.broadcast %cst_10 : f32 to vector<104x32xf32>
    %11 = arith.maximumf %9, %10 : vector<104x32xf32>
    %12 = arith.truncf %11 : vector<104x32xf32> to vector<104x32xbf16>
    %c0_11 = arith.constant 0 : index
    %c0_12 = arith.constant 0 : index
    %13 = vector.load %arg15[%c0_11, %c0_12] : memref<128x32xbf16, #tpu.memory_space<vmem>>, vector<104x32xbf16>
    tpu.vector_store %arg15[%c0_11, %c0_12], %12 {strides = array<i32>} : memref<128x32xbf16, #tpu.memory_space<vmem>>, vector<104x32xbf16>,
    %c0_13 = arith.constant 0 : index
    %c0_14 = arith.constant 0 : index
    %14 = vector.load %arg15[%c0_13, %c0_14] : memref<128x32xbf16, #tpu.memory_space<vmem>>, vector<108x32xbf16>
    %c0_15 = arith.constant 0 : index
    %c0_16 = arith.constant 0 : index
    %15 = vector.load %arg17[%c0_15, %c0_16] : memref<112x96xbf16, #tpu.memory_space<vmem>>, vector<108x32xbf16>
    tpu.vector_store %arg17[%c0_15, %c0_16], %14 {strides = array<i32>} : memref<112x96xbf16, #tpu.memory_space<vmem>>, vector<108x32xbf16>,
    %c1 = arith.constant 1 : index
    %c0_17 = arith.constant 0 : index
    %16 = vector.load %arg15[%c1, %c0_17] : memref<128x32xbf16, #tpu.memory_space<vmem>>, vector<108x32xbf16>
    %c0_18 = arith.constant 0 : index
    %c32 = arith.constant 32 : index
    %17 = vector.load %arg17[%c0_18, %c32] : memref<112x96xbf16, #tpu.memory_space<vmem>>, vector<108x32xbf16>
    tpu.vector_store %arg17[%c0_18, %c32], %16 {strides = array<i32>} : memref<112x96xbf16, #tpu.memory_space<vmem>>, vector<108x32xbf16>,
    %c2 = arith.constant 2 : index
    %c0_19 = arith.constant 0 : index
    %18 = vector.load %arg15[%c2, %c0_19] : memref<128x32xbf16, #tpu.memory_space<vmem>>, vector<108x32xbf16>
    %c0_20 = arith.constant 0 : index
    %c64 = arith.constant 64 : index
    %19 = vector.load %arg17[%c0_20, %c64] : memref<112x96xbf16, #tpu.memory_space<vmem>>, vector<108x32xbf16>
    tpu.vector_store %arg17[%c0_20, %c64], %18 {strides = array<i32>} : memref<112x96xbf16, #tpu.memory_space<vmem>>, vector<108x32xbf16>,
    %c0_21 = arith.constant 0 : index
    %c0_22 = arith.constant 0 : index
    %20 = vector.load %arg17[%c0_21, %c0_22] : memref<112x96xbf16, #tpu.memory_space<vmem>>, vector<88x96xbf16>
    %c0_23 = arith.constant 0 : index
    %c0_24 = arith.constant 0 : index
    %c0_25 = arith.constant 0 : index
    %21 = vector.load %arg4[%c0_23, %c0_24, %c0_25] : memref<3x96x32xbf16, #tpu.memory_space<vmem>>, vector<1x96x32xbf16>
    %22 = vector.shape_cast %21 : vector<1x96x32xbf16> to vector<96x32xbf16>
    %cst_26 = arith.constant dense<0.000000e+00> : vector<88x32xf32>
    %23 = tpu.matmul %20, %22, %cst_26 {dimension_numbers = #tpu.dot_dimension_numbers<[1], [0], [0], [1], [0, 0, 1, 1], [], []>} : vector<88x96xbf16>, vector<96x32xbf16>, vector<88x32xf32> -> vector<88x32xf32>
    %c10 = arith.constant 10 : index
    %c0_27 = arith.constant 0 : index
    %24 = vector.load %arg17[%c10, %c0_27] : memref<112x96xbf16, #tpu.memory_space<vmem>>, vector<88x96xbf16>
    %c1_28 = arith.constant 1 : index
    %c0_29 = arith.constant 0 : index
    %c0_30 = arith.constant 0 : index
    %25 = vector.load %arg4[%c1_28, %c0_29, %c0_30] : memref<3x96x32xbf16, #tpu.memory_space<vmem>>, vector<1x96x32xbf16>
    %26 = vector.shape_cast %25 : vector<1x96x32xbf16> to vector<96x32xbf16>
    %cst_31 = arith.constant dense<0.000000e+00> : vector<88x32xf32>
    %27 = tpu.matmul %24, %26, %cst_31 {dimension_numbers = #tpu.dot_dimension_numbers<[1], [0], [0], [1], [0, 0, 1, 1], [], []>} : vector<88x96xbf16>, vector<96x32xbf16>, vector<88x32xf32> -> vector<88x32xf32>
    %28 = arith.addf %23, %27 : vector<88x32xf32>
    %c20 = arith.constant 20 : index
    %c0_32 = arith.constant 0 : index
    %29 = vector.load %arg17[%c20, %c0_32] : memref<112x96xbf16, #tpu.memory_space<vmem>>, vector<88x96xbf16>
    %c2_33 = arith.constant 2 : index
    %c0_34 = arith.constant 0 : index
    %c0_35 = arith.constant 0 : index
    %30 = vector.load %arg4[%c2_33, %c0_34, %c0_35] : memref<3x96x32xbf16, #tpu.memory_space<vmem>>, vector<1x96x32xbf16>
    %31 = vector.shape_cast %30 : vector<1x96x32xbf16> to vector<96x32xbf16>
    %cst_36 = arith.constant dense<0.000000e+00> : vector<88x32xf32>
    %32 = tpu.matmul %29, %31, %cst_36 {dimension_numbers = #tpu.dot_dimension_numbers<[1], [0], [0], [1], [0, 0, 1, 1], [], []>} : vector<88x96xbf16>, vector<96x32xbf16>, vector<88x32xf32> -> vector<88x32xf32>
    %33 = arith.addf %28, %32 : vector<88x32xf32>
    %c0_37 = arith.constant 0 : index
    %c0_38 = arith.constant 0 : index
    %34 = vector.load %arg5[%c0_37, %c0_38] : memref<1x32xf32, #tpu.memory_space<vmem>>, vector<1x32xf32>
    %35 = vector.broadcast %34 : vector<1x32xf32> to vector<88x32xf32>
    %36 = arith.addf %33, %35 : vector<88x32xf32>
    %cst_39 = arith.constant 0.000000e+00 : f32
    %37 = vector.broadcast %cst_39 : f32 to vector<88x32xf32>
    %38 = arith.maximumf %36, %37 : vector<88x32xf32>
    %39 = arith.truncf %38 : vector<88x32xf32> to vector<88x32xbf16>
    %c0_40 = arith.constant 0 : index
    %c0_41 = arith.constant 0 : index
    %40 = vector.load %arg16[%c0_40, %c0_41] : memref<128x32xbf16, #tpu.memory_space<vmem>>, vector<88x32xbf16>
    tpu.vector_store %arg16[%c0_40, %c0_41], %39 {strides = array<i32>} : memref<128x32xbf16, #tpu.memory_space<vmem>>, vector<88x32xbf16>,
    %c0_42 = arith.constant 0 : index
    %c0_43 = arith.constant 0 : index
    %41 = vector.load %arg16[%c0_42, %c0_43] : memref<128x32xbf16, #tpu.memory_space<vmem>>, vector<84x32xbf16>
    %c0_44 = arith.constant 0 : index
    %c0_45 = arith.constant 0 : index
    %42 = vector.load %arg17[%c0_44, %c0_45] : memref<112x96xbf16, #tpu.memory_space<vmem>>, vector<84x32xbf16>
    tpu.vector_store %arg17[%c0_44, %c0_45], %41 {strides = array<i32>} : memref<112x96xbf16, #tpu.memory_space<vmem>>, vector<84x32xbf16>,
    %c1_46 = arith.constant 1 : index
    %c0_47 = arith.constant 0 : index
    %43 = vector.load %arg16[%c1_46, %c0_47] : memref<128x32xbf16, #tpu.memory_space<vmem>>, vector<84x32xbf16>
    %c0_48 = arith.constant 0 : index
    %c32_49 = arith.constant 32 : index
    %44 = vector.load %arg17[%c0_48, %c32_49] : memref<112x96xbf16, #tpu.memory_space<vmem>>, vector<84x32xbf16>
    tpu.vector_store %arg17[%c0_48, %c32_49], %43 {strides = array<i32>} : memref<112x96xbf16, #tpu.memory_space<vmem>>, vector<84x32xbf16>,
    %c2_50 = arith.constant 2 : index
    %c0_51 = arith.constant 0 : index
    %45 = vector.load %arg16[%c2_50, %c0_51] : memref<128x32xbf16, #tpu.memory_space<vmem>>, vector<84x32xbf16>
    %c0_52 = arith.constant 0 : index
    %c64_53 = arith.constant 64 : index
    %46 = vector.load %arg17[%c0_52, %c64_53] : memref<112x96xbf16, #tpu.memory_space<vmem>>, vector<84x32xbf16>
    tpu.vector_store %arg17[%c0_52, %c64_53], %45 {strides = array<i32>} : memref<112x96xbf16, #tpu.memory_space<vmem>>, vector<84x32xbf16>,
    %c0_54 = arith.constant 0 : index
    %c0_55 = arith.constant 0 : index
    %47 = vector.load %arg17[%c0_54, %c0_55] : memref<112x96xbf16, #tpu.memory_space<vmem>>, vector<64x96xbf16>
    %c0_56 = arith.constant 0 : index
    %c0_57 = arith.constant 0 : index
    %c0_58 = arith.constant 0 : index
    %48 = vector.load %arg6[%c0_56, %c0_57, %c0_58] : memref<3x96x32xbf16, #tpu.memory_space<vmem>>, vector<1x96x32xbf16>
    %49 = vector.shape_cast %48 : vector<1x96x32xbf16> to vector<96x32xbf16>
    %cst_59 = arith.constant dense<0.000000e+00> : vector<64x32xf32>
    %50 = tpu.matmul %47, %49, %cst_59 {dimension_numbers = #tpu.dot_dimension_numbers<[1], [0], [0], [1], [0, 0, 1, 1], [], []>} : vector<64x96xbf16>, vector<96x32xbf16>, vector<64x32xf32> -> vector<64x32xf32>
    %c10_60 = arith.constant 10 : index
    %c0_61 = arith.constant 0 : index
    %51 = vector.load %arg17[%c10_60, %c0_61] : memref<112x96xbf16, #tpu.memory_space<vmem>>, vector<64x96xbf16>
    %c1_62 = arith.constant 1 : index
    %c0_63 = arith.constant 0 : index
    %c0_64 = arith.constant 0 : index
    %52 = vector.load %arg6[%c1_62, %c0_63, %c0_64] : memref<3x96x32xbf16, #tpu.memory_space<vmem>>, vector<1x96x32xbf16>
    %53 = vector.shape_cast %52 : vector<1x96x32xbf16> to vector<96x32xbf16>
    %cst_65 = arith.constant dense<0.000000e+00> : vector<64x32xf32>
    %54 = tpu.matmul %51, %53, %cst_65 {dimension_numbers = #tpu.dot_dimension_numbers<[1], [0], [0], [1], [0, 0, 1, 1], [], []>} : vector<64x96xbf16>, vector<96x32xbf16>, vector<64x32xf32> -> vector<64x32xf32>
    %55 = arith.addf %50, %54 : vector<64x32xf32>
    %c20_66 = arith.constant 20 : index
    %c0_67 = arith.constant 0 : index
    %56 = vector.load %arg17[%c20_66, %c0_67] : memref<112x96xbf16, #tpu.memory_space<vmem>>, vector<64x96xbf16>
    %c2_68 = arith.constant 2 : index
    %c0_69 = arith.constant 0 : index
    %c0_70 = arith.constant 0 : index
    %57 = vector.load %arg6[%c2_68, %c0_69, %c0_70] : memref<3x96x32xbf16, #tpu.memory_space<vmem>>, vector<1x96x32xbf16>
    %58 = vector.shape_cast %57 : vector<1x96x32xbf16> to vector<96x32xbf16>
    %cst_71 = arith.constant dense<0.000000e+00> : vector<64x32xf32>
    %59 = tpu.matmul %56, %58, %cst_71 {dimension_numbers = #tpu.dot_dimension_numbers<[1], [0], [0], [1], [0, 0, 1, 1], [], []>} : vector<64x96xbf16>, vector<96x32xbf16>, vector<64x32xf32> -> vector<64x32xf32>
    %60 = arith.addf %55, %59 : vector<64x32xf32>
    %c0_72 = arith.constant 0 : index
    %c0_73 = arith.constant 0 : index
    %61 = vector.load %arg7[%c0_72, %c0_73] : memref<1x32xf32, #tpu.memory_space<vmem>>, vector<1x32xf32>
    %62 = vector.broadcast %61 : vector<1x32xf32> to vector<64x32xf32>
    %63 = arith.addf %60, %62 : vector<64x32xf32>
    %cst_74 = arith.constant 0.000000e+00 : f32
    %64 = vector.broadcast %cst_74 : f32 to vector<64x32xf32>
    %65 = arith.maximumf %63, %64 : vector<64x32xf32>
    %66 = arith.truncf %65 : vector<64x32xf32> to vector<64x32xbf16>
    %c0_75 = arith.constant 0 : index
    %c0_76 = arith.constant 0 : index
    %67 = vector.load %arg15[%c0_75, %c0_76] : memref<128x32xbf16, #tpu.memory_space<vmem>>, vector<64x32xbf16>
    tpu.vector_store %arg15[%c0_75, %c0_76], %66 {strides = array<i32>} : memref<128x32xbf16, #tpu.memory_space<vmem>>, vector<64x32xbf16>,
    %c0_77 = arith.constant 0 : index
    %c0_78 = arith.constant 0 : index
    %68 = vector.load %arg15[%c0_77, %c0_78] : memref<128x32xbf16, #tpu.memory_space<vmem>>, vector<60x32xbf16>
    %c0_79 = arith.constant 0 : index
    %c0_80 = arith.constant 0 : index
    %69 = vector.load %arg17[%c0_79, %c0_80] : memref<112x96xbf16, #tpu.memory_space<vmem>>, vector<60x32xbf16>
    tpu.vector_store %arg17[%c0_79, %c0_80], %68 {strides = array<i32>} : memref<112x96xbf16, #tpu.memory_space<vmem>>, vector<60x32xbf16>,
    %c1_81 = arith.constant 1 : index
    %c0_82 = arith.constant 0 : index
    %70 = vector.load %arg15[%c1_81, %c0_82] : memref<128x32xbf16, #tpu.memory_space<vmem>>, vector<60x32xbf16>
    %c0_83 = arith.constant 0 : index
    %c32_84 = arith.constant 32 : index
    %71 = vector.load %arg17[%c0_83, %c32_84] : memref<112x96xbf16, #tpu.memory_space<vmem>>, vector<60x32xbf16>
    tpu.vector_store %arg17[%c0_83, %c32_84], %70 {strides = array<i32>} : memref<112x96xbf16, #tpu.memory_space<vmem>>, vector<60x32xbf16>,
    %c2_85 = arith.constant 2 : index
    %c0_86 = arith.constant 0 : index
    %72 = vector.load %arg15[%c2_85, %c0_86] : memref<128x32xbf16, #tpu.memory_space<vmem>>, vector<60x32xbf16>
    %c0_87 = arith.constant 0 : index
    %c64_88 = arith.constant 64 : index
    %73 = vector.load %arg17[%c0_87, %c64_88] : memref<112x96xbf16, #tpu.memory_space<vmem>>, vector<60x32xbf16>
    tpu.vector_store %arg17[%c0_87, %c64_88], %72 {strides = array<i32>} : memref<112x96xbf16, #tpu.memory_space<vmem>>, vector<60x32xbf16>,
    %c0_89 = arith.constant 0 : index
    %c0_90 = arith.constant 0 : index
    %74 = vector.load %arg17[%c0_89, %c0_90] : memref<112x96xbf16, #tpu.memory_space<vmem>>, vector<40x96xbf16>
    %c0_91 = arith.constant 0 : index
    %c0_92 = arith.constant 0 : index
    %c0_93 = arith.constant 0 : index
    %75 = vector.load %arg8[%c0_91, %c0_92, %c0_93] : memref<3x96x32xbf16, #tpu.memory_space<vmem>>, vector<1x96x32xbf16>
    %76 = vector.shape_cast %75 : vector<1x96x32xbf16> to vector<96x32xbf16>
    %cst_94 = arith.constant dense<0.000000e+00> : vector<40x32xf32>
    %77 = tpu.matmul %74, %76, %cst_94 {dimension_numbers = #tpu.dot_dimension_numbers<[1], [0], [0], [1], [0, 0, 1, 1], [], []>} : vector<40x96xbf16>, vector<96x32xbf16>, vector<40x32xf32> -> vector<40x32xf32>
    %c10_95 = arith.constant 10 : index
    %c0_96 = arith.constant 0 : index
    %78 = vector.load %arg17[%c10_95, %c0_96] : memref<112x96xbf16, #tpu.memory_space<vmem>>, vector<40x96xbf16>
    %c1_97 = arith.constant 1 : index
    %c0_98 = arith.constant 0 : index
    %c0_99 = arith.constant 0 : index
    %79 = vector.load %arg8[%c1_97, %c0_98, %c0_99] : memref<3x96x32xbf16, #tpu.memory_space<vmem>>, vector<1x96x32xbf16>
    %80 = vector.shape_cast %79 : vector<1x96x32xbf16> to vector<96x32xbf16>
    %cst_100 = arith.constant dense<0.000000e+00> : vector<40x32xf32>
    %81 = tpu.matmul %78, %80, %cst_100 {dimension_numbers = #tpu.dot_dimension_numbers<[1], [0], [0], [1], [0, 0, 1, 1], [], []>} : vector<40x96xbf16>, vector<96x32xbf16>, vector<40x32xf32> -> vector<40x32xf32>
    %82 = arith.addf %77, %81 : vector<40x32xf32>
    %c20_101 = arith.constant 20 : index
    %c0_102 = arith.constant 0 : index
    %83 = vector.load %arg17[%c20_101, %c0_102] : memref<112x96xbf16, #tpu.memory_space<vmem>>, vector<40x96xbf16>
    %c2_103 = arith.constant 2 : index
    %c0_104 = arith.constant 0 : index
    %c0_105 = arith.constant 0 : index
    %84 = vector.load %arg8[%c2_103, %c0_104, %c0_105] : memref<3x96x32xbf16, #tpu.memory_space<vmem>>, vector<1x96x32xbf16>
    %85 = vector.shape_cast %84 : vector<1x96x32xbf16> to vector<96x32xbf16>
    %cst_106 = arith.constant dense<0.000000e+00> : vector<40x32xf32>
    %86 = tpu.matmul %83, %85, %cst_106 {dimension_numbers = #tpu.dot_dimension_numbers<[1], [0], [0], [1], [0, 0, 1, 1], [], []>} : vector<40x96xbf16>, vector<96x32xbf16>, vector<40x32xf32> -> vector<40x32xf32>
    %87 = arith.addf %82, %86 : vector<40x32xf32>
    %c0_107 = arith.constant 0 : index
    %c0_108 = arith.constant 0 : index
    %88 = vector.load %arg9[%c0_107, %c0_108] : memref<1x32xf32, #tpu.memory_space<vmem>>, vector<1x32xf32>
    %89 = vector.broadcast %88 : vector<1x32xf32> to vector<40x32xf32>
    %90 = arith.addf %87, %89 : vector<40x32xf32>
    %cst_109 = arith.constant 0.000000e+00 : f32
    %91 = vector.broadcast %cst_109 : f32 to vector<40x32xf32>
    %92 = arith.maximumf %90, %91 : vector<40x32xf32>
    %93 = arith.truncf %92 : vector<40x32xf32> to vector<40x32xbf16>
    %c0_110 = arith.constant 0 : index
    %c0_111 = arith.constant 0 : index
    %94 = vector.load %arg16[%c0_110, %c0_111] : memref<128x32xbf16, #tpu.memory_space<vmem>>, vector<40x32xbf16>
    tpu.vector_store %arg16[%c0_110, %c0_111], %93 {strides = array<i32>} : memref<128x32xbf16, #tpu.memory_space<vmem>>, vector<40x32xbf16>,
    %cst_112 = arith.constant 0.000000e+00 : f32
    %95 = vector.broadcast %cst_112 : f32 to vector<1x128xf32>
    %c0_113 = arith.constant 0 : index
    %c0_114 = arith.constant 0 : index
    %96 = vector.load %arg16[%c0_113, %c0_114] : memref<128x32xbf16, #tpu.memory_space<vmem>>, vector<1x32xbf16>
    %c0_115 = arith.constant 0 : index
    %c0_116 = arith.constant 0 : index
    %97 = vector.load %arg18[%c0_115, %c0_116] : memref<1x256xbf16, #tpu.memory_space<vmem>>, vector<1x32xbf16>
    tpu.vector_store %arg18[%c0_115, %c0_116], %96 {strides = array<i32>} : memref<1x256xbf16, #tpu.memory_space<vmem>>, vector<1x32xbf16>,
    %c1_117 = arith.constant 1 : index
    %c0_118 = arith.constant 0 : index
    %98 = vector.load %arg16[%c1_117, %c0_118] : memref<128x32xbf16, #tpu.memory_space<vmem>>, vector<1x32xbf16>
    %c0_119 = arith.constant 0 : index
    %c32_120 = arith.constant 32 : index
    %99 = vector.load %arg18[%c0_119, %c32_120] : memref<1x256xbf16, #tpu.memory_space<vmem>>, vector<1x32xbf16>
    tpu.vector_store %arg18[%c0_119, %c32_120], %98 {strides = array<i32>} : memref<1x256xbf16, #tpu.memory_space<vmem>>, vector<1x32xbf16>,
    %c2_121 = arith.constant 2 : index
    %c0_122 = arith.constant 0 : index
    %100 = vector.load %arg16[%c2_121, %c0_122] : memref<128x32xbf16, #tpu.memory_space<vmem>>, vector<1x32xbf16>
    %c0_123 = arith.constant 0 : index
    %c64_124 = arith.constant 64 : index
    %101 = vector.load %arg18[%c0_123, %c64_124] : memref<1x256xbf16, #tpu.memory_space<vmem>>, vector<1x32xbf16>
    tpu.vector_store %arg18[%c0_123, %c64_124], %100 {strides = array<i32>} : memref<1x256xbf16, #tpu.memory_space<vmem>>, vector<1x32xbf16>,
    %c3 = arith.constant 3 : index
    %c0_125 = arith.constant 0 : index
    %102 = vector.load %arg16[%c3, %c0_125] : memref<128x32xbf16, #tpu.memory_space<vmem>>, vector<1x32xbf16>
    %c0_126 = arith.constant 0 : index
    %c96 = arith.constant 96 : index
    %103 = vector.load %arg18[%c0_126, %c96] : memref<1x256xbf16, #tpu.memory_space<vmem>>, vector<1x32xbf16>
    tpu.vector_store %arg18[%c0_126, %c96], %102 {strides = array<i32>} : memref<1x256xbf16, #tpu.memory_space<vmem>>, vector<1x32xbf16>,
    %c4 = arith.constant 4 : index
    %c0_127 = arith.constant 0 : index
    %104 = vector.load %arg16[%c4, %c0_127] : memref<128x32xbf16, #tpu.memory_space<vmem>>, vector<1x32xbf16>
    %c0_128 = arith.constant 0 : index
    %c128 = arith.constant 128 : index
    %105 = vector.load %arg18[%c0_128, %c128] : memref<1x256xbf16, #tpu.memory_space<vmem>>, vector<1x32xbf16>
    tpu.vector_store %arg18[%c0_128, %c128], %104 {strides = array<i32>} : memref<1x256xbf16, #tpu.memory_space<vmem>>, vector<1x32xbf16>,
    %c5 = arith.constant 5 : index
    %c0_129 = arith.constant 0 : index
    %106 = vector.load %arg16[%c5, %c0_129] : memref<128x32xbf16, #tpu.memory_space<vmem>>, vector<1x32xbf16>
    %c0_130 = arith.constant 0 : index
    %c160 = arith.constant 160 : index
    %107 = vector.load %arg18[%c0_130, %c160] : memref<1x256xbf16, #tpu.memory_space<vmem>>, vector<1x32xbf16>
    tpu.vector_store %arg18[%c0_130, %c160], %106 {strides = array<i32>} : memref<1x256xbf16, #tpu.memory_space<vmem>>, vector<1x32xbf16>,
    %c6 = arith.constant 6 : index
    %c0_131 = arith.constant 0 : index
    %108 = vector.load %arg16[%c6, %c0_131] : memref<128x32xbf16, #tpu.memory_space<vmem>>, vector<1x32xbf16>
    %c0_132 = arith.constant 0 : index
    %c192 = arith.constant 192 : index
    %109 = vector.load %arg18[%c0_132, %c192] : memref<1x256xbf16, #tpu.memory_space<vmem>>, vector<1x32xbf16>
    tpu.vector_store %arg18[%c0_132, %c192], %108 {strides = array<i32>} : memref<1x256xbf16, #tpu.memory_space<vmem>>, vector<1x32xbf16>,
    %c7 = arith.constant 7 : index
    %c0_133 = arith.constant 0 : index
    %110 = vector.load %arg16[%c7, %c0_133] : memref<128x32xbf16, #tpu.memory_space<vmem>>, vector<1x32xbf16>
    %c0_134 = arith.constant 0 : index
    %c224 = arith.constant 224 : index
    %111 = vector.load %arg18[%c0_134, %c224] : memref<1x256xbf16, #tpu.memory_space<vmem>>, vector<1x32xbf16>
    tpu.vector_store %arg18[%c0_134, %c224], %110 {strides = array<i32>} : memref<1x256xbf16, #tpu.memory_space<vmem>>, vector<1x32xbf16>,
    %c0_135 = arith.constant 0 : index
    %c0_136 = arith.constant 0 : index
    %112 = vector.load %arg18[%c0_135, %c0_136] : memref<1x256xbf16, #tpu.memory_space<vmem>>, vector<1x256xbf16>
    %c0_137 = arith.constant 0 : index
    %c0_138 = arith.constant 0 : index
    %c0_139 = arith.constant 0 : index
    %113 = vector.load %arg10[%c0_137, %c0_138, %c0_139] : memref<5x256x128xbf16, #tpu.memory_space<vmem>>, vector<1x256x128xbf16>
    %114 = vector.shape_cast %113 : vector<1x256x128xbf16> to vector<256x128xbf16>
    %cst_140 = arith.constant dense<0.000000e+00> : vector<1x128xf32>
    %115 = tpu.matmul %112, %114, %cst_140 {dimension_numbers = #tpu.dot_dimension_numbers<[1], [0], [0], [1], [0, 0, 1, 1], [], []>} : vector<1x256xbf16>, vector<256x128xbf16>, vector<1x128xf32> -> vector<1x128xf32>
    %116 = arith.addf %95, %115 : vector<1x128xf32>
    %c8 = arith.constant 8 : index
    %c0_141 = arith.constant 0 : index
    %117 = vector.load %arg16[%c8, %c0_141] : memref<128x32xbf16, #tpu.memory_space<vmem>>, vector<1x32xbf16>
    %c0_142 = arith.constant 0 : index
    %c0_143 = arith.constant 0 : index
    %118 = vector.load %arg18[%c0_142, %c0_143] : memref<1x256xbf16, #tpu.memory_space<vmem>>, vector<1x32xbf16>
    tpu.vector_store %arg18[%c0_142, %c0_143], %117 {strides = array<i32>} : memref<1x256xbf16, #tpu.memory_space<vmem>>, vector<1x32xbf16>,
    %c9 = arith.constant 9 : index
    %c0_144 = arith.constant 0 : index
    %119 = vector.load %arg16[%c9, %c0_144] : memref<128x32xbf16, #tpu.memory_space<vmem>>, vector<1x32xbf16>
    %c0_145 = arith.constant 0 : index
    %c32_146 = arith.constant 32 : index
    %120 = vector.load %arg18[%c0_145, %c32_146] : memref<1x256xbf16, #tpu.memory_space<vmem>>, vector<1x32xbf16>
    tpu.vector_store %arg18[%c0_145, %c32_146], %119 {strides = array<i32>} : memref<1x256xbf16, #tpu.memory_space<vmem>>, vector<1x32xbf16>,
    %c10_147 = arith.constant 10 : index
    %c0_148 = arith.constant 0 : index
    %121 = vector.load %arg16[%c10_147, %c0_148] : memref<128x32xbf16, #tpu.memory_space<vmem>>, vector<1x32xbf16>
    %c0_149 = arith.constant 0 : index
    %c64_150 = arith.constant 64 : index
    %122 = vector.load %arg18[%c0_149, %c64_150] : memref<1x256xbf16, #tpu.memory_space<vmem>>, vector<1x32xbf16>
    tpu.vector_store %arg18[%c0_149, %c64_150], %121 {strides = array<i32>} : memref<1x256xbf16, #tpu.memory_space<vmem>>, vector<1x32xbf16>,
    %c11 = arith.constant 11 : index
    %c0_151 = arith.constant 0 : index
    %123 = vector.load %arg16[%c11, %c0_151] : memref<128x32xbf16, #tpu.memory_space<vmem>>, vector<1x32xbf16>
    %c0_152 = arith.constant 0 : index
    %c96_153 = arith.constant 96 : index
    %124 = vector.load %arg18[%c0_152, %c96_153] : memref<1x256xbf16, #tpu.memory_space<vmem>>, vector<1x32xbf16>
    tpu.vector_store %arg18[%c0_152, %c96_153], %123 {strides = array<i32>} : memref<1x256xbf16, #tpu.memory_space<vmem>>, vector<1x32xbf16>,
    %c12 = arith.constant 12 : index
    %c0_154 = arith.constant 0 : index
    %125 = vector.load %arg16[%c12, %c0_154] : memref<128x32xbf16, #tpu.memory_space<vmem>>, vector<1x32xbf16>
    %c0_155 = arith.constant 0 : index
    %c128_156 = arith.constant 128 : index
    %126 = vector.load %arg18[%c0_155, %c128_156] : memref<1x256xbf16, #tpu.memory_space<vmem>>, vector<1x32xbf16>
    tpu.vector_store %arg18[%c0_155, %c128_156], %125 {strides = array<i32>} : memref<1x256xbf16, #tpu.memory_space<vmem>>, vector<1x32xbf16>,
    %c13 = arith.constant 13 : index
    %c0_157 = arith.constant 0 : index
    %127 = vector.load %arg16[%c13, %c0_157] : memref<128x32xbf16, #tpu.memory_space<vmem>>, vector<1x32xbf16>
    %c0_158 = arith.constant 0 : index
    %c160_159 = arith.constant 160 : index
    %128 = vector.load %arg18[%c0_158, %c160_159] : memref<1x256xbf16, #tpu.memory_space<vmem>>, vector<1x32xbf16>
    tpu.vector_store %arg18[%c0_158, %c160_159], %127 {strides = array<i32>} : memref<1x256xbf16, #tpu.memory_space<vmem>>, vector<1x32xbf16>,
    %c14 = arith.constant 14 : index
    %c0_160 = arith.constant 0 : index
    %129 = vector.load %arg16[%c14, %c0_160] : memref<128x32xbf16, #tpu.memory_space<vmem>>, vector<1x32xbf16>
    %c0_161 = arith.constant 0 : index
    %c192_162 = arith.constant 192 : index
    %130 = vector.load %arg18[%c0_161, %c192_162] : memref<1x256xbf16, #tpu.memory_space<vmem>>, vector<1x32xbf16>
    tpu.vector_store %arg18[%c0_161, %c192_162], %129 {strides = array<i32>} : memref<1x256xbf16, #tpu.memory_space<vmem>>, vector<1x32xbf16>,
    %c15 = arith.constant 15 : index
    %c0_163 = arith.constant 0 : index
    %131 = vector.load %arg16[%c15, %c0_163] : memref<128x32xbf16, #tpu.memory_space<vmem>>, vector<1x32xbf16>
    %c0_164 = arith.constant 0 : index
    %c224_165 = arith.constant 224 : index
    %132 = vector.load %arg18[%c0_164, %c224_165] : memref<1x256xbf16, #tpu.memory_space<vmem>>, vector<1x32xbf16>
    tpu.vector_store %arg18[%c0_164, %c224_165], %131 {strides = array<i32>} : memref<1x256xbf16, #tpu.memory_space<vmem>>, vector<1x32xbf16>,
    %c0_166 = arith.constant 0 : index
    %c0_167 = arith.constant 0 : index
    %133 = vector.load %arg18[%c0_166, %c0_167] : memref<1x256xbf16, #tpu.memory_space<vmem>>, vector<1x256xbf16>
    %c1_168 = arith.constant 1 : index
    %c0_169 = arith.constant 0 : index
    %c0_170 = arith.constant 0 : index
    %134 = vector.load %arg10[%c1_168, %c0_169, %c0_170] : memref<5x256x128xbf16, #tpu.memory_space<vmem>>, vector<1x256x128xbf16>
    %135 = vector.shape_cast %134 : vector<1x256x128xbf16> to vector<256x128xbf16>
    %cst_171 = arith.constant dense<0.000000e+00> : vector<1x128xf32>
    %136 = tpu.matmul %133, %135, %cst_171 {dimension_numbers = #tpu.dot_dimension_numbers<[1], [0], [0], [1], [0, 0, 1, 1], [], []>} : vector<1x256xbf16>, vector<256x128xbf16>, vector<1x128xf32> -> vector<1x128xf32>
    %137 = arith.addf %116, %136 : vector<1x128xf32>
    %c16 = arith.constant 16 : index
    %c0_172 = arith.constant 0 : index
    %138 = vector.load %arg16[%c16, %c0_172] : memref<128x32xbf16, #tpu.memory_space<vmem>>, vector<1x32xbf16>
    %c0_173 = arith.constant 0 : index
    %c0_174 = arith.constant 0 : index
    %139 = vector.load %arg18[%c0_173, %c0_174] : memref<1x256xbf16, #tpu.memory_space<vmem>>, vector<1x32xbf16>
    tpu.vector_store %arg18[%c0_173, %c0_174], %138 {strides = array<i32>} : memref<1x256xbf16, #tpu.memory_space<vmem>>, vector<1x32xbf16>,
    %c17 = arith.constant 17 : index
    %c0_175 = arith.constant 0 : index
    %140 = vector.load %arg16[%c17, %c0_175] : memref<128x32xbf16, #tpu.memory_space<vmem>>, vector<1x32xbf16>
    %c0_176 = arith.constant 0 : index
    %c32_177 = arith.constant 32 : index
    %141 = vector.load %arg18[%c0_176, %c32_177] : memref<1x256xbf16, #tpu.memory_space<vmem>>, vector<1x32xbf16>
    tpu.vector_store %arg18[%c0_176, %c32_177], %140 {strides = array<i32>} : memref<1x256xbf16, #tpu.memory_space<vmem>>, vector<1x32xbf16>,
    %c18 = arith.constant 18 : index
    %c0_178 = arith.constant 0 : index
    %142 = vector.load %arg16[%c18, %c0_178] : memref<128x32xbf16, #tpu.memory_space<vmem>>, vector<1x32xbf16>
    %c0_179 = arith.constant 0 : index
    %c64_180 = arith.constant 64 : index
    %143 = vector.load %arg18[%c0_179, %c64_180] : memref<1x256xbf16, #tpu.memory_space<vmem>>, vector<1x32xbf16>
    tpu.vector_store %arg18[%c0_179, %c64_180], %142 {strides = array<i32>} : memref<1x256xbf16, #tpu.memory_space<vmem>>, vector<1x32xbf16>,
    %c19 = arith.constant 19 : index
    %c0_181 = arith.constant 0 : index
    %144 = vector.load %arg16[%c19, %c0_181] : memref<128x32xbf16, #tpu.memory_space<vmem>>, vector<1x32xbf16>
    %c0_182 = arith.constant 0 : index
    %c96_183 = arith.constant 96 : index
    %145 = vector.load %arg18[%c0_182, %c96_183] : memref<1x256xbf16, #tpu.memory_space<vmem>>, vector<1x32xbf16>
    tpu.vector_store %arg18[%c0_182, %c96_183], %144 {strides = array<i32>} : memref<1x256xbf16, #tpu.memory_space<vmem>>, vector<1x32xbf16>,
    %c20_184 = arith.constant 20 : index
    %c0_185 = arith.constant 0 : index
    %146 = vector.load %arg16[%c20_184, %c0_185] : memref<128x32xbf16, #tpu.memory_space<vmem>>, vector<1x32xbf16>
    %c0_186 = arith.constant 0 : index
    %c128_187 = arith.constant 128 : index
    %147 = vector.load %arg18[%c0_186, %c128_187] : memref<1x256xbf16, #tpu.memory_space<vmem>>, vector<1x32xbf16>
    tpu.vector_store %arg18[%c0_186, %c128_187], %146 {strides = array<i32>} : memref<1x256xbf16, #tpu.memory_space<vmem>>, vector<1x32xbf16>,
    %c21 = arith.constant 21 : index
    %c0_188 = arith.constant 0 : index
    %148 = vector.load %arg16[%c21, %c0_188] : memref<128x32xbf16, #tpu.memory_space<vmem>>, vector<1x32xbf16>
    %c0_189 = arith.constant 0 : index
    %c160_190 = arith.constant 160 : index
    %149 = vector.load %arg18[%c0_189, %c160_190] : memref<1x256xbf16, #tpu.memory_space<vmem>>, vector<1x32xbf16>
    tpu.vector_store %arg18[%c0_189, %c160_190], %148 {strides = array<i32>} : memref<1x256xbf16, #tpu.memory_space<vmem>>, vector<1x32xbf16>,
    %c22 = arith.constant 22 : index
    %c0_191 = arith.constant 0 : index
    %150 = vector.load %arg16[%c22, %c0_191] : memref<128x32xbf16, #tpu.memory_space<vmem>>, vector<1x32xbf16>
    %c0_192 = arith.constant 0 : index
    %c192_193 = arith.constant 192 : index
    %151 = vector.load %arg18[%c0_192, %c192_193] : memref<1x256xbf16, #tpu.memory_space<vmem>>, vector<1x32xbf16>
    tpu.vector_store %arg18[%c0_192, %c192_193], %150 {strides = array<i32>} : memref<1x256xbf16, #tpu.memory_space<vmem>>, vector<1x32xbf16>,
    %c23 = arith.constant 23 : index
    %c0_194 = arith.constant 0 : index
    %152 = vector.load %arg16[%c23, %c0_194] : memref<128x32xbf16, #tpu.memory_space<vmem>>, vector<1x32xbf16>
    %c0_195 = arith.constant 0 : index
    %c224_196 = arith.constant 224 : index
    %153 = vector.load %arg18[%c0_195, %c224_196] : memref<1x256xbf16, #tpu.memory_space<vmem>>, vector<1x32xbf16>
    tpu.vector_store %arg18[%c0_195, %c224_196], %152 {strides = array<i32>} : memref<1x256xbf16, #tpu.memory_space<vmem>>, vector<1x32xbf16>,
    %c0_197 = arith.constant 0 : index
    %c0_198 = arith.constant 0 : index
    %154 = vector.load %arg18[%c0_197, %c0_198] : memref<1x256xbf16, #tpu.memory_space<vmem>>, vector<1x256xbf16>
    %c2_199 = arith.constant 2 : index
    %c0_200 = arith.constant 0 : index
    %c0_201 = arith.constant 0 : index
    %155 = vector.load %arg10[%c2_199, %c0_200, %c0_201] : memref<5x256x128xbf16, #tpu.memory_space<vmem>>, vector<1x256x128xbf16>
    %156 = vector.shape_cast %155 : vector<1x256x128xbf16> to vector<256x128xbf16>
    %cst_202 = arith.constant dense<0.000000e+00> : vector<1x128xf32>
    %157 = tpu.matmul %154, %156, %cst_202 {dimension_numbers = #tpu.dot_dimension_numbers<[1], [0], [0], [1], [0, 0, 1, 1], [], []>} : vector<1x256xbf16>, vector<256x128xbf16>, vector<1x128xf32> -> vector<1x128xf32>
    %158 = arith.addf %137, %157 : vector<1x128xf32>
    %c24 = arith.constant 24 : index
    %c0_203 = arith.constant 0 : index
    %159 = vector.load %arg16[%c24, %c0_203] : memref<128x32xbf16, #tpu.memory_space<vmem>>, vector<1x32xbf16>
    %c0_204 = arith.constant 0 : index
    %c0_205 = arith.constant 0 : index
    %160 = vector.load %arg18[%c0_204, %c0_205] : memref<1x256xbf16, #tpu.memory_space<vmem>>, vector<1x32xbf16>
    tpu.vector_store %arg18[%c0_204, %c0_205], %159 {strides = array<i32>} : memref<1x256xbf16, #tpu.memory_space<vmem>>, vector<1x32xbf16>,
    %c25 = arith.constant 25 : index
    %c0_206 = arith.constant 0 : index
    %161 = vector.load %arg16[%c25, %c0_206] : memref<128x32xbf16, #tpu.memory_space<vmem>>, vector<1x32xbf16>
    %c0_207 = arith.constant 0 : index
    %c32_208 = arith.constant 32 : index
    %162 = vector.load %arg18[%c0_207, %c32_208] : memref<1x256xbf16, #tpu.memory_space<vmem>>, vector<1x32xbf16>
    tpu.vector_store %arg18[%c0_207, %c32_208], %161 {strides = array<i32>} : memref<1x256xbf16, #tpu.memory_space<vmem>>, vector<1x32xbf16>,
    %c26 = arith.constant 26 : index
    %c0_209 = arith.constant 0 : index
    %163 = vector.load %arg16[%c26, %c0_209] : memref<128x32xbf16, #tpu.memory_space<vmem>>, vector<1x32xbf16>
    %c0_210 = arith.constant 0 : index
    %c64_211 = arith.constant 64 : index
    %164 = vector.load %arg18[%c0_210, %c64_211] : memref<1x256xbf16, #tpu.memory_space<vmem>>, vector<1x32xbf16>
    tpu.vector_store %arg18[%c0_210, %c64_211], %163 {strides = array<i32>} : memref<1x256xbf16, #tpu.memory_space<vmem>>, vector<1x32xbf16>,
    %c27 = arith.constant 27 : index
    %c0_212 = arith.constant 0 : index
    %165 = vector.load %arg16[%c27, %c0_212] : memref<128x32xbf16, #tpu.memory_space<vmem>>, vector<1x32xbf16>
    %c0_213 = arith.constant 0 : index
    %c96_214 = arith.constant 96 : index
    %166 = vector.load %arg18[%c0_213, %c96_214] : memref<1x256xbf16, #tpu.memory_space<vmem>>, vector<1x32xbf16>
    tpu.vector_store %arg18[%c0_213, %c96_214], %165 {strides = array<i32>} : memref<1x256xbf16, #tpu.memory_space<vmem>>, vector<1x32xbf16>,
    %c28 = arith.constant 28 : index
    %c0_215 = arith.constant 0 : index
    %167 = vector.load %arg16[%c28, %c0_215] : memref<128x32xbf16, #tpu.memory_space<vmem>>, vector<1x32xbf16>
    %c0_216 = arith.constant 0 : index
    %c128_217 = arith.constant 128 : index
    %168 = vector.load %arg18[%c0_216, %c128_217] : memref<1x256xbf16, #tpu.memory_space<vmem>>, vector<1x32xbf16>
    tpu.vector_store %arg18[%c0_216, %c128_217], %167 {strides = array<i32>} : memref<1x256xbf16, #tpu.memory_space<vmem>>, vector<1x32xbf16>,
    %c29 = arith.constant 29 : index
    %c0_218 = arith.constant 0 : index
    %169 = vector.load %arg16[%c29, %c0_218] : memref<128x32xbf16, #tpu.memory_space<vmem>>, vector<1x32xbf16>
    %c0_219 = arith.constant 0 : index
    %c160_220 = arith.constant 160 : index
    %170 = vector.load %arg18[%c0_219, %c160_220] : memref<1x256xbf16, #tpu.memory_space<vmem>>, vector<1x32xbf16>
    tpu.vector_store %arg18[%c0_219, %c160_220], %169 {strides = array<i32>} : memref<1x256xbf16, #tpu.memory_space<vmem>>, vector<1x32xbf16>,
    %c30 = arith.constant 30 : index
    %c0_221 = arith.constant 0 : index
    %171 = vector.load %arg16[%c30, %c0_221] : memref<128x32xbf16, #tpu.memory_space<vmem>>, vector<1x32xbf16>
    %c0_222 = arith.constant 0 : index
    %c192_223 = arith.constant 192 : index
    %172 = vector.load %arg18[%c0_222, %c192_223] : memref<1x256xbf16, #tpu.memory_space<vmem>>, vector<1x32xbf16>
    tpu.vector_store %arg18[%c0_222, %c192_223], %171 {strides = array<i32>} : memref<1x256xbf16, #tpu.memory_space<vmem>>, vector<1x32xbf16>,
    %c31 = arith.constant 31 : index
    %c0_224 = arith.constant 0 : index
    %173 = vector.load %arg16[%c31, %c0_224] : memref<128x32xbf16, #tpu.memory_space<vmem>>, vector<1x32xbf16>
    %c0_225 = arith.constant 0 : index
    %c224_226 = arith.constant 224 : index
    %174 = vector.load %arg18[%c0_225, %c224_226] : memref<1x256xbf16, #tpu.memory_space<vmem>>, vector<1x32xbf16>
    tpu.vector_store %arg18[%c0_225, %c224_226], %173 {strides = array<i32>} : memref<1x256xbf16, #tpu.memory_space<vmem>>, vector<1x32xbf16>,
    %c0_227 = arith.constant 0 : index
    %c0_228 = arith.constant 0 : index
    %175 = vector.load %arg18[%c0_227, %c0_228] : memref<1x256xbf16, #tpu.memory_space<vmem>>, vector<1x256xbf16>
    %c3_229 = arith.constant 3 : index
    %c0_230 = arith.constant 0 : index
    %c0_231 = arith.constant 0 : index
    %176 = vector.load %arg10[%c3_229, %c0_230, %c0_231] : memref<5x256x128xbf16, #tpu.memory_space<vmem>>, vector<1x256x128xbf16>
    %177 = vector.shape_cast %176 : vector<1x256x128xbf16> to vector<256x128xbf16>
    %cst_232 = arith.constant dense<0.000000e+00> : vector<1x128xf32>
    %178 = tpu.matmul %175, %177, %cst_232 {dimension_numbers = #tpu.dot_dimension_numbers<[1], [0], [0], [1], [0, 0, 1, 1], [], []>} : vector<1x256xbf16>, vector<256x128xbf16>, vector<1x128xf32> -> vector<1x128xf32>
    %179 = arith.addf %158, %178 : vector<1x128xf32>
    %c32_233 = arith.constant 32 : index
    %c0_234 = arith.constant 0 : index
    %180 = vector.load %arg16[%c32_233, %c0_234] : memref<128x32xbf16, #tpu.memory_space<vmem>>, vector<1x32xbf16>
    %c0_235 = arith.constant 0 : index
    %c0_236 = arith.constant 0 : index
    %181 = vector.load %arg18[%c0_235, %c0_236] : memref<1x256xbf16, #tpu.memory_space<vmem>>, vector<1x32xbf16>
    tpu.vector_store %arg18[%c0_235, %c0_236], %180 {strides = array<i32>} : memref<1x256xbf16, #tpu.memory_space<vmem>>, vector<1x32xbf16>,
    %c33 = arith.constant 33 : index
    %c0_237 = arith.constant 0 : index
    %182 = vector.load %arg16[%c33, %c0_237] : memref<128x32xbf16, #tpu.memory_space<vmem>>, vector<1x32xbf16>
    %c0_238 = arith.constant 0 : index
    %c32_239 = arith.constant 32 : index
    %183 = vector.load %arg18[%c0_238, %c32_239] : memref<1x256xbf16, #tpu.memory_space<vmem>>, vector<1x32xbf16>
    tpu.vector_store %arg18[%c0_238, %c32_239], %182 {strides = array<i32>} : memref<1x256xbf16, #tpu.memory_space<vmem>>, vector<1x32xbf16>,
    %c34 = arith.constant 34 : index
    %c0_240 = arith.constant 0 : index
    %184 = vector.load %arg16[%c34, %c0_240] : memref<128x32xbf16, #tpu.memory_space<vmem>>, vector<1x32xbf16>
    %c0_241 = arith.constant 0 : index
    %c64_242 = arith.constant 64 : index
    %185 = vector.load %arg18[%c0_241, %c64_242] : memref<1x256xbf16, #tpu.memory_space<vmem>>, vector<1x32xbf16>
    tpu.vector_store %arg18[%c0_241, %c64_242], %184 {strides = array<i32>} : memref<1x256xbf16, #tpu.memory_space<vmem>>, vector<1x32xbf16>,
    %c35 = arith.constant 35 : index
    %c0_243 = arith.constant 0 : index
    %186 = vector.load %arg16[%c35, %c0_243] : memref<128x32xbf16, #tpu.memory_space<vmem>>, vector<1x32xbf16>
    %c0_244 = arith.constant 0 : index
    %c96_245 = arith.constant 96 : index
    %187 = vector.load %arg18[%c0_244, %c96_245] : memref<1x256xbf16, #tpu.memory_space<vmem>>, vector<1x32xbf16>
    tpu.vector_store %arg18[%c0_244, %c96_245], %186 {strides = array<i32>} : memref<1x256xbf16, #tpu.memory_space<vmem>>, vector<1x32xbf16>,
    %c36 = arith.constant 36 : index
    %c0_246 = arith.constant 0 : index
    %188 = vector.load %arg16[%c36, %c0_246] : memref<128x32xbf16, #tpu.memory_space<vmem>>, vector<1x32xbf16>
    %c0_247 = arith.constant 0 : index
    %c128_248 = arith.constant 128 : index
    %189 = vector.load %arg18[%c0_247, %c128_248] : memref<1x256xbf16, #tpu.memory_space<vmem>>, vector<1x32xbf16>
    tpu.vector_store %arg18[%c0_247, %c128_248], %188 {strides = array<i32>} : memref<1x256xbf16, #tpu.memory_space<vmem>>, vector<1x32xbf16>,
    %c37 = arith.constant 37 : index
    %c0_249 = arith.constant 0 : index
    %190 = vector.load %arg16[%c37, %c0_249] : memref<128x32xbf16, #tpu.memory_space<vmem>>, vector<1x32xbf16>
    %c0_250 = arith.constant 0 : index
    %c160_251 = arith.constant 160 : index
    %191 = vector.load %arg18[%c0_250, %c160_251] : memref<1x256xbf16, #tpu.memory_space<vmem>>, vector<1x32xbf16>
    tpu.vector_store %arg18[%c0_250, %c160_251], %190 {strides = array<i32>} : memref<1x256xbf16, #tpu.memory_space<vmem>>, vector<1x32xbf16>,
    %c38 = arith.constant 38 : index
    %c0_252 = arith.constant 0 : index
    %192 = vector.load %arg16[%c38, %c0_252] : memref<128x32xbf16, #tpu.memory_space<vmem>>, vector<1x32xbf16>
    %c0_253 = arith.constant 0 : index
    %c192_254 = arith.constant 192 : index
    %193 = vector.load %arg18[%c0_253, %c192_254] : memref<1x256xbf16, #tpu.memory_space<vmem>>, vector<1x32xbf16>
    tpu.vector_store %arg18[%c0_253, %c192_254], %192 {strides = array<i32>} : memref<1x256xbf16, #tpu.memory_space<vmem>>, vector<1x32xbf16>,
    %c39 = arith.constant 39 : index
    %c0_255 = arith.constant 0 : index
    %194 = vector.load %arg16[%c39, %c0_255] : memref<128x32xbf16, #tpu.memory_space<vmem>>, vector<1x32xbf16>
    %c0_256 = arith.constant 0 : index
    %c224_257 = arith.constant 224 : index
    %195 = vector.load %arg18[%c0_256, %c224_257] : memref<1x256xbf16, #tpu.memory_space<vmem>>, vector<1x32xbf16>
    tpu.vector_store %arg18[%c0_256, %c224_257], %194 {strides = array<i32>} : memref<1x256xbf16, #tpu.memory_space<vmem>>, vector<1x32xbf16>,
    %c0_258 = arith.constant 0 : index
    %c0_259 = arith.constant 0 : index
    %196 = vector.load %arg18[%c0_258, %c0_259] : memref<1x256xbf16, #tpu.memory_space<vmem>>, vector<1x256xbf16>
    %c4_260 = arith.constant 4 : index
    %c0_261 = arith.constant 0 : index
    %c0_262 = arith.constant 0 : index
    %197 = vector.load %arg10[%c4_260, %c0_261, %c0_262] : memref<5x256x128xbf16, #tpu.memory_space<vmem>>, vector<1x256x128xbf16>
    %198 = vector.shape_cast %197 : vector<1x256x128xbf16> to vector<256x128xbf16>
    %cst_263 = arith.constant dense<0.000000e+00> : vector<1x128xf32>
    %199 = tpu.matmul %196, %198, %cst_263 {dimension_numbers = #tpu.dot_dimension_numbers<[1], [0], [0], [1], [0, 0, 1, 1], [], []>} : vector<1x256xbf16>, vector<256x128xbf16>, vector<1x128xf32> -> vector<1x128xf32>
    %200 = arith.addf %179, %199 : vector<1x128xf32>
    %c0_264 = arith.constant 0 : index
    %c0_265 = arith.constant 0 : index
    %201 = vector.load %arg11[%c0_264, %c0_265] : memref<1x128xf32, #tpu.memory_space<vmem>>, vector<1x128xf32>
    %202 = arith.addf %200, %201 : vector<1x128xf32>
    %cst_266 = arith.constant dense<0.000000e+00> : vector<1xf32>
    %203 = vector.multi_reduction <add>, %202, %cst_266 [1] : vector<1x128xf32> to vector<1xf32>
    %204 = vector.shape_cast %203 : vector<1xf32> to vector<1x1xf32>
    %cst_267 = arith.constant 3.125000e-02 : f32
    %205 = vector.broadcast %cst_267 : f32 to vector<1x1xf32>
    %206 = arith.mulf %204, %205 : vector<1x1xf32>
    %207 = vector.broadcast %206 : vector<1x1xf32> to vector<1x128xf32>
    %208 = arith.subf %202, %207 : vector<1x128xf32>
    %209 = arith.mulf %208, %208 : vector<1x128xf32>
    %cst_268 = arith.constant dense<0.000000e+00> : vector<1xf32>
    %210 = vector.multi_reduction <add>, %209, %cst_268 [1] : vector<1x128xf32> to vector<1xf32>
    %211 = vector.shape_cast %210 : vector<1xf32> to vector<1x1xf32>
    %212 = arith.mulf %206, %206 : vector<1x1xf32>
    %cst_269 = arith.constant 9.600000e+01 : f32
    %213 = vector.broadcast %cst_269 : f32 to vector<1x1xf32>
    %214 = arith.mulf %213, %212 : vector<1x1xf32>
    %215 = arith.subf %211, %214 : vector<1x1xf32>
    %cst_270 = arith.constant 3.125000e-02 : f32
    %216 = vector.broadcast %cst_270 : f32 to vector<1x1xf32>
    %217 = arith.mulf %215, %216 : vector<1x1xf32>
    %cst_271 = arith.constant 9.99999974E-6 : f32
    %218 = vector.broadcast %cst_271 : f32 to vector<1x1xf32>
    %219 = arith.addf %217, %218 : vector<1x1xf32>
    %220 = math.rsqrt %219 : vector<1x1xf32>
    %221 = vector.broadcast %220 : vector<1x1xf32> to vector<1x128xf32>
    %222 = arith.mulf %208, %221 : vector<1x128xf32>
    %c0_272 = arith.constant 0 : index
    %c0_273 = arith.constant 0 : index
    %223 = vector.load %arg12[%c0_272, %c0_273] : memref<1x128xf32, #tpu.memory_space<vmem>>, vector<1x128xf32>
    %224 = arith.mulf %222, %223 : vector<1x128xf32>
    %c0_274 = arith.constant 0 : index
    %c0_275 = arith.constant 0 : index
    %225 = vector.load %arg13[%c0_274, %c0_275] : memref<1x128xf32, #tpu.memory_space<vmem>>, vector<1x128xf32>
    %226 = arith.addf %224, %225 : vector<1x128xf32>
    %227 = math.tanh %226 : vector<1x128xf32>
    %c0_276 = arith.constant 0 : index
    %c0_277 = arith.constant 0 : index
    %c0_278 = arith.constant 0 : index
    %228 = vector.load %arg14[%c0_276, %c0_277, %c0_278] : memref<1x1x128xf32, #tpu.memory_space<vmem>>, vector<1x1x128xf32>
    %229 = vector.shape_cast %228 : vector<1x1x128xf32> to vector<1x128xf32>
    %230 = vector.shape_cast %227 : vector<1x128xf32> to vector<1x1x128xf32>
    tpu.vector_store %arg14[%c0_276, %c0_277, %c0_278], %230 {strides = array<i32>} : memref<1x1x128xf32, #tpu.memory_space<vmem>>, vector<1x1x128xf32>,
    return
  }
  func.func @transform_0(%arg0: i32) -> (i32, i32, i32) {
    %c0_i32 = arith.constant 0 : i32
    %c0_i32_0 = arith.constant 0 : i32
    %c0_i32_1 = arith.constant 0 : i32
    return %arg0, %c0_i32, %c0_i32_0 : i32, i32, i32
  }
  func.func @transform_1(%arg0: i32) -> (i32, i32) {
    %c0_i32 = arith.constant 0 : i32
    %c0_i32_0 = arith.constant 0 : i32
    %c0_i32_1 = arith.constant 0 : i32
    return %c0_i32, %c0_i32_0 : i32, i32
  }
  func.func @transform_2(%arg0: i32) -> (i32, i32) {
    %c0_i32 = arith.constant 0 : i32
    %c0_i32_0 = arith.constant 0 : i32
    %c0_i32_1 = arith.constant 0 : i32
    return %c0_i32, %c0_i32_0 : i32, i32
  }
  func.func @transform_3(%arg0: i32) -> (i32, i32, i32) {
    %c0_i32 = arith.constant 0 : i32
    %c0_i32_0 = arith.constant 0 : i32
    %c0_i32_1 = arith.constant 0 : i32
    %c0_i32_2 = arith.constant 0 : i32
    return %c0_i32, %c0_i32_0, %c0_i32_1 : i32, i32, i32
  }
  func.func @transform_4(%arg0: i32) -> (i32, i32) {
    %c0_i32 = arith.constant 0 : i32
    %c0_i32_0 = arith.constant 0 : i32
    %c0_i32_1 = arith.constant 0 : i32
    return %c0_i32, %c0_i32_0 : i32, i32
  }
  func.func @transform_5(%arg0: i32) -> (i32, i32, i32) {
    %c0_i32 = arith.constant 0 : i32
    %c0_i32_0 = arith.constant 0 : i32
    %c0_i32_1 = arith.constant 0 : i32
    %c0_i32_2 = arith.constant 0 : i32
    return %c0_i32, %c0_i32_0, %c0_i32_1 : i32, i32, i32
  }
  func.func @transform_6(%arg0: i32) -> (i32, i32) {
    %c0_i32 = arith.constant 0 : i32
    %c0_i32_0 = arith.constant 0 : i32
    %c0_i32_1 = arith.constant 0 : i32
    return %c0_i32, %c0_i32_0 : i32, i32
  }
  func.func @transform_7(%arg0: i32) -> (i32, i32, i32) {
    %c0_i32 = arith.constant 0 : i32
    %c0_i32_0 = arith.constant 0 : i32
    %c0_i32_1 = arith.constant 0 : i32
    %c0_i32_2 = arith.constant 0 : i32
    return %c0_i32, %c0_i32_0, %c0_i32_1 : i32, i32, i32
  }
  func.func @transform_8(%arg0: i32) -> (i32, i32) {
    %c0_i32 = arith.constant 0 : i32
    %c0_i32_0 = arith.constant 0 : i32
    %c0_i32_1 = arith.constant 0 : i32
    return %c0_i32, %c0_i32_0 : i32, i32
  }
  func.func @transform_9(%arg0: i32) -> (i32, i32, i32) {
    %c0_i32 = arith.constant 0 : i32
    %c0_i32_0 = arith.constant 0 : i32
    %c0_i32_1 = arith.constant 0 : i32
    %c0_i32_2 = arith.constant 0 : i32
    return %c0_i32, %c0_i32_0, %c0_i32_1 : i32, i32, i32
  }
  func.func @transform_10(%arg0: i32) -> (i32, i32) {
    %c0_i32 = arith.constant 0 : i32
    %c0_i32_0 = arith.constant 0 : i32
    %c0_i32_1 = arith.constant 0 : i32
    return %c0_i32, %c0_i32_0 : i32, i32
  }
  func.func @transform_11(%arg0: i32) -> (i32, i32) {
    %c0_i32 = arith.constant 0 : i32
    %c0_i32_0 = arith.constant 0 : i32
    %c0_i32_1 = arith.constant 0 : i32
    return %c0_i32, %c0_i32_0 : i32, i32
  }
  func.func @transform_12(%arg0: i32) -> (i32, i32) {
    %c0_i32 = arith.constant 0 : i32
    %c0_i32_0 = arith.constant 0 : i32
    %c0_i32_1 = arith.constant 0 : i32
    return %c0_i32, %c0_i32_0 : i32, i32
  }
  func.func @transform_13(%arg0: i32) -> (i32, i32, i32) {
    %c0_i32 = arith.constant 0 : i32
    %c0_i32_0 = arith.constant 0 : i32
    %c0_i32_1 = arith.constant 0 : i32
    return %arg0, %c0_i32, %c0_i32_0 : i32, i32, i32
  }
}

</mosaic_0001>

<llo_original>
// kernel: _lambda_.1
$region0: #{_lambda_.1}
  #allocation0 [shape = 'u32[]', space=smem, size = 0x4, offset = 0x4, fixed_abs, tag = 'smem constant byte address 0x4 - core index']
  #allocation1 [shape = 'u32[144,128]{1,0:T(1,128)}', space=vmem, size = 0x12000, scoped, tag = 'internal scratch']
  #allocation2 [shape = 'bf16[128,32]{1,0:T(16,128)(2,1)}', space=vmem, size = 0x8000, scoped, tag = 'scratch operand']
  #allocation3 [shape = 'bf16[128,32]{1,0:T(16,128)(2,1)}', space=vmem, size = 0x8000, scoped, tag = 'scratch operand']
  #allocation4 [shape = 'bf16[112,96]{1,0:T(16,128)(2,1)}', space=vmem, size = 0x7000, scoped, tag = 'scratch operand']
  #allocation5 [shape = 'bf16[1,256]{1,0:T(2,128)(2,1)}', space=vmem, size = 0x400, scoped, tag = 'scratch operand']
  %s0 = inlined_call_operand.vmem [shape: bf16[2,104,48], index: 0, kind: input, shape index: {}]
  %s1 = inlined_call_operand.vmem [shape: bf16[48,32], index: 1, kind: input, shape index: {}]
  %s2 = inlined_call_operand.vmem [shape: f32[1,32], index: 2, kind: input, shape index: {}]
  %s3 = inlined_call_operand.vmem [shape: bf16[3,96,32], index: 3, kind: input, shape index: {}]
  %s4 = inlined_call_operand.vmem [shape: f32[1,32], index: 4, kind: input, shape index: {}]
  %s5 = inlined_call_operand.vmem [shape: bf16[3,96,32], index: 5, kind: input, shape index: {}]
  %s6 = inlined_call_operand.vmem [shape: f32[1,32], index: 6, kind: input, shape index: {}]
  %s7 = inlined_call_operand.vmem [shape: bf16[3,96,32], index: 7, kind: input, shape index: {}]
  %s8 = inlined_call_operand.vmem [shape: f32[1,32], index: 8, kind: input, shape index: {}]
  %s9 = inlined_call_operand.vmem [shape: bf16[5,256,128], index: 9, kind: input, shape index: {}]
  %s10 = inlined_call_operand.vmem [shape: f32[1,128], index: 10, kind: input, shape index: {}]
  %s11 = inlined_call_operand.vmem [shape: f32[1,128], index: 11, kind: input, shape index: {}]
  %s12 = inlined_call_operand.vmem [shape: f32[1,128], index: 12, kind: input, shape index: {}]
  %s13 = inlined_call_operand.hbm [shape: f32[2,1,128], index: 13, kind: output, shape index: {}]
  %s14 = sld [smem:[#allocation0]]
  $region85: #{_lambda_.1} parent=0
    _
  %s16 = ssub.s32 1, %s14
  %s17 = scalar_select 0, %s16, %s14
  $region1: #{_lambda_.1} parent=0
    #allocation6 [shape = 'u8[1024]{0}', space=vmem, size = 0x400, scoped, tag = 'output window, operand 0']
    #allocation7 [shape = 's32[2]{0}', space=sflag, size = 0x8, scoped, tag = 'scoped memory for _lambda_.1']
    %18 = vsyncpa [#allocation7], 0
    %s19 = scalar_lea.sflag [#allocation7], 1
    %20 = vsyncpa %s19, 0
    loop: start=0, step=1, limit=4
    $region2: #{_lambda_.1} parent=1 // loop_pre_header
      _
    $region3: #{_lambda_.1} parent=1 // loop_header
      %s22 = sphi 0, %s26
      %p23 = scmp.ge.s32.totalorder %s22, 4
      %s32 = sphi 0, %s34
      %s35 = sphi 0, %s32
      %s36 = sphi 0, %s35
      %s52 = sphi 0, %s36
      %s56 = sphi 0, %s56
      %s58 = sphi 0, %s56
      %s59 = sphi 0, %s58
      %s73 = sphi 0, %s59
      %s77 = sphi 0, %s77
      %s79 = sphi 0, %s77
      %s80 = sphi 0, %s79
      %s94 = sphi 0, %s80
      %s98 = sphi 0, %s98
      %s100 = sphi 0, %s98
      %s101 = sphi 0, %s100
      %s115 = sphi 0, %s101
      %s119 = sphi 0, %s119
      %s121 = sphi 0, %s119
      %s122 = sphi 0, %s121
      %s136 = sphi 0, %s122
      %s140 = sphi 0, %s140
      %s142 = sphi 0, %s140
      %s143 = sphi 0, %s142
      %s157 = sphi 0, %s143
      %s161 = sphi 0, %s161
      %s163 = sphi 0, %s161
      %s164 = sphi 0, %s163
      %s178 = sphi 0, %s164
      %s182 = sphi 0, %s182
      %s184 = sphi 0, %s182
      %s185 = sphi 0, %s184
      %s199 = sphi 0, %s185
      %s203 = sphi 0, %s203
      %s205 = sphi 0, %s203
      %s206 = sphi 0, %s205
      %s220 = sphi 0, %s206
      %s224 = sphi 0, %s224
      %s226 = sphi 0, %s224
      %s227 = sphi 0, %s226
      %s241 = sphi 0, %s227
      %s245 = sphi 0, %s245
      %s247 = sphi 0, %s245
      %s248 = sphi 0, %s247
      %s262 = sphi 0, %s248
      %s266 = sphi 0, %s266
      %s268 = sphi 0, %s266
      %s269 = sphi 0, %s268
      %s283 = sphi 0, %s269
      %s287 = sphi 0, %s287
      %s289 = sphi 0, %s287
      %s290 = sphi 0, %s289
      %s304 = sphi 0, %s290
      %s310 = sphi 0, %s312
      %s313 = sphi 0, %s310
      %s314 = sphi 0, %s313
      %s330 = sphi 0, %s314
    $region4: #{_lambda_.1} parent=1 // loop_header_branch
      %25 = sbr.rel (%p23) target = $region8
    $region5: #{_lambda_.1} parent=1 // loop_body
      %s27 = ssub.s32 %s22, 1
      %s28 = ssub.s32 %s22, 2
      %s29 = sadd.s32 %s22, 1
      %s30 = ssub.s32 %s22, %s29
      %p31 = scmp.eq.s32.totalorder %s30, 0
      %s33 = sadd.s32 %s32, 1
      %s34 = scalar_select %p31, %s32, %s33
      %p37 = pneg %p31
      %p38 = scmp.eq.s32.totalorder %s22, 1
      %p39 = por %p37, %p38
      %p40 = scmp.ne.s32.totalorder %s32, %s35
      %p41 = scmp.eq.s32.totalorder %s22, 0
      %p42 = por %p40, %p41
      %p43 = scmp.ne.s32.totalorder %s32, %s35
      %p44 = scmp.eq.s32.totalorder %s27, 1
      %p45 = por %p43, %p44
      %p46 = scmp.ne.s32.totalorder %s35, %s36
      %p47 = scmp.eq.s32.totalorder %s27, 0
      %p48 = por %p46, %p47
      %p49 = scmp.ne.s32.totalorder %s35, %s36
      %p50 = scmp.eq.s32.totalorder %s28, 1
      %p51 = por %p49, %p50
      %p53 = scmp.ne.s32.totalorder %s36, %s52
      %p54 = scmp.eq.s32.totalorder %s28, 0
      %p55 = por %p53, %p54
      %s57 = sadd.s32 %s56, 1
      %p60 = scmp.eq.s32.totalorder %s22, 1
      %p61 = scmp.ne.s32.totalorder %s56, %s58
      %p62 = scmp.eq.s32.totalorder %s22, 0
      %p63 = por %p61, %p62
      %p64 = scmp.ne.s32.totalorder %s56, %s58
      %p65 = scmp.eq.s32.totalorder %s27, 1
      %p66 = por %p64, %p65
      %p67 = scmp.ne.s32.totalorder %s58, %s59
      %p68 = scmp.eq.s32.totalorder %s27, 0
      %p69 = por %p67, %p68
      %p70 = scmp.ne.s32.totalorder %s58, %s59
      %p71 = scmp.eq.s32.totalorder %s28, 1
      %p72 = por %p70, %p71
      %p74 = scmp.ne.s32.totalorder %s59, %s73
      %p75 = scmp.eq.s32.totalorder %s28, 0
      %p76 = por %p74, %p75
      %s78 = sadd.s32 %s77, 1
      %p81 = scmp.eq.s32.totalorder %s22, 1
      %p82 = scmp.ne.s32.totalorder %s77, %s79
      %p83 = scmp.eq.s32.totalorder %s22, 0
      %p84 = por %p82, %p83
      %p85 = scmp.ne.s32.totalorder %s77, %s79
      %p86 = scmp.eq.s32.totalorder %s27, 1
      %p87 = por %p85, %p86
      %p88 = scmp.ne.s32.totalorder %s79, %s80
      %p89 = scmp.eq.s32.totalorder %s27, 0
      %p90 = por %p88, %p89
      %p91 = scmp.ne.s32.totalorder %s79, %s80
      %p92 = scmp.eq.s32.totalorder %s28, 1
      %p93 = por %p91, %p92
      %p95 = scmp.ne.s32.totalorder %s80, %s94
      %p96 = scmp.eq.s32.totalorder %s28, 0
      %p97 = por %p95, %p96
      %s99 = sadd.s32 %s98, 1
      %p102 = scmp.eq.s32.totalorder %s22, 1
      %p103 = scmp.ne.s32.totalorder %s98, %s100
      %p104 = scmp.eq.s32.totalorder %s22, 0
      %p105 = por %p103, %p104
      %p106 = scmp.ne.s32.totalorder %s98, %s100
      %p107 = scmp.eq.s32.totalorder %s27, 1
      %p108 = por %p106, %p107
      %p109 = scmp.ne.s32.totalorder %s100, %s101
      %p110 = scmp.eq.s32.totalorder %s27, 0
      %p111 = por %p109, %p110
      %p112 = scmp.ne.s32.totalorder %s100, %s101
      %p113 = scmp.eq.s32.totalorder %s28, 1
      %p114 = por %p112, %p113
      %p116 = scmp.ne.s32.totalorder %s101, %s115
      %p117 = scmp.eq.s32.totalorder %s28, 0
      %p118 = por %p116, %p117
      %s120 = sadd.s32 %s119, 1
      %p123 = scmp.eq.s32.totalorder %s22, 1
      %p124 = scmp.ne.s32.totalorder %s119, %s121
      %p125 = scmp.eq.s32.totalorder %s22, 0
      %p126 = por %p124, %p125
      %p127 = scmp.ne.s32.totalorder %s119, %s121
      %p128 = scmp.eq.s32.totalorder %s27, 1
      %p129 = por %p127, %p128
      %p130 = scmp.ne.s32.totalorder %s121, %s122
      %p131 = scmp.eq.s32.totalorder %s27, 0
      %p132 = por %p130, %p131
      %p133 = scmp.ne.s32.totalorder %s121, %s122
      %p134 = scmp.eq.s32.totalorder %s28, 1
      %p135 = por %p133, %p134
      %p137 = scmp.ne.s32.totalorder %s122, %s136
      %p138 = scmp.eq.s32.totalorder %s28, 0
      %p139 = por %p137, %p138
      %s141 = sadd.s32 %s140, 1
      %p144 = scmp.eq.s32.totalorder %s22, 1
      %p145 = scmp.ne.s32.totalorder %s140, %s142
      %p146 = scmp.eq.s32.totalorder %s22, 0
      %p147 = por %p145, %p146
      %p148 = scmp.ne.s32.totalorder %s140, %s142
      %p149 = scmp.eq.s32.totalorder %s27, 1
      %p150 = por %p148, %p149
      %p151 = scmp.ne.s32.totalorder %s142, %s143
      %p152 = scmp.eq.s32.totalorder %s27, 0
      %p153 = por %p151, %p152
      %p154 = scmp.ne.s32.totalorder %s142, %s143
      %p155 = scmp.eq.s32.totalorder %s28, 1
      %p156 = por %p154, %p155
      %p158 = scmp.ne.s32.totalorder %s143, %s157
      %p159 = scmp.eq.s32.totalorder %s28, 0
      %p160 = por %p158, %p159
      %s162 = sadd.s32 %s161, 1
      %p165 = scmp.eq.s32.totalorder %s22, 1
      %p166 = scmp.ne.s32.totalorder %s161, %s163
      %p167 = scmp.eq.s32.totalorder %s22, 0
      %p168 = por %p166, %p167
      %p169 = scmp.ne.s32.totalorder %s161, %s163
      %p170 = scmp.eq.s32.totalorder %s27, 1
      %p171 = por %p169, %p170
      %p172 = scmp.ne.s32.totalorder %s163, %s164
      %p173 = scmp.eq.s32.totalorder %s27, 0
      %p174 = por %p172, %p173
      %p175 = scmp.ne.s32.totalorder %s163, %s164
      %p176 = scmp.eq.s32.totalorder %s28, 1
      %p177 = por %p175, %p176
      %p179 = scmp.ne.s32.totalorder %s164, %s178
      %p180 = scmp.eq.s32.totalorder %s28, 0
      %p181 = por %p179, %p180
      %s183 = sadd.s32 %s182, 1
      %p186 = scmp.eq.s32.totalorder %s22, 1
      %p187 = scmp.ne.s32.totalorder %s182, %s184
      %p188 = scmp.eq.s32.totalorder %s22, 0
      %p189 = por %p187, %p188
      %p190 = scmp.ne.s32.totalorder %s182, %s184
      %p191 = scmp.eq.s32.totalorder %s27, 1
      %p192 = por %p190, %p191
      %p193 = scmp.ne.s32.totalorder %s184, %s185
      %p194 = scmp.eq.s32.totalorder %s27, 0
      %p195 = por %p193, %p194
      %p196 = scmp.ne.s32.totalorder %s184, %s185
      %p197 = scmp.eq.s32.totalorder %s28, 1
      %p198 = por %p196, %p197
      %p200 = scmp.ne.s32.totalorder %s185, %s199
      %p201 = scmp.eq.s32.totalorder %s28, 0
      %p202 = por %p200, %p201
      %s204 = sadd.s32 %s203, 1
      %p207 = scmp.eq.s32.totalorder %s22, 1
      %p208 = scmp.ne.s32.totalorder %s203, %s205
      %p209 = scmp.eq.s32.totalorder %s22, 0
      %p210 = por %p208, %p209
      %p211 = scmp.ne.s32.totalorder %s203, %s205
      %p212 = scmp.eq.s32.totalorder %s27, 1
      %p213 = por %p211, %p212
      %p214 = scmp.ne.s32.totalorder %s205, %s206
      %p215 = scmp.eq.s32.totalorder %s27, 0
      %p216 = por %p214, %p215
      %p217 = scmp.ne.s32.totalorder %s205, %s206
      %p218 = scmp.eq.s32.totalorder %s28, 1
      %p219 = por %p217, %p218
      %p221 = scmp.ne.s32.totalorder %s206, %s220
      %p222 = scmp.eq.s32.totalorder %s28, 0
      %p223 = por %p221, %p222
      %s225 = sadd.s32 %s224, 1
      %p228 = scmp.eq.s32.totalorder %s22, 1
      %p229 = scmp.ne.s32.totalorder %s224, %s226
      %p230 = scmp.eq.s32.totalorder %s22, 0
      %p231 = por %p229, %p230
      %p232 = scmp.ne.s32.totalorder %s224, %s226
      %p233 = scmp.eq.s32.totalorder %s27, 1
      %p234 = por %p232, %p233
      %p235 = scmp.ne.s32.totalorder %s226, %s227
      %p236 = scmp.eq.s32.totalorder %s27, 0
      %p237 = por %p235, %p236
      %p238 = scmp.ne.s32.totalorder %s226, %s227
      %p239 = scmp.eq.s32.totalorder %s28, 1
      %p240 = por %p238, %p239
      %p242 = scmp.ne.s32.totalorder %s227, %s241
      %p243 = scmp.eq.s32.totalorder %s28, 0
      %p244 = por %p242, %p243
      %s246 = sadd.s32 %s245, 1
      %p249 = scmp.eq.s32.totalorder %s22, 1
      %p250 = scmp.ne.s32.totalorder %s245, %s247
      %p251 = scmp.eq.s32.totalorder %s22, 0
      %p252 = por %p250, %p251
      %p253 = scmp.ne.s32.totalorder %s245, %s247
      %p254 = scmp.eq.s32.totalorder %s27, 1
      %p255 = por %p253, %p254
      %p256 = scmp.ne.s32.totalorder %s247, %s248
      %p257 = scmp.eq.s32.totalorder %s27, 0
      %p258 = por %p256, %p257
      %p259 = scmp.ne.s32.totalorder %s247, %s248
      %p260 = scmp.eq.s32.totalorder %s28, 1
      %p261 = por %p259, %p260
      %p263 = scmp.ne.s32.totalorder %s248, %s262
      %p264 = scmp.eq.s32.totalorder %s28, 0
      %p265 = por %p263, %p264
      %s267 = sadd.s32 %s266, 1
      %p270 = scmp.eq.s32.totalorder %s22, 1
      %p271 = scmp.ne.s32.totalorder %s266, %s268
      %p272 = scmp.eq.s32.totalorder %s22, 0
      %p273 = por %p271, %p272
      %p274 = scmp.ne.s32.totalorder %s266, %s268
      %p275 = scmp.eq.s32.totalorder %s27, 1
      %p276 = por %p274, %p275
      %p277 = scmp.ne.s32.totalorder %s268, %s269
      %p278 = scmp.eq.s32.totalorder %s27, 0
      %p279 = por %p277, %p278
      %p280 = scmp.ne.s32.totalorder %s268, %s269
      %p281 = scmp.eq.s32.totalorder %s28, 1
      %p282 = por %p280, %p281
      %p284 = scmp.ne.s32.totalorder %s269, %s283
      %p285 = scmp.eq.s32.totalorder %s28, 0
      %p286 = por %p284, %p285
      %s288 = sadd.s32 %s287, 1
      %p291 = scmp.eq.s32.totalorder %s22, 1
      %p292 = scmp.ne.s32.totalorder %s287, %s289
      %p293 = scmp.eq.s32.totalorder %s22, 0
      %p294 = por %p292, %p293
      %p295 = scmp.ne.s32.totalorder %s287, %s289
      %p296 = scmp.eq.s32.totalorder %s27, 1
      %p297 = por %p295, %p296
      %p298 = scmp.ne.s32.totalorder %s289, %s290
      %p299 = scmp.eq.s32.totalorder %s27, 0
      %p300 = por %p298, %p299
      %p301 = scmp.ne.s32.totalorder %s289, %s290
      %p302 = scmp.eq.s32.totalorder %s28, 1
      %p303 = por %p301, %p302
      %p305 = scmp.ne.s32.totalorder %s290, %s304
      %p306 = scmp.eq.s32.totalorder %s28, 0
      %p307 = por %p305, %p306
      %s308 = ssub.s32 %s22, %s29
      %p309 = scmp.eq.s32.totalorder %s308, 0
      %s311 = sadd.s32 %s310, 1
      %s312 = scalar_select %p309, %s310, %s311
      %p315 = pneg %p309
      %p316 = scmp.eq.s32.totalorder %s22, 1
      %p317 = por %p315, %p316
      %p318 = scmp.ne.s32.totalorder %s310, %s313
      %p319 = scmp.eq.s32.totalorder %s22, 0
      %p320 = por %p318, %p319
      %p321 = scmp.ne.s32.totalorder %s310, %s313
      %p322 = scmp.eq.s32.totalorder %s27, 1
      %p323 = por %p321, %p322
      %p324 = scmp.ne.s32.totalorder %s313, %s314
      %p325 = scmp.eq.s32.totalorder %s27, 0
      %p326 = por %p324, %p325
      %p327 = scmp.ne.s32.totalorder %s313, %s314
      %p328 = scmp.eq.s32.totalorder %s28, 1
      %p329 = por %p327, %p328
      %p331 = scmp.ne.s32.totalorder %s314, %s330
      %p332 = scmp.eq.s32.totalorder %s28, 0
      %p333 = por %p331, %p332
      %p334 = scmp.le.s32.totalorder 1, %s22
      %p335 = scmp.lt.s32.totalorder %s22, 3
      %p336 = pnand %p334, %p335
      %p337 = pneg %p336
      // Predicated region
      $region9: #{_lambda_.1} parent=5 // pred_check
        _
      $region10: #{_lambda_.1} parent=5 // pred_check_branch
        %339 = sbr.rel (%p336) target = $region12
      $region11: #{_lambda_.1} parent=5 // pred_region
        %s340 = ssub.s32 %s22, 1
        // Predicated region
        $region13: #{_lambda_.1} parent=11 // pred_check
          %p341 = pneg %p69
        $region14: #{_lambda_.1} parent=11 // pred_check_branch
          %343 = sbr.rel (%p341) target = $region16
        $region15: #{_lambda_.1} parent=11 // pred_region
          _
        $region16: #{_lambda_.1} parent=11 // pred_fallthru
          _
        // Predicated region
        $region17: #{_lambda_.1} parent=11 // pred_check
          %p344 = pneg %p90
        $region18: #{_lambda_.1} parent=11 // pred_check_branch
          %346 = sbr.rel (%p344) target = $region20
        $region19: #{_lambda_.1} parent=11 // pred_region
          _
        $region20: #{_lambda_.1} parent=11 // pred_fallthru
          _
        // Predicated region
        $region21: #{_lambda_.1} parent=11 // pred_check
          %p347 = pneg %p111
        $region22: #{_lambda_.1} parent=11 // pred_check_branch
          %349 = sbr.rel (%p347) target = $region24
        $region23: #{_lambda_.1} parent=11 // pred_region
          _
        $region24: #{_lambda_.1} parent=11 // pred_fallthru
          _
        // Predicated region
        $region25: #{_lambda_.1} parent=11 // pred_check
          %p350 = pneg %p132
        $region26: #{_lambda_.1} parent=11 // pred_check_branch
          %352 = sbr.rel (%p350) target = $region28
        $region27: #{_lambda_.1} parent=11 // pred_region
          _
        $region28: #{_lambda_.1} parent=11 // pred_fallthru
          _
        // Predicated region
        $region29: #{_lambda_.1} parent=11 // pred_check
          %p353 = pneg %p153
        $region30: #{_lambda_.1} parent=11 // pred_check_branch
          %355 = sbr.rel (%p353) target = $region32
        $region31: #{_lambda_.1} parent=11 // pred_region
          _
        $region32: #{_lambda_.1} parent=11 // pred_fallthru
          _
        // Predicated region
        $region33: #{_lambda_.1} parent=11 // pred_check
          %p356 = pneg %p174
        $region34: #{_lambda_.1} parent=11 // pred_check_branch
          %358 = sbr.rel (%p356) target = $region36
        $region35: #{_lambda_.1} parent=11 // pred_region
          _
        $region36: #{_lambda_.1} parent=11 // pred_fallthru
          _
        // Predicated region
        $region37: #{_lambda_.1} parent=11 // pred_check
          %p359 = pneg %p195
        $region38: #{_lambda_.1} parent=11 // pred_check_branch
          %361 = sbr.rel (%p359) target = $region40
        $region39: #{_lambda_.1} parent=11 // pred_region
          _
        $region40: #{_lambda_.1} parent=11 // pred_fallthru
          _
        // Predicated region
        $region41: #{_lambda_.1} parent=11 // pred_check
          %p362 = pneg %p216
        $region42: #{_lambda_.1} parent=11 // pred_check_branch
          %364 = sbr.rel (%p362) target = $region44
        $region43: #{_lambda_.1} parent=11 // pred_region
          _
        $region44: #{_lambda_.1} parent=11 // pred_fallthru
          _
        // Predicated region
        $region45: #{_lambda_.1} parent=11 // pred_check
          %p365 = pneg %p237
        $region46: #{_lambda_.1} parent=11 // pred_check_branch
          %367 = sbr.rel (%p365) target = $region48
        $region47: #{_lambda_.1} parent=11 // pred_region
          _
        $region48: #{_lambda_.1} parent=11 // pred_fallthru
          _
        // Predicated region
        $region49: #{_lambda_.1} parent=11 // pred_check
          %p368 = pneg %p258
        $region50: #{_lambda_.1} parent=11 // pred_check_branch
          %370 = sbr.rel (%p368) target = $region52
        $region51: #{_lambda_.1} parent=11 // pred_region
          _
        $region52: #{_lambda_.1} parent=11 // pred_fallthru
          _
        // Predicated region
        $region53: #{_lambda_.1} parent=11 // pred_check
          %p371 = pneg %p279
        $region54: #{_lambda_.1} parent=11 // pred_check_branch
          %373 = sbr.rel (%p371) target = $region56
        $region55: #{_lambda_.1} parent=11 // pred_region
          _
        $region56: #{_lambda_.1} parent=11 // pred_fallthru
          _
        // Predicated region
        $region57: #{_lambda_.1} parent=11 // pred_check
          %p374 = pneg %p300
        $region58: #{_lambda_.1} parent=11 // pred_check_branch
          %376 = sbr.rel (%p374) target = $region60
        $region59: #{_lambda_.1} parent=11 // pred_region
          _
        $region60: #{_lambda_.1} parent=11 // pred_fallthru
          _
      $region12: #{_lambda_.1} parent=5 // pred_fallthru
        _
      %p377 = scmp.lt.s32.totalorder %s22, 2
      // Predicated region
      $region61: #{_lambda_.1} parent=5 // pred_check
        %p378 = pneg %p377
      $region62: #{_lambda_.1} parent=5 // pred_check_branch
        %380 = sbr.rel (%p378) target = $region64
      $region63: #{_lambda_.1} parent=5 // pred_region
        // Predicated region
        $region65: #{_lambda_.1} parent=63 // pred_check
          %p381 = pneg %p42
        $region66: #{_lambda_.1} parent=63 // pred_check_branch
          %383 = sbr.rel (%p381) target = $region68
        $region67: #{_lambda_.1} parent=63 // pred_region
          %p384 = scmp.lt.s32.totalorder %s22, 1
          %s385 = scalar_select %p384, %s22, 1
          %s386 = smul.addr %s385, 13
          %s387 = smul.addr %s386, 4
          %s388 = scalar_lea.vmem %s0, %s387
        $region68: #{_lambda_.1} parent=63 // pred_fallthru
          _
      $region64: #{_lambda_.1} parent=5 // pred_fallthru
        _
      %p389 = scmp.le.s32.totalorder 1, %s22
      %p390 = scmp.lt.s32.totalorder %s22, 3
      %p391 = pnand %p389, %p390
      %p392 = pneg %p391
      // Predicated region
      $region69: #{_lambda_.1} parent=5 // pred_check
        _
      $region70: #{_lambda_.1} parent=5 // pred_check_branch
        %394 = sbr.rel (%p391) target = $region72
      $region71: #{_lambda_.1} parent=5 // pred_region
        %s395 = ssub.s32 %s22, 1
        %p396 = scmp.lt.s32.totalorder %s27, 1
        %s397 = scalar_select %p396, %s27, 1
        %s398 = smul.addr %s397, 13
        %s399 = smul.addr %s398, 4
        %s400 = scalar_lea.vmem %s0, %s399
        %p401 = pneg %p48
        %p402 = pneg %p45
        %p403 = pneg %p69
        %p404 = pneg %p66
        %p405 = pneg %p90
        %p406 = pneg %p87
        %p407 = pneg %p111
        %p408 = pneg %p108
        %p409 = pneg %p132
        %p410 = pneg %p129
        %p411 = pneg %p153
        %p412 = pneg %p150
        %p413 = pneg %p174
        %p414 = pneg %p171
        %p415 = pneg %p195
        %p416 = pneg %p192
        %p417 = pneg %p216
        %p418 = pneg %p213
        %p419 = pneg %p237
        %p420 = pneg %p234
        %p421 = pneg %p258
        %p422 = pneg %p255
        %p423 = pneg %p279
        %p424 = pneg %p276
        %p425 = pneg %p300
        %p426 = pneg %p297
        %p427 = pneg %p326
        %p428 = pneg %p323
        %s429 = sand.u32 %s313, 1
        %s430 = scalar_lea.sflag [#allocation7], %s429
        %s431 = sand.u32 %s313, 1
        %s432 = scalar_lea.vmem [#allocation6], %s431
        %p433 = scmp.lt.s32.totalorder %s27, 1
        %s434 = scalar_select %p433, %s27, 1
        %s435 = smul.addr %s434, 13
        %s436 = smul.addr %s435, 4
        %s437 = scalar_lea.vmem %s0, %s436
        %vm439 = vcmask 261124
        %440 = vst.msk [vmem:[#allocation2 + $0x30] sm:$0xf0] %vm439, 0
        %vm441 = vcmask 261120
        %442 = vst.msk [vmem:[#allocation2 + $0x38] sm:$0xff] %vm441, 0
        %443 = vst.msk [vmem:[#allocation3 + $0x30] sm:$0xf0] %vm439, 0
        %444 = vst.msk [vmem:[#allocation3 + $0x38] sm:$0xff] %vm441, 0
        %v445 = vld [vmem:[%s437] sm:$0xf]
        %v446 = vld [vmem:[%s437 + $0x4] sm:$0xf]
        %v447 = vld [vmem:[%s437 + $0x8] sm:$0xf]
        %v448 = vld [vmem:[%s437 + $0xc] sm:$0xf]
        %v449 = vld [vmem:[%s437 + $0x10] sm:$0xf]
        %v450 = vld [vmem:[%s437 + $0x14] sm:$0xf]
        %v451 = vld [vmem:[%s437 + $0x18] sm:$0xf]
        %v452 = vld [vmem:[%s437 + $0x1c] sm:$0xf]
        %v453 = vld [vmem:[%s437 + $0x20] sm:$0xf]
        %v454 = vld [vmem:[%s437 + $0x24] sm:$0xf]
        %v455 = vld [vmem:[%s437 + $0x28] sm:$0xf]
        %v456 = vld [vmem:[%s437 + $0x2c] sm:$0xf]
        %v457 = vld [vmem:[%s437 + $0x30] sm:$0xf]
        %v458 = vld [vmem:[%s1] sm:$0xf]
        %v459 = vld [vmem:[%s1 + $0x4] sm:$0xf]
        %v460 = vld [vmem:[%s1 + $0x8] sm:$0xf]
        %v461 = vld [vmem:[%s1 + $0xc] sm:$0xf]
        %v462 = vld [vmem:[%s1 + $0x10] sm:$0xf]
        %v463 = vld [vmem:[%s1 + $0x14] sm:$0xf]
        %v464 = vld [vmem:[%s2] sm:$0x1]
        %v466 = vlaneseq
        %v467 = vshrl.u32 %v466, 7
        %v468 = vsub.s32 0, %v467
        %v469 = vrot.slane %v464, %v468
        %v484 = vunpack.c.l.b16 %v445
        %v485 = vunpack.c.l.b16 %v446
        %v486 = vunpack.c.l.b16 %v447
        %v487 = vunpack.c.l.b16 %v448
        %v488 = vunpack.c.l.b16 %v449
        %v489 = vunpack.c.l.b16 %v450
        %v490 = vunpack.c.l.b16 %v451
        %v491 = vunpack.c.l.b16 %v452
        %v492 = vunpack.c.l.b16 %v453
        %v493 = vunpack.c.l.b16 %v454
        %v494 = vunpack.c.l.b16 %v455
        %v495 = vunpack.c.l.b16 %v456
        %v496 = vunpack.c.l.b16 %v457
        %v497 = vpack.c.b16 %v485, %v484
        %v498 = vpack.c.b16 %v487, %v486
        %v499 = vpack.c.b16 %v489, %v488
        %v500 = vpack.c.b16 %v491, %v490
        %v501 = vpack.c.b16 %v493, %v492
        %v502 = vpack.c.b16 %v495, %v494
        %v503 = vpack.c.b16 %v496, %v496
        %v510 = vunpack.c.l.b16 %v458
        %v511 = vunpack.c.l.b16 %v459
        %v512 = vunpack.c.l.b16 %v460
        %v513 = vunpack.c.l.b16 %v461
        %v514 = vunpack.c.l.b16 %v462
        %v515 = vunpack.c.l.b16 %v463
        %v516 = vpack.c.b16 %v511, %v510
        %v517 = vpack.c.b16 %v513, %v512
        %v518 = vpack.c.b16 %v515, %v514
        %vm522 = vcmask 392192
        %v524 = vsel %vm522, %v497, 0
        %v527 = vsel %vm522, %v498, 0
        %v530 = vsel %vm522, %v499, 0
        %v533 = vsel %vm522, %v500, 0
        %v536 = vsel %vm522, %v501, 0
        %v539 = vsel %vm522, %v502, 0
        %v542 = vsel %vm522, %v503, 0
        %544 = vmatprep.subr.bf16.mxu0 0
        %545 = vmatpush1.bf16.msra.mxu0 %v516
        %546 = vmatprep.subr.bf16.mxu0 0
        %547 = vmatpush1.bf16.msra.mxu0 %v517
        %548 = vmatprep.subr.bf16.mxu0 0
        %549 = vmatpush1.bf16.msra.mxu0 %v518
        %550 = vmatprep.subr.bf16.mxu0 0
        %551 = vmatpush1.bf16.msra.mxu0 0
        %552 = vmatprep.subr.bf16.mxu0 0
        %553 = vmatpush1.bf16.msra.mxu0 0
        %554 = vmatprep.subr.bf16.mxu0 0
        %555 = vmatpush1.bf16.msra.mxu0 0
        %556 = vmatprep.subr.bf16.mxu0 0
        %557 = vmatpush1.bf16.msra.mxu0 0
        %558 = vmatprep.subr.bf16.mxu0 0
        %559 = vmatpush1.bf16.msra.mxu0 0
        %560 = vmatprep.subr.bf16.mxu0 0
        %561 = vmatpush1.bf16.msra.mxu0 0
        %562 = vmatprep.subr.bf16.mxu0 0
        %563 = vmatpush1.bf16.msra.mxu0 0
        %564 = vmatprep.subr.bf16.mxu0 0
        %565 = vmatpush1.bf16.msra.mxu0 0
        %566 = vmatprep.subr.bf16.mxu0 0
        %567 = vmatpush1.bf16.msra.mxu0 0
        %568 = vmatprep.subr.bf16.mxu0 0
        %569 = vmatpush1.bf16.msra.mxu0 0
        %570 = vmatprep.subr.bf16.mxu0 0
        %571 = vmatpush1.bf16.msra.mxu0 0
        %572 = vmatprep.subr.bf16.mxu0 0
        %573 = vmatpush1.bf16.msra.mxu0 0
        %574 = vmatprep.subr.bf16.mxu0 0
        %575 = vmatpush1.bf16.msra.mxu0 0
        %576 = vmatprep.mubr.bf16.mxu0 0
        %577 = vmatmul.mubr.bf16.gmra.mrb[0].mxu0 %v524
        %v578 = vpop.f32.mrb[0].mxu0
        %v579 = vadd.f32 %v469, %v578
        %v580 = vpop.f32.mrb[0].mxu0
        %v581 = vpop.f32.mrb[0].mxu0
        %v582 = vadd.f32 %v469, %v581
        %v583 = vpop.f32.mrb[0].mxu0
        %584 = vmatprep.mubr.bf16.mxu0 0
        %585 = vmatmul.mubr.bf16.gmra.mrb[0].mxu0 %v527
        %v586 = vpop.f32.mrb[0].mxu0
        %v587 = vadd.f32 %v469, %v586
        %v588 = vpop.f32.mrb[0].mxu0
        %v589 = vpop.f32.mrb[0].mxu0
        %v590 = vadd.f32 %v469, %v589
        %v591 = vpop.f32.mrb[0].mxu0
        %592 = vmatprep.mubr.bf16.mxu0 0
        %593 = vmatmul.mubr.bf16.gmra.mrb[0].mxu0 %v530
        %v594 = vpop.f32.mrb[0].mxu0
        %v595 = vadd.f32 %v469, %v594
        %v596 = vpop.f32.mrb[0].mxu0
        %v597 = vpop.f32.mrb[0].mxu0
        %v598 = vadd.f32 %v469, %v597
        %v599 = vpop.f32.mrb[0].mxu0
        %600 = vmatprep.mubr.bf16.mxu0 0
        %601 = vmatmul.mubr.bf16.gmra.mrb[0].mxu0 %v533
        %v602 = vpop.f32.mrb[0].mxu0
        %v603 = vadd.f32 %v469, %v602
        %v604 = vpop.f32.mrb[0].mxu0
        %v605 = vpop.f32.mrb[0].mxu0
        %v606 = vadd.f32 %v469, %v605
        %v607 = vpop.f32.mrb[0].mxu0
        %608 = vmatprep.mubr.bf16.mxu0 0
        %609 = vmatmul.mubr.bf16.gmra.mrb[0].mxu0 %v536
        %v610 = vpop.f32.mrb[0].mxu0
        %v611 = vadd.f32 %v469, %v610
        %v612 = vpop.f32.mrb[0].mxu0
        %v613 = vpop.f32.mrb[0].mxu0
        %v614 = vadd.f32 %v469, %v613
        %v615 = vpop.f32.mrb[0].mxu0
        %616 = vmatprep.mubr.bf16.mxu0 0
        %617 = vmatmul.mubr.bf16.gmra.mrb[0].mxu0 %v539
        %v618 = vpop.f32.mrb[0].mxu0
        %v619 = vadd.f32 %v469, %v618
        %v620 = vpop.f32.mrb[0].mxu0
        %v621 = vpop.f32.mrb[0].mxu0
        %v622 = vadd.f32 %v469, %v621
        %v623 = vpop.f32.mrb[0].mxu0
        %624 = vmatprep.mubr.bf16.mxu0 0
        %625 = vmatmul.mubr.bf16.gmra.mrb[0].mxu0 %v542
        %v626 = vpop.f32.mrb[0].mxu0
        %v627 = vadd.f32 %v469, %v626
        %v628 = vpop.f32.mrb[0].mxu0
        %v629 = vpop.f32.mrb[0].mxu0
        %v630 = vpop.f32.mrb[0].mxu0
        %631 = vdwg.mxu0
        %v632 = vmax.f32 %v579, 0.0
        %v633 = vmax.f32 %v582, 0.0
        %v634 = vmax.f32 %v587, 0.0
        %v635 = vmax.f32 %v590, 0.0
        %v636 = vmax.f32 %v595, 0.0
        %v637 = vmax.f32 %v598, 0.0
        %v638 = vmax.f32 %v603, 0.0
        %v639 = vmax.f32 %v606, 0.0
        %v640 = vmax.f32 %v611, 0.0
        %v641 = vmax.f32 %v614, 0.0
        %v642 = vmax.f32 %v619, 0.0
        %v643 = vmax.f32 %v622, 0.0
        %v644 = vmax.f32 %v627, 0.0
        %v645 = vpack.c.bf16 %v633, %v632
        %v646 = vpack.c.bf16 %v635, %v634
        %v647 = vpack.c.bf16 %v637, %v636
        %v648 = vpack.c.bf16 %v639, %v638
        %v649 = vpack.c.bf16 %v641, %v640
        %v650 = vpack.c.bf16 %v643, %v642
        %v651 = vpack.c.bf16 %v644, %v644
        %652 = vst.msk [vmem:[#allocation2] sm:$0xff] %vm441, %v645
        %653 = vst.msk [vmem:[#allocation2 + $0x8] sm:$0xff] %vm441, %v646
        %654 = vst.msk [vmem:[#allocation2 + $0x10] sm:$0xff] %vm441, %v647
        %655 = vst.msk [vmem:[#allocation2 + $0x18] sm:$0xff] %vm441, %v648
        %656 = vst.msk [vmem:[#allocation2 + $0x20] sm:$0xff] %vm441, %v649
        %657 = vst.msk [vmem:[#allocation2 + $0x28] sm:$0xff] %vm441, %v650
        %vm658 = vcmask 257024
        %659 = vst.msk [vmem:[#allocation2 + $0x30] sm:$0xf] %vm658, %v651
        %v660 = vld [vmem:[#allocation2] sm:$0xff]
        %v661 = vld [vmem:[#allocation2 + $0x8] sm:$0xff]
        %v662 = vld [vmem:[#allocation2 + $0x10] sm:$0xff]
        %v663 = vld [vmem:[#allocation2 + $0x18] sm:$0xff]
        %v664 = vld [vmem:[#allocation2 + $0x20] sm:$0xff]
        %v665 = vld [vmem:[#allocation2 + $0x28] sm:$0xff]
        %v666 = vld [vmem:[#allocation2 + $0x30] sm:$0x3f]
        %667 = vst.msk [vmem:[#allocation4] sm:$0xff] %vm441, %v660
        %668 = vst.msk [vmem:[#allocation4 + $0x8] sm:$0xff] %vm441, %v661
        %669 = vst.msk [vmem:[#allocation4 + $0x10] sm:$0xff] %vm441, %v662
        %670 = vst.msk [vmem:[#allocation4 + $0x18] sm:$0xff] %vm441, %v663
        %671 = vst.msk [vmem:[#allocation4 + $0x20] sm:$0xff] %vm441, %v664
        %672 = vst.msk [vmem:[#allocation4 + $0x28] sm:$0xff] %vm441, %v665
        %vm673 = vcmask 259072
        %674 = vst.msk [vmem:[#allocation4 + $0x30] sm:$0x3f] %vm673, %v666
        %v675 = vld [vmem:[#allocation2] sm:$0xff]
        %v676 = vld [vmem:[#allocation2 + $0x8] sm:$0xff]
        %v677 = vld [vmem:[#allocation2 + $0x10] sm:$0xff]
        %v678 = vld [vmem:[#allocation2 + $0x18] sm:$0xff]
        %v679 = vld [vmem:[#allocation2 + $0x20] sm:$0xff]
        %v680 = vld [vmem:[#allocation2 + $0x28] sm:$0xff]
        %v681 = vld [vmem:[#allocation2 + $0x30] sm:$0x7f]
        %vm682 = vsmask.f32 7424
        %v684 = vshrl.u32 %v675, 16
        %v686 = vshll.u32 %v675, 16
        %v688 = vrot.slane %v686, 1
        %v689 = vor.u32 %v684, %v688
        %v691 = vshll.u32 %v676, 16
        %v693 = vrot.slane %v691, 1
        %v694 = vsel %vm682, %v689, %v693
        %v695 = vshrl.u32 %v676, 16
        %v697 = vor.u32 %v695, %v693
        %v699 = vshll.u32 %v677, 16
        %v701 = vrot.slane %v699, 1
        %v702 = vsel %vm682, %v697, %v701
        %v703 = vshrl.u32 %v677, 16
        %v705 = vor.u32 %v703, %v701
        %v707 = vshll.u32 %v678, 16
        %v709 = vrot.slane %v707, 1
        %v710 = vsel %vm682, %v705, %v709
        %v711 = vshrl.u32 %v678, 16
        %v713 = vor.u32 %v711, %v709
        %v715 = vshll.u32 %v679, 16
        %v717 = vrot.slane %v715, 1
        %v718 = vsel %vm682, %v713, %v717
        %v719 = vshrl.u32 %v679, 16
        %v721 = vor.u32 %v719, %v717
        %v723 = vshll.u32 %v680, 16
        %v725 = vrot.slane %v723, 1
        %v726 = vsel %vm682, %v721, %v725
        %v727 = vshrl.u32 %v680, 16
        %v729 = vor.u32 %v727, %v725
        %v731 = vshll.u32 %v681, 16
        %v733 = vrot.slane %v731, 1
        %v734 = vsel %vm682, %v729, %v733
        %v735 = vshrl.u32 %v681, 16
        %v737 = vor.u32 %v735, %v733
        %738 = vrot.lane.b32.xlu0 %v694, 32
        %v739 = vpop.permute.xlu0 %738
        %740 = vrot.lane.b32.xlu0 %v702, 32
        %v741 = vpop.permute.xlu0 %740
        %742 = vrot.lane.b32.xlu0 %v710, 32
        %v743 = vpop.permute.xlu0 %742
        %744 = vrot.lane.b32.xlu0 %v718, 32
        %v745 = vpop.permute.xlu0 %744
        %746 = vrot.lane.b32.xlu0 %v726, 32
        %v747 = vpop.permute.xlu0 %746
        %748 = vrot.lane.b32.xlu0 %v734, 32
        %v749 = vpop.permute.xlu0 %748
        %750 = vrot.lane.b32.xlu0 %v737, 32
        %v751 = vpop.permute.xlu0 %750
        %vm759 = vcmask 523520
        %760 = vst.msk [vmem:[#allocation4] sm:$0xff] %vm759, %v739
        %761 = vst.msk [vmem:[#allocation4 + $0x8] sm:$0xff] %vm759, %v741
        %762 = vst.msk [vmem:[#allocation4 + $0x10] sm:$0xff] %vm759, %v743
        %763 = vst.msk [vmem:[#allocation4 + $0x18] sm:$0xff] %vm759, %v745
        %764 = vst.msk [vmem:[#allocation4 + $0x20] sm:$0xff] %vm759, %v747
        %765 = vst.msk [vmem:[#allocation4 + $0x28] sm:$0xff] %vm759, %v749
        %vm766 = vcmask 521472
        %767 = vst.msk [vmem:[#allocation4 + $0x30] sm:$0x3f] %vm766, %v751
        %v768 = vld [vmem:[#allocation2] sm:$0xfe]
        %v769 = vld [vmem:[#allocation2 + $0x8] sm:$0xff]
        %v770 = vld [vmem:[#allocation2 + $0x10] sm:$0xff]
        %v771 = vld [vmem:[#allocation2 + $0x18] sm:$0xff]
        %v772 = vld [vmem:[#allocation2 + $0x20] sm:$0xff]
        %v773 = vld [vmem:[#allocation2 + $0x28] sm:$0xff]
        %v774 = vld [vmem:[#allocation2 + $0x30] sm:$0x7f]
        %vm782 = vcmask 1046528
        %v783 = vrot.slane %v768, 1
        %v784 = vrot.slane %v769, 1
        %v785 = vsel %vm782, %v783, %v784
        %v786 = vrot.slane %v770, 1
        %v787 = vsel %vm782, %v784, %v786
        %v788 = vrot.slane %v771, 1
        %v789 = vsel %vm782, %v786, %v788
        %v790 = vrot.slane %v772, 1
        %v791 = vsel %vm782, %v788, %v790
        %v792 = vrot.slane %v773, 1
        %v793 = vsel %vm782, %v790, %v792
        %v794 = vrot.slane %v774, 1
        %v795 = vsel %vm782, %v792, %v794
        %796 = vrot.lane.b32.xlu0 %v785, 64
        %v797 = vpop.permute.xlu0 %796
        %798 = vrot.lane.b32.xlu0 %v787, 64
        %v799 = vpop.permute.xlu0 %798
        %800 = vrot.lane.b32.xlu0 %v789, 64
        %v801 = vpop.permute.xlu0 %800
        %802 = vrot.lane.b32.xlu0 %v791, 64
        %v803 = vpop.permute.xlu0 %802
        %804 = vrot.lane.b32.xlu0 %v793, 64
        %v805 = vpop.permute.xlu0 %804
        %806 = vrot.lane.b32.xlu0 %v795, 64
        %v807 = vpop.permute.xlu0 %806
        %808 = vrot.lane.b32.xlu0 %v794, 64
        %v809 = vpop.permute.xlu0 %808
        %vm817 = vcmask 785920
        %818 = vst.msk [vmem:[#allocation4] sm:$0xff] %vm817, %v797
        %819 = vst.msk [vmem:[#allocation4 + $0x8] sm:$0xff] %vm817, %v799
        %820 = vst.msk [vmem:[#allocation4 + $0x10] sm:$0xff] %vm817, %v801
        %821 = vst.msk [vmem:[#allocation4 + $0x18] sm:$0xff] %vm817, %v803
        %822 = vst.msk [vmem:[#allocation4 + $0x20] sm:$0xff] %vm817, %v805
        %823 = vst.msk [vmem:[#allocation4 + $0x28] sm:$0xff] %vm817, %v807
        %vm824 = vcmask 783872
        %825 = vst.msk [vmem:[#allocation4 + $0x30] sm:$0x3f] %vm824, %v809
        %v826 = vld [vmem:[#allocation4] sm:$0xff]
        %v827 = vld [vmem:[#allocation4 + $0x8] sm:$0xff]
        %v828 = vld [vmem:[#allocation4 + $0x10] sm:$0xff]
        %v829 = vld [vmem:[#allocation4 + $0x18] sm:$0xff]
        %v830 = vld [vmem:[#allocation4 + $0x20] sm:$0xff]
        %v831 = vld [vmem:[#allocation4 + $0x28] sm:$0xf]
        %v832 = vld [vmem:[%s3] sm:$0xf]
        %v833 = vld [vmem:[%s3 + $0x4] sm:$0xf]
        %v834 = vld [vmem:[%s3 + $0x8] sm:$0xf]
        %v835 = vld [vmem:[%s3 + $0xc] sm:$0xf]
        %v836 = vld [vmem:[%s3 + $0x10] sm:$0xf]
        %v837 = vld [vmem:[%s3 + $0x14] sm:$0xf]
        %v838 = vld [vmem:[%s3 + $0x18] sm:$0xf]
        %v839 = vld [vmem:[%s3 + $0x1c] sm:$0xf]
        %v840 = vld [vmem:[%s3 + $0x20] sm:$0xf]
        %v841 = vld [vmem:[%s3 + $0x24] sm:$0xf]
        %v842 = vld [vmem:[%s3 + $0x28] sm:$0xf]
        %v843 = vld [vmem:[%s3 + $0x2c] sm:$0xf]
        %v844 = vld [vmem:[#allocation4] sm:$0xe0]
        %v845 = vld [vmem:[#allocation4 + $0x28] sm:$0xff]
        %v846 = vld [vmem:[#allocation4 + $0x30] sm:$0x1]
        %s847 = scalar_lea.vmem %s3, 48
        %v848 = vld [vmem:[%s847] sm:$0xf]
        %v849 = vld [vmem:[%s847 + $0x4] sm:$0xf]
        %v850 = vld [vmem:[%s847 + $0x8] sm:$0xf]
        %v851 = vld [vmem:[%s847 + $0xc] sm:$0xf]
        %v852 = vld [vmem:[%s847 + $0x10] sm:$0xf]
        %v853 = vld [vmem:[%s847 + $0x14] sm:$0xf]
        %v854 = vld [vmem:[%s847 + $0x18] sm:$0xf]
        %v855 = vld [vmem:[%s847 + $0x1c] sm:$0xf]
        %v856 = vld [vmem:[%s847 + $0x20] sm:$0xf]
        %v857 = vld [vmem:[%s847 + $0x24] sm:$0xf]
        %v858 = vld [vmem:[%s847 + $0x28] sm:$0xf]
        %v859 = vld [vmem:[%s847 + $0x2c] sm:$0xf]
        %vm867 = vcmask 1042432
        %v868 = vrot.slane %v844, 5
        %v869 = vrot.slane %v827, 5
        %v870 = vsel %vm867, %v868, %v869
        %v871 = vrot.slane %v828, 5
        %v872 = vsel %vm867, %v869, %v871
        %v873 = vrot.slane %v829, 5
        %v874 = vsel %vm867, %v871, %v873
        %v875 = vrot.slane %v830, 5
        %v876 = vsel %vm867, %v873, %v875
        %v877 = vrot.slane %v845, 5
        %v878 = vsel %vm867, %v875, %v877
        %v879 = vrot.slane %v846, 5
        %v880 = vsel %vm867, %v877, %v879
        %v893 = vunpack.c.l.b16 %v848
        %v894 = vunpack.c.l.b16 %v849
        %v895 = vunpack.c.l.b16 %v850
        %v896 = vunpack.c.l.b16 %v851
        %v897 = vunpack.c.l.b16 %v852
        %v898 = vunpack.c.l.b16 %v853
        %v899 = vunpack.c.l.b16 %v854
        %v900 = vunpack.c.l.b16 %v855
        %v901 = vunpack.c.l.b16 %v856
        %v902 = vunpack.c.l.b16 %v857
        %v903 = vunpack.c.l.b16 %v858
        %v904 = vunpack.c.l.b16 %v859
        %v905 = vpack.c.b16 %v894, %v893
        %v906 = vpack.c.b16 %v896, %v895
        %v907 = vpack.c.b16 %v898, %v897
        %v908 = vpack.c.b16 %v900, %v899
        %v909 = vpack.c.b16 %v902, %v901
        %v910 = vpack.c.b16 %v904, %v903
        %vm917 = vcmask 785408
        %v919 = vsel %vm917, %v870, 0
        %v922 = vsel %vm917, %v872, 0
        %v925 = vsel %vm917, %v874, 0
        %v928 = vsel %vm917, %v876, 0
        %v931 = vsel %vm917, %v878, 0
        %v934 = vsel %vm917, %v880, 0
        %936 = vmatprep.subr.bf16.mxu0 0
        %937 = vmatpush1.bf16.msra.mxu0 %v905
        %938 = vmatprep.subr.bf16.mxu0 0
        %939 = vmatpush1.bf16.msra.mxu0 %v906
        %940 = vmatprep.subr.bf16.mxu0 0
        %941 = vmatpush1.bf16.msra.mxu0 %v907
        %942 = vmatprep.subr.bf16.mxu0 0
        %943 = vmatpush1.bf16.msra.mxu0 %v908
        %944 = vmatprep.subr.bf16.mxu0 0
        %945 = vmatpush1.bf16.msra.mxu0 %v909
        %946 = vmatprep.subr.bf16.mxu0 0
        %947 = vmatpush1.bf16.msra.mxu0 %v910
        %948 = vmatprep.subr.bf16.mxu0 0
        %949 = vmatpush1.bf16.msra.mxu0 0
        %950 = vmatprep.subr.bf16.mxu0 0
        %951 = vmatpush1.bf16.msra.mxu0 0
        %952 = vmatprep.subr.bf16.mxu0 0
        %953 = vmatpush1.bf16.msra.mxu0 0
        %954 = vmatprep.subr.bf16.mxu0 0
        %955 = vmatpush1.bf16.msra.mxu0 0
        %956 = vmatprep.subr.bf16.mxu0 0
        %957 = vmatpush1.bf16.msra.mxu0 0
        %958 = vmatprep.subr.bf16.mxu0 0
        %959 = vmatpush1.bf16.msra.mxu0 0
        %960 = vmatprep.subr.bf16.mxu0 0
        %961 = vmatpush1.bf16.msra.mxu0 0
        %962 = vmatprep.subr.bf16.mxu0 0
        %963 = vmatpush1.bf16.msra.mxu0 0
        %964 = vmatprep.subr.bf16.mxu0 0
        %965 = vmatpush1.bf16.msra.mxu0 0
        %966 = vmatprep.subr.bf16.mxu0 0
        %967 = vmatpush1.bf16.msra.mxu0 0
        %968 = vmatprep.mubr.bf16.mxu0 0
        %969 = vmatmul.mubr.bf16.gmra.mrb[0].mxu0 %v919
        %v970 = vpop.f32.mrb[0].mxu0
        %v971 = vadd.f32 0.0, %v970
        %v972 = vpop.f32.mrb[0].mxu0
        %v973 = vpop.f32.mrb[0].mxu0
        %v974 = vadd.f32 0.0, %v973
        %v975 = vpop.f32.mrb[0].mxu0
        %976 = vmatprep.mubr.bf16.mxu0 0
        %977 = vmatmul.mubr.bf16.gmra.mrb[0].mxu0 %v922
        %v978 = vpop.f32.mrb[0].mxu0
        %v979 = vadd.f32 0.0, %v978
        %v980 = vpop.f32.mrb[0].mxu0
        %v981 = vpop.f32.mrb[0].mxu0
        %v982 = vadd.f32 0.0, %v981
        %v983 = vpop.f32.mrb[0].mxu0
        %984 = vmatprep.mubr.bf16.mxu0 0
        %985 = vmatmul.mubr.bf16.gmra.mrb[0].mxu0 %v925
        %v986 = vpop.f32.mrb[0].mxu0
        %v987 = vadd.f32 0.0, %v986
        %v988 = vpop.f32.mrb[0].mxu0
        %v989 = vpop.f32.mrb[0].mxu0
        %v990 = vadd.f32 0.0, %v989
        %v991 = vpop.f32.mrb[0].mxu0
        %992 = vmatprep.mubr.bf16.mxu0 0
        %993 = vmatmul.mubr.bf16.gmra.mrb[0].mxu0 %v928
        %v994 = vpop.f32.mrb[0].mxu0
        %v995 = vadd.f32 0.0, %v994
        %v996 = vpop.f32.mrb[0].mxu0
        %v997 = vpop.f32.mrb[0].mxu0
        %v998 = vadd.f32 0.0, %v997
        %v999 = vpop.f32.mrb[0].mxu0
        %1000 = vmatprep.mubr.bf16.mxu0 0
        %1001 = vmatmul.mubr.bf16.gmra.mrb[0].mxu0 %v931
        %v1002 = vpop.f32.mrb[0].mxu0
        %v1003 = vadd.f32 0.0, %v1002
        %v1004 = vpop.f32.mrb[0].mxu0
        %v1005 = vpop.f32.mrb[0].mxu0
        %v1006 = vadd.f32 0.0, %v1005
        %v1007 = vpop.f32.mrb[0].mxu0
        %1008 = vmatprep.mubr.bf16.mxu0 0
        %1009 = vmatmul.mubr.bf16.gmra.mrb[0].mxu0 %v934
        %v1010 = vpop.f32.mrb[0].mxu0
        %v1011 = vadd.f32 0.0, %v1010
        %v1012 = vpop.f32.mrb[0].mxu0
        %v1013 = vpop.f32.mrb[0].mxu0
        %v1014 = vpop.f32.mrb[0].mxu0
        %1015 = vdwg.mxu0
        %v1028 = vunpack.c.l.b16 %v832
        %v1029 = vunpack.c.l.b16 %v833
        %v1030 = vunpack.c.l.b16 %v834
        %v1031 = vunpack.c.l.b16 %v835
        %v1032 = vunpack.c.l.b16 %v836
        %v1033 = vunpack.c.l.b16 %v837
        %v1034 = vunpack.c.l.b16 %v838
        %v1035 = vunpack.c.l.b16 %v839
        %v1036 = vunpack.c.l.b16 %v840
        %v1037 = vunpack.c.l.b16 %v841
        %v1038 = vunpack.c.l.b16 %v842
        %v1039 = vunpack.c.l.b16 %v843
        %v1040 = vpack.c.b16 %v1029, %v1028
        %v1041 = vpack.c.b16 %v1031, %v1030
        %v1042 = vpack.c.b16 %v1033, %v1032
        %v1043 = vpack.c.b16 %v1035, %v1034
        %v1044 = vpack.c.b16 %v1037, %v1036
        %v1045 = vpack.c.b16 %v1039, %v1038
        %v1053 = vsel %vm917, %v826, 0
        %v1056 = vsel %vm917, %v827, 0
        %v1059 = vsel %vm917, %v828, 0
        %v1062 = vsel %vm917, %v829, 0
        %v1065 = vsel %vm917, %v830, 0
        %v1068 = vsel %vm917, %v831, 0
        %1070 = vmatprep.subr.bf16.mxu0 0
        %1071 = vmatpush1.bf16.msra.mxu0 %v1040
        %1072 = vmatprep.subr.bf16.mxu0 0
        %1073 = vmatpush1.bf16.msra.mxu0 %v1041
        %1074 = vmatprep.subr.bf16.mxu0 0
        %1075 = vmatpush1.bf16.msra.mxu0 %v1042
        %1076 = vmatprep.subr.bf16.mxu0 0
        %1077 = vmatpush1.bf16.msra.mxu0 %v1043
        %1078 = vmatprep.subr.bf16.mxu0 0
        %1079 = vmatpush1.bf16.msra.mxu0 %v1044
        %1080 = vmatprep.subr.bf16.mxu0 0
        %1081 = vmatpush1.bf16.msra.mxu0 %v1045
        %1082 = vmatprep.subr.bf16.mxu0 0
        %1083 = vmatpush1.bf16.msra.mxu0 0
        %1084 = vmatprep.subr.bf16.mxu0 0
        %1085 = vmatpush1.bf16.msra.mxu0 0
        %1086 = vmatprep.subr.bf16.mxu0 0
        %1087 = vmatpush1.bf16.msra.mxu0 0
        %1088 = vmatprep.subr.bf16.mxu0 0
        %1089 = vmatpush1.bf16.msra.mxu0 0
        %1090 = vmatprep.subr.bf16.mxu0 0
        %1091 = vmatpush1.bf16.msra.mxu0 0
        %1092 = vmatprep.subr.bf16.mxu0 0
        %1093 = vmatpush1.bf16.msra.mxu0 0
        %1094 = vmatprep.subr.bf16.mxu0 0
        %1095 = vmatpush1.bf16.msra.mxu0 0
        %1096 = vmatprep.subr.bf16.mxu0 0
        %1097 = vmatpush1.bf16.msra.mxu0 0
        %1098 = vmatprep.subr.bf16.mxu0 0
        %1099 = vmatpush1.bf16.msra.mxu0 0
        %1100 = vmatprep.subr.bf16.mxu0 0
        %1101 = vmatpush1.bf16.msra.mxu0 0
        %1102 = vmatprep.mubr.bf16.mxu0 0
        %1103 = vmatmul.mubr.bf16.gmra.mrb[0].mxu0 %v1053
        %v1104 = vpop.f32.mrb[0].mxu0
        %v1105 = vadd.f32 %v971, %v1104
        %v1106 = vpop.f32.mrb[0].mxu0
        %v1107 = vpop.f32.mrb[0].mxu0
        %v1108 = vadd.f32 %v974, %v1107
        %v1109 = vpop.f32.mrb[0].mxu0
        %1110 = vmatprep.mubr.bf16.mxu0 0
        %1111 = vmatmul.mubr.bf16.gmra.mrb[0].mxu0 %v1056
        %v1112 = vpop.f32.mrb[0].mxu0
        %v1113 = vadd.f32 %v979, %v1112
        %v1114 = vpop.f32.mrb[0].mxu0
        %v1115 = vpop.f32.mrb[0].mxu0
        %v1116 = vadd.f32 %v982, %v1115
        %v1117 = vpop.f32.mrb[0].mxu0
        %1118 = vmatprep.mubr.bf16.mxu0 0
        %1119 = vmatmul.mubr.bf16.gmra.mrb[0].mxu0 %v1059
        %v1120 = vpop.f32.mrb[0].mxu0
        %v1121 = vadd.f32 %v987, %v1120
        %v1122 = vpop.f32.mrb[0].mxu0
        %v1123 = vpop.f32.mrb[0].mxu0
        %v1124 = vadd.f32 %v990, %v1123
        %v1125 = vpop.f32.mrb[0].mxu0
        %1126 = vmatprep.mubr.bf16.mxu0 0
        %1127 = vmatmul.mubr.bf16.gmra.mrb[0].mxu0 %v1062
        %v1128 = vpop.f32.mrb[0].mxu0
        %v1129 = vadd.f32 %v995, %v1128
        %v1130 = vpop.f32.mrb[0].mxu0
        %v1131 = vpop.f32.mrb[0].mxu0
        %v1132 = vadd.f32 %v998, %v1131
        %v1133 = vpop.f32.mrb[0].mxu0
        %1134 = vmatprep.mubr.bf16.mxu0 0
        %1135 = vmatmul.mubr.bf16.gmra.mrb[0].mxu0 %v1065
        %v1136 = vpop.f32.mrb[0].mxu0
        %v1137 = vadd.f32 %v1003, %v1136
        %v1138 = vpop.f32.mrb[0].mxu0
        %v1139 = vpop.f32.mrb[0].mxu0
        %v1140 = vadd.f32 %v1006, %v1139
        %v1141 = vpop.f32.mrb[0].mxu0
        %1142 = vmatprep.mubr.bf16.mxu0 0
        %1143 = vmatmul.mubr.bf16.gmra.mrb[0].mxu0 %v1068
        %v1144 = vpop.f32.mrb[0].mxu0
        %v1145 = vadd.f32 %v1011, %v1144
        %v1146 = vpop.f32.mrb[0].mxu0
        %v1147 = vpop.f32.mrb[0].mxu0
        %v1148 = vpop.f32.mrb[0].mxu0
        %1149 = vdwg.mxu0
        %v1150 = vld [vmem:[#allocation4 + $0x8] sm:$0xfc]
        %v1151 = vld [vmem:[#allocation4 + $0x30] sm:$0x3f]
        %s1152 = scalar_lea.vmem %s3, 96
        %v1153 = vld [vmem:[%s1152] sm:$0xf]
        %v1154 = vld [vmem:[%s1152 + $0x4] sm:$0xf]
        %v1155 = vld [vmem:[%s1152 + $0x8] sm:$0xf]
        %v1156 = vld [vmem:[%s1152 + $0xc] sm:$0xf]
        %v1157 = vld [vmem:[%s1152 + $0x10] sm:$0xf]
        %v1158 = vld [vmem:[%s1152 + $0x14] sm:$0xf]
        %v1159 = vld [vmem:[%s1152 + $0x18] sm:$0xf]
        %v1160 = vld [vmem:[%s1152 + $0x1c] sm:$0xf]
        %v1161 = vld [vmem:[%s1152 + $0x20] sm:$0xf]
        %v1162 = vld [vmem:[%s1152 + $0x24] sm:$0xf]
        %v1163 = vld [vmem:[%s1152 + $0x28] sm:$0xf]
        %v1164 = vld [vmem:[%s1152 + $0x2c] sm:$0xf]
        %vm1167 = vcmask 1045504
        %v1168 = vrot.slane %v1150, 2
        %v1169 = vrot.slane %v828, 2
        %v1170 = vsel %vm1167, %v1168, %v1169
        %v1171 = vrot.slane %v829, 2
        %v1172 = vsel %vm1167, %v1169, %v1171
        %v1173 = vrot.slane %v830, 2
        %v1174 = vsel %vm1167, %v1171, %v1173
        %v1175 = vrot.slane %v845, 2
        %v1176 = vsel %vm1167, %v1173, %v1175
        %v1177 = vrot.slane %v1151, 2
        %v1178 = vsel %vm1167, %v1175, %v1177
        %v1191 = vunpack.c.l.b16 %v1153
        %v1192 = vunpack.c.l.b16 %v1154
        %v1193 = vunpack.c.l.b16 %v1155
        %v1194 = vunpack.c.l.b16 %v1156
        %v1195 = vunpack.c.l.b16 %v1157
        %v1196 = vunpack.c.l.b16 %v1158
        %v1197 = vunpack.c.l.b16 %v1159
        %v1198 = vunpack.c.l.b16 %v1160
        %v1199 = vunpack.c.l.b16 %v1161
        %v1200 = vunpack.c.l.b16 %v1162
        %v1201 = vunpack.c.l.b16 %v1163
        %v1202 = vunpack.c.l.b16 %v1164
        %v1203 = vpack.c.b16 %v1192, %v1191
        %v1204 = vpack.c.b16 %v1194, %v1193
        %v1205 = vpack.c.b16 %v1196, %v1195
        %v1206 = vpack.c.b16 %v1198, %v1197
        %v1207 = vpack.c.b16 %v1200, %v1199
        %v1208 = vpack.c.b16 %v1202, %v1201
        %v1216 = vsel %vm917, %v1170, 0
        %v1219 = vsel %vm917, %v1172, 0
        %v1222 = vsel %vm917, %v1174, 0
        %v1225 = vsel %vm917, %v1176, 0
        %v1228 = vsel %vm917, %v1178, 0
        %v1231 = vsel %vm917, %v1177, 0
        %1233 = vmatprep.subr.bf16.mxu0 0
        %1234 = vmatpush1.bf16.msra.mxu0 %v1203
        %1235 = vmatprep.subr.bf16.mxu0 0
        %1236 = vmatpush1.bf16.msra.mxu0 %v1204
        %1237 = vmatprep.subr.bf16.mxu0 0
        %1238 = vmatpush1.bf16.msra.mxu0 %v1205
        %1239 = vmatprep.subr.bf16.mxu0 0
        %1240 = vmatpush1.bf16.msra.mxu0 %v1206
        %1241 = vmatprep.subr.bf16.mxu0 0
        %1242 = vmatpush1.bf16.msra.mxu0 %v1207
        %1243 = vmatprep.subr.bf16.mxu0 0
        %1244 = vmatpush1.bf16.msra.mxu0 %v1208
        %1245 = vmatprep.subr.bf16.mxu0 0
        %1246 = vmatpush1.bf16.msra.mxu0 0
        %1247 = vmatprep.subr.bf16.mxu0 0
        %1248 = vmatpush1.bf16.msra.mxu0 0
        %1249 = vmatprep.subr.bf16.mxu0 0
        %1250 = vmatpush1.bf16.msra.mxu0 0
        %1251 = vmatprep.subr.bf16.mxu0 0
        %1252 = vmatpush1.bf16.msra.mxu0 0
        %1253 = vmatprep.subr.bf16.mxu0 0
        %1254 = vmatpush1.bf16.msra.mxu0 0
        %1255 = vmatprep.subr.bf16.mxu0 0
        %1256 = vmatpush1.bf16.msra.mxu0 0
        %1257 = vmatprep.subr.bf16.mxu0 0
        %1258 = vmatpush1.bf16.msra.mxu0 0
        %1259 = vmatprep.subr.bf16.mxu0 0
        %1260 = vmatpush1.bf16.msra.mxu0 0
        %1261 = vmatprep.subr.bf16.mxu0 0
        %1262 = vmatpush1.bf16.msra.mxu0 0
        %1263 = vmatprep.subr.bf16.mxu0 0
        %1264 = vmatpush1.bf16.msra.mxu0 0
        %1265 = vmatprep.mubr.bf16.mxu0 0
        %1266 = vmatmul.mubr.bf16.gmra.mrb[0].mxu0 %v1216
        %v1267 = vpop.f32.mrb[0].mxu0
        %v1268 = vadd.f32 0.0, %v1267
        %v1269 = vpop.f32.mrb[0].mxu0
        %v1270 = vpop.f32.mrb[0].mxu0
        %v1271 = vadd.f32 0.0, %v1270
        %v1272 = vpop.f32.mrb[0].mxu0
        %1273 = vmatprep.mubr.bf16.mxu0 0
        %1274 = vmatmul.mubr.bf16.gmra.mrb[0].mxu0 %v1219
        %v1275 = vpop.f32.mrb[0].mxu0
        %v1276 = vadd.f32 0.0, %v1275
        %v1277 = vpop.f32.mrb[0].mxu0
        %v1278 = vpop.f32.mrb[0].mxu0
        %v1279 = vadd.f32 0.0, %v1278
        %v1280 = vpop.f32.mrb[0].mxu0
        %1281 = vmatprep.mubr.bf16.mxu0 0
        %1282 = vmatmul.mubr.bf16.gmra.mrb[0].mxu0 %v1222
        %v1283 = vpop.f32.mrb[0].mxu0
        %v1284 = vadd.f32 0.0, %v1283
        %v1285 = vpop.f32.mrb[0].mxu0
        %v1286 = vpop.f32.mrb[0].mxu0
        %v1287 = vadd.f32 0.0, %v1286
        %v1288 = vpop.f32.mrb[0].mxu0
        %1289 = vmatprep.mubr.bf16.mxu0 0
        %1290 = vmatmul.mubr.bf16.gmra.mrb[0].mxu0 %v1225
        %v1291 = vpop.f32.mrb[0].mxu0
        %v1292 = vadd.f32 0.0, %v1291
        %v1293 = vpop.f32.mrb[0].mxu0
        %v1294 = vpop.f32.mrb[0].mxu0
        %v1295 = vadd.f32 0.0, %v1294
        %v1296 = vpop.f32.mrb[0].mxu0
        %1297 = vmatprep.mubr.bf16.mxu0 0
        %1298 = vmatmul.mubr.bf16.gmra.mrb[0].mxu0 %v1228
        %v1299 = vpop.f32.mrb[0].mxu0
        %v1300 = vadd.f32 0.0, %v1299
        %v1301 = vpop.f32.mrb[0].mxu0
        %v1302 = vpop.f32.mrb[0].mxu0
        %v1303 = vadd.f32 0.0, %v1302
        %v1304 = vpop.f32.mrb[0].mxu0
        %1305 = vmatprep.mubr.bf16.mxu0 0
        %1306 = vmatmul.mubr.bf16.gmra.mrb[0].mxu0 %v1231
        %v1307 = vpop.f32.mrb[0].mxu0
        %v1308 = vadd.f32 0.0, %v1307
        %v1309 = vpop.f32.mrb[0].mxu0
        %v1310 = vpop.f32.mrb[0].mxu0
        %v1311 = vpop.f32.mrb[0].mxu0
        %1312 = vdwg.mxu0
        %v1313 = vadd.f32 %v1105, %v1268
        %v1314 = vadd.f32 %v1108, %v1271
        %v1315 = vadd.f32 %v1113, %v1276
        %v1316 = vadd.f32 %v1116, %v1279
        %v1317 = vadd.f32 %v1121, %v1284
        %v1318 = vadd.f32 %v1124, %v1287
        %v1319 = vadd.f32 %v1129, %v1292
        %v1320 = vadd.f32 %v1132, %v1295
        %v1321 = vadd.f32 %v1137, %v1300
        %v1322 = vadd.f32 %v1140, %v1303
        %v1323 = vadd.f32 %v1145, %v1308
        %v1324 = vld [vmem:[%s4] sm:$0x1]
        %v1326 = vlaneseq
        %v1327 = vshrl.u32 %v1326, 7
        %v1328 = vsub.s32 0, %v1327
        %v1329 = vrot.slane %v1324, %v1328
        %v1331 = vadd.f32 %v1313, %v1329
        %v1332 = vadd.f32 %v1314, %v1329
        %v1333 = vadd.f32 %v1315, %v1329
        %v1334 = vadd.f32 %v1316, %v1329
        %v1335 = vadd.f32 %v1317, %v1329
        %v1336 = vadd.f32 %v1318, %v1329
        %v1337 = vadd.f32 %v1319, %v1329
        %v1338 = vadd.f32 %v1320, %v1329
        %v1339 = vadd.f32 %v1321, %v1329
        %v1340 = vadd.f32 %v1322, %v1329
        %v1341 = vadd.f32 %v1323, %v1329
        %v1342 = vmax.f32 %v1331, 0.0
        %v1343 = vmax.f32 %v1332, 0.0
        %v1344 = vmax.f32 %v1333, 0.0
        %v1345 = vmax.f32 %v1334, 0.0
        %v1346 = vmax.f32 %v1335, 0.0
        %v1347 = vmax.f32 %v1336, 0.0
        %v1348 = vmax.f32 %v1337, 0.0
        %v1349 = vmax.f32 %v1338, 0.0
        %v1350 = vmax.f32 %v1339, 0.0
        %v1351 = vmax.f32 %v1340, 0.0
        %v1352 = vmax.f32 %v1341, 0.0
        %v1353 = vpack.c.bf16 %v1343, %v1342
        %v1354 = vpack.c.bf16 %v1345, %v1344
        %v1355 = vpack.c.bf16 %v1347, %v1346
        %v1356 = vpack.c.bf16 %v1349, %v1348
        %v1357 = vpack.c.bf16 %v1351, %v1350
        %v1358 = vpack.c.bf16 %v1352, %v1352
        %1359 = vst.msk [vmem:[#allocation3] sm:$0xff] %vm441, %v1353
        %1360 = vst.msk [vmem:[#allocation3 + $0x8] sm:$0xff] %vm441, %v1354
        %1361 = vst.msk [vmem:[#allocation3 + $0x10] sm:$0xff] %vm441, %v1355
        %1362 = vst.msk [vmem:[#allocation3 + $0x18] sm:$0xff] %vm441, %v1356
        %1363 = vst.msk [vmem:[#allocation3 + $0x20] sm:$0xff] %vm441, %v1357
        %1364 = vst.msk [vmem:[#allocation3 + $0x28] sm:$0xf] %vm658, %v1358
        %v1365 = vld [vmem:[#allocation3] sm:$0xff]
        %v1366 = vld [vmem:[#allocation3 + $0x8] sm:$0xff]
        %v1367 = vld [vmem:[#allocation3 + $0x10] sm:$0xff]
        %v1368 = vld [vmem:[#allocation3 + $0x18] sm:$0xff]
        %v1369 = vld [vmem:[#allocation3 + $0x20] sm:$0xff]
        %v1370 = vld [vmem:[#allocation3 + $0x28] sm:$0x3]
        %1371 = vst.msk [vmem:[#allocation4] sm:$0xff] %vm441, %v1365
        %1372 = vst.msk [vmem:[#allocation4 + $0x8] sm:$0xff] %vm441, %v1366
        %1373 = vst.msk [vmem:[#allocation4 + $0x10] sm:$0xff] %vm441, %v1367
        %1374 = vst.msk [vmem:[#allocation4 + $0x18] sm:$0xff] %vm441, %v1368
        %1375 = vst.msk [vmem:[#allocation4 + $0x20] sm:$0xff] %vm441, %v1369
        %vm1376 = vcmask 254976
        %1377 = vst.msk [vmem:[#allocation4 + $0x28] sm:$0x3] %vm1376, %v1370
        %v1378 = vld [vmem:[#allocation3] sm:$0xff]
        %v1379 = vld [vmem:[#allocation3 + $0x8] sm:$0xff]
        %v1380 = vld [vmem:[#allocation3 + $0x10] sm:$0xff]
        %v1381 = vld [vmem:[#allocation3 + $0x18] sm:$0xff]
        %v1382 = vld [vmem:[#allocation3 + $0x20] sm:$0xff]
        %v1383 = vld [vmem:[#allocation3 + $0x28] sm:$0x7]
        %v1385 = vshrl.u32 %v1378, 16
        %v1387 = vshll.u32 %v1378, 16
        %v1389 = vrot.slane %v1387, 1
        %v1390 = vor.u32 %v1385, %v1389
        %v1392 = vshll.u32 %v1379, 16
        %v1394 = vrot.slane %v1392, 1
        %v1395 = vsel %vm682, %v1390, %v1394
        %v1396 = vshrl.u32 %v1379, 16
        %v1398 = vor.u32 %v1396, %v1394
        %v1400 = vshll.u32 %v1380, 16
        %v1402 = vrot.slane %v1400, 1
        %v1403 = vsel %vm682, %v1398, %v1402
        %v1404 = vshrl.u32 %v1380, 16
        %v1406 = vor.u32 %v1404, %v1402
        %v1408 = vshll.u32 %v1381, 16
        %v1410 = vrot.slane %v1408, 1
        %v1411 = vsel %vm682, %v1406, %v1410
        %v1412 = vshrl.u32 %v1381, 16
        %v1414 = vor.u32 %v1412, %v1410
        %v1416 = vshll.u32 %v1382, 16
        %v1418 = vrot.slane %v1416, 1
        %v1419 = vsel %vm682, %v1414, %v1418
        %v1420 = vshrl.u32 %v1382, 16
        %v1422 = vor.u32 %v1420, %v1418
        %v1424 = vshll.u32 %v1383, 16
        %v1426 = vrot.slane %v1424, 1
        %v1427 = vsel %vm682, %v1422, %v1426
        %v1428 = vshrl.u32 %v1383, 16
        %v1430 = vor.u32 %v1428, %v1426
        %1431 = vrot.lane.b32.xlu0 %v1395, 32
        %v1432 = vpop.permute.xlu0 %1431
        %1433 = vrot.lane.b32.xlu0 %v1403, 32
        %v1434 = vpop.permute.xlu0 %1433
        %1435 = vrot.lane.b32.xlu0 %v1411, 32
        %v1436 = vpop.permute.xlu0 %1435
        %1437 = vrot.lane.b32.xlu0 %v1419, 32
        %v1438 = vpop.permute.xlu0 %1437
        %1439 = vrot.lane.b32.xlu0 %v1427, 32
        %v1440 = vpop.permute.xlu0 %1439
        %1441 = vrot.lane.b32.xlu0 %v1430, 32
        %v1442 = vpop.permute.xlu0 %1441
        %1449 = vst.msk [vmem:[#allocation4] sm:$0xff] %vm759, %v1432
        %1450 = vst.msk [vmem:[#allocation4 + $0x8] sm:$0xff] %vm759, %v1434
        %1451 = vst.msk [vmem:[#allocation4 + $0x10] sm:$0xff] %vm759, %v1436
        %1452 = vst.msk [vmem:[#allocation4 + $0x18] sm:$0xff] %vm759, %v1438
        %1453 = vst.msk [vmem:[#allocation4 + $0x20] sm:$0xff] %vm759, %v1440
        %vm1454 = vcmask 517376
        %1455 = vst.msk [vmem:[#allocation4 + $0x28] sm:$0x3] %vm1454, %v1442
        %v1456 = vld [vmem:[#allocation3] sm:$0xfe]
        %v1457 = vld [vmem:[#allocation3 + $0x8] sm:$0xff]
        %v1458 = vld [vmem:[#allocation3 + $0x10] sm:$0xff]
        %v1459 = vld [vmem:[#allocation3 + $0x18] sm:$0xff]
        %v1460 = vld [vmem:[#allocation3 + $0x20] sm:$0xff]
        %v1461 = vld [vmem:[#allocation3 + $0x28] sm:$0x7]
        %v1468 = vrot.slane %v1456, 1
        %v1469 = vrot.slane %v1457, 1
        %v1470 = vsel %vm782, %v1468, %v1469
        %v1471 = vrot.slane %v1458, 1
        %v1472 = vsel %vm782, %v1469, %v1471
        %v1473 = vrot.slane %v1459, 1
        %v1474 = vsel %vm782, %v1471, %v1473
        %v1475 = vrot.slane %v1460, 1
        %v1476 = vsel %vm782, %v1473, %v1475
        %v1477 = vrot.slane %v1461, 1
        %v1478 = vsel %vm782, %v1475, %v1477
        %1479 = vrot.lane.b32.xlu0 %v1470, 64
        %v1480 = vpop.permute.xlu0 %1479
        %1481 = vrot.lane.b32.xlu0 %v1472, 64
        %v1482 = vpop.permute.xlu0 %1481
        %1483 = vrot.lane.b32.xlu0 %v1474, 64
        %v1484 = vpop.permute.xlu0 %1483
        %1485 = vrot.lane.b32.xlu0 %v1476, 64
        %v1486 = vpop.permute.xlu0 %1485
        %1487 = vrot.lane.b32.xlu0 %v1478, 64
        %v1488 = vpop.permute.xlu0 %1487
        %1489 = vrot.lane.b32.xlu0 %v1477, 64
        %v1490 = vpop.permute.xlu0 %1489
        %1497 = vst.msk [vmem:[#allocation4] sm:$0xff] %vm817, %v1480
        %1498 = vst.msk [vmem:[#allocation4 + $0x8] sm:$0xff] %vm817, %v1482
        %1499 = vst.msk [vmem:[#allocation4 + $0x10] sm:$0xff] %vm817, %v1484
        %1500 = vst.msk [vmem:[#allocation4 + $0x18] sm:$0xff] %vm817, %v1486
        %1501 = vst.msk [vmem:[#allocation4 + $0x20] sm:$0xff] %vm817, %v1488
        %vm1502 = vcmask 779776
        %1503 = vst.msk [vmem:[#allocation4 + $0x28] sm:$0x3] %vm1502, %v1490
        %v1504 = vld [vmem:[#allocation4] sm:$0xff]
        %v1505 = vld [vmem:[#allocation4 + $0x8] sm:$0xff]
        %v1506 = vld [vmem:[#allocation4 + $0x10] sm:$0xff]
        %v1507 = vld [vmem:[#allocation4 + $0x18] sm:$0xff]
        %v1508 = vld [vmem:[%s5] sm:$0xf]
        %v1509 = vld [vmem:[%s5 + $0x4] sm:$0xf]
        %v1510 = vld [vmem:[%s5 + $0x8] sm:$0xf]
        %v1511 = vld [vmem:[%s5 + $0xc] sm:$0xf]
        %v1512 = vld [vmem:[%s5 + $0x10] sm:$0xf]
        %v1513 = vld [vmem:[%s5 + $0x14] sm:$0xf]
        %v1514 = vld [vmem:[%s5 + $0x18] sm:$0xf]
        %v1515 = vld [vmem:[%s5 + $0x1c] sm:$0xf]
        %v1516 = vld [vmem:[%s5 + $0x20] sm:$0xf]
        %v1517 = vld [vmem:[%s5 + $0x24] sm:$0xf]
        %v1518 = vld [vmem:[%s5 + $0x28] sm:$0xf]
        %v1519 = vld [vmem:[%s5 + $0x2c] sm:$0xf]
        %v1520 = vld [vmem:[#allocation4] sm:$0xe0]
        %v1521 = vld [vmem:[#allocation4 + $0x20] sm:$0x1f]
        %s1522 = scalar_lea.vmem %s5, 48
        %v1523 = vld [vmem:[%s1522] sm:$0xf]
        %v1524 = vld [vmem:[%s1522 + $0x4] sm:$0xf]
        %v1525 = vld [vmem:[%s1522 + $0x8] sm:$0xf]
        %v1526 = vld [vmem:[%s1522 + $0xc] sm:$0xf]
        %v1527 = vld [vmem:[%s1522 + $0x10] sm:$0xf]
        %v1528 = vld [vmem:[%s1522 + $0x14] sm:$0xf]
        %v1529 = vld [vmem:[%s1522 + $0x18] sm:$0xf]
        %v1530 = vld [vmem:[%s1522 + $0x1c] sm:$0xf]
        %v1531 = vld [vmem:[%s1522 + $0x20] sm:$0xf]
        %v1532 = vld [vmem:[%s1522 + $0x24] sm:$0xf]
        %v1533 = vld [vmem:[%s1522 + $0x28] sm:$0xf]
        %v1534 = vld [vmem:[%s1522 + $0x2c] sm:$0xf]
        %v1540 = vrot.slane %v1520, 5
        %v1541 = vrot.slane %v1505, 5
        %v1542 = vsel %vm867, %v1540, %v1541
        %v1543 = vrot.slane %v1506, 5
        %v1544 = vsel %vm867, %v1541, %v1543
        %v1545 = vrot.slane %v1507, 5
        %v1546 = vsel %vm867, %v1543, %v1545
        %v1547 = vrot.slane %v1521, 5
        %v1548 = vsel %vm867, %v1545, %v1547
        %v1561 = vunpack.c.l.b16 %v1523
        %v1562 = vunpack.c.l.b16 %v1524
        %v1563 = vunpack.c.l.b16 %v1525
        %v1564 = vunpack.c.l.b16 %v1526
        %v1565 = vunpack.c.l.b16 %v1527
        %v1566 = vunpack.c.l.b16 %v1528
        %v1567 = vunpack.c.l.b16 %v1529
        %v1568 = vunpack.c.l.b16 %v1530
        %v1569 = vunpack.c.l.b16 %v1531
        %v1570 = vunpack.c.l.b16 %v1532
        %v1571 = vunpack.c.l.b16 %v1533
        %v1572 = vunpack.c.l.b16 %v1534
        %v1573 = vpack.c.b16 %v1562, %v1561
        %v1574 = vpack.c.b16 %v1564, %v1563
        %v1575 = vpack.c.b16 %v1566, %v1565
        %v1576 = vpack.c.b16 %v1568, %v1567
        %v1577 = vpack.c.b16 %v1570, %v1569
        %v1578 = vpack.c.b16 %v1572, %v1571
        %v1586 = vsel %vm917, %v1542, 0
        %v1589 = vsel %vm917, %v1544, 0
        %v1592 = vsel %vm917, %v1546, 0
        %v1595 = vsel %vm917, %v1548, 0
        %1597 = vmatprep.subr.bf16.mxu0 0
        %1598 = vmatpush1.bf16.msra.mxu0 %v1573
        %1599 = vmatprep.subr.bf16.mxu0 0
        %1600 = vmatpush1.bf16.msra.mxu0 %v1574
        %1601 = vmatprep.subr.bf16.mxu0 0
        %1602 = vmatpush1.bf16.msra.mxu0 %v1575
        %1603 = vmatprep.subr.bf16.mxu0 0
        %1604 = vmatpush1.bf16.msra.mxu0 %v1576
        %1605 = vmatprep.subr.bf16.mxu0 0
        %1606 = vmatpush1.bf16.msra.mxu0 %v1577
        %1607 = vmatprep.subr.bf16.mxu0 0
        %1608 = vmatpush1.bf16.msra.mxu0 %v1578
        %1609 = vmatprep.subr.bf16.mxu0 0
        %1610 = vmatpush1.bf16.msra.mxu0 0
        %1611 = vmatprep.subr.bf16.mxu0 0
        %1612 = vmatpush1.bf16.msra.mxu0 0
        %1613 = vmatprep.subr.bf16.mxu0 0
        %1614 = vmatpush1.bf16.msra.mxu0 0
        %1615 = vmatprep.subr.bf16.mxu0 0
        %1616 = vmatpush1.bf16.msra.mxu0 0
        %1617 = vmatprep.subr.bf16.mxu0 0
        %1618 = vmatpush1.bf16.msra.mxu0 0
        %1619 = vmatprep.subr.bf16.mxu0 0
        %1620 = vmatpush1.bf16.msra.mxu0 0
        %1621 = vmatprep.subr.bf16.mxu0 0
        %1622 = vmatpush1.bf16.msra.mxu0 0
        %1623 = vmatprep.subr.bf16.mxu0 0
        %1624 = vmatpush1.bf16.msra.mxu0 0
        %1625 = vmatprep.subr.bf16.mxu0 0
        %1626 = vmatpush1.bf16.msra.mxu0 0
        %1627 = vmatprep.subr.bf16.mxu0 0
        %1628 = vmatpush1.bf16.msra.mxu0 0
        %1629 = vmatprep.mubr.bf16.mxu0 0
        %1630 = vmatmul.mubr.bf16.gmra.mrb[0].mxu0 %v1586
        %v1631 = vpop.f32.mrb[0].mxu0
        %v1632 = vadd.f32 0.0, %v1631
        %v1633 = vpop.f32.mrb[0].mxu0
        %v1634 = vpop.f32.mrb[0].mxu0
        %v1635 = vadd.f32 0.0, %v1634
        %v1636 = vpop.f32.mrb[0].mxu0
        %1637 = vmatprep.mubr.bf16.mxu0 0
        %1638 = vmatmul.mubr.bf16.gmra.mrb[0].mxu0 %v1589
        %v1639 = vpop.f32.mrb[0].mxu0
        %v1640 = vadd.f32 0.0, %v1639
        %v1641 = vpop.f32.mrb[0].mxu0
        %v1642 = vpop.f32.mrb[0].mxu0
        %v1643 = vadd.f32 0.0, %v1642
        %v1644 = vpop.f32.mrb[0].mxu0
        %1645 = vmatprep.mubr.bf16.mxu0 0
        %1646 = vmatmul.mubr.bf16.gmra.mrb[0].mxu0 %v1592
        %v1647 = vpop.f32.mrb[0].mxu0
        %v1648 = vadd.f32 0.0, %v1647
        %v1649 = vpop.f32.mrb[0].mxu0
        %v1650 = vpop.f32.mrb[0].mxu0
        %v1651 = vadd.f32 0.0, %v1650
        %v1652 = vpop.f32.mrb[0].mxu0
        %1653 = vmatprep.mubr.bf16.mxu0 0
        %1654 = vmatmul.mubr.bf16.gmra.mrb[0].mxu0 %v1595
        %v1655 = vpop.f32.mrb[0].mxu0
        %v1656 = vadd.f32 0.0, %v1655
        %v1657 = vpop.f32.mrb[0].mxu0
        %v1658 = vpop.f32.mrb[0].mxu0
        %v1659 = vadd.f32 0.0, %v1658
        %v1660 = vpop.f32.mrb[0].mxu0
        %1661 = vdwg.mxu0
        %v1674 = vunpack.c.l.b16 %v1508
        %v1675 = vunpack.c.l.b16 %v1509
        %v1676 = vunpack.c.l.b16 %v1510
        %v1677 = vunpack.c.l.b16 %v1511
        %v1678 = vunpack.c.l.b16 %v1512
        %v1679 = vunpack.c.l.b16 %v1513
        %v1680 = vunpack.c.l.b16 %v1514
        %v1681 = vunpack.c.l.b16 %v1515
        %v1682 = vunpack.c.l.b16 %v1516
        %v1683 = vunpack.c.l.b16 %v1517
        %v1684 = vunpack.c.l.b16 %v1518
        %v1685 = vunpack.c.l.b16 %v1519
        %v1686 = vpack.c.b16 %v1675, %v1674
        %v1687 = vpack.c.b16 %v1677, %v1676
        %v1688 = vpack.c.b16 %v1679, %v1678
        %v1689 = vpack.c.b16 %v1681, %v1680
        %v1690 = vpack.c.b16 %v1683, %v1682
        %v1691 = vpack.c.b16 %v1685, %v1684
        %v1699 = vsel %vm917, %v1504, 0
        %v1702 = vsel %vm917, %v1505, 0
        %v1705 = vsel %vm917, %v1506, 0
        %v1708 = vsel %vm917, %v1507, 0
        %1710 = vmatprep.subr.bf16.mxu0 0
        %1711 = vmatpush1.bf16.msra.mxu0 %v1686
        %1712 = vmatprep.subr.bf16.mxu0 0
        %1713 = vmatpush1.bf16.msra.mxu0 %v1687
        %1714 = vmatprep.subr.bf16.mxu0 0
        %1715 = vmatpush1.bf16.msra.mxu0 %v1688
        %1716 = vmatprep.subr.bf16.mxu0 0
        %1717 = vmatpush1.bf16.msra.mxu0 %v1689
        %1718 = vmatprep.subr.bf16.mxu0 0
        %1719 = vmatpush1.bf16.msra.mxu0 %v1690
        %1720 = vmatprep.subr.bf16.mxu0 0
        %1721 = vmatpush1.bf16.msra.mxu0 %v1691
        %1722 = vmatprep.subr.bf16.mxu0 0
        %1723 = vmatpush1.bf16.msra.mxu0 0
        %1724 = vmatprep.subr.bf16.mxu0 0
        %1725 = vmatpush1.bf16.msra.mxu0 0
        %1726 = vmatprep.subr.bf16.mxu0 0
        %1727 = vmatpush1.bf16.msra.mxu0 0
        %1728 = vmatprep.subr.bf16.mxu0 0
        %1729 = vmatpush1.bf16.msra.mxu0 0
        %1730 = vmatprep.subr.bf16.mxu0 0
        %1731 = vmatpush1.bf16.msra.mxu0 0
        %1732 = vmatprep.subr.bf16.mxu0 0
        %1733 = vmatpush1.bf16.msra.mxu0 0
        %1734 = vmatprep.subr.bf16.mxu0 0
        %1735 = vmatpush1.bf16.msra.mxu0 0
        %1736 = vmatprep.subr.bf16.mxu0 0
        %1737 = vmatpush1.bf16.msra.mxu0 0
        %1738 = vmatprep.subr.bf16.mxu0 0
        %1739 = vmatpush1.bf16.msra.mxu0 0
        %1740 = vmatprep.subr.bf16.mxu0 0
        %1741 = vmatpush1.bf16.msra.mxu0 0
        %1742 = vmatprep.mubr.bf16.mxu0 0
        %1743 = vmatmul.mubr.bf16.gmra.mrb[0].mxu0 %v1699
        %v1744 = vpop.f32.mrb[0].mxu0
        %v1745 = vadd.f32 %v1632, %v1744
        %v1746 = vpop.f32.mrb[0].mxu0
        %v1747 = vpop.f32.mrb[0].mxu0
        %v1748 = vadd.f32 %v1635, %v1747
        %v1749 = vpop.f32.mrb[0].mxu0
        %1750 = vmatprep.mubr.bf16.mxu0 0
        %1751 = vmatmul.mubr.bf16.gmra.mrb[0].mxu0 %v1702
        %v1752 = vpop.f32.mrb[0].mxu0
        %v1753 = vadd.f32 %v1640, %v1752
        %v1754 = vpop.f32.mrb[0].mxu0
        %v1755 = vpop.f32.mrb[0].mxu0
        %v1756 = vadd.f32 %v1643, %v1755
        %v1757 = vpop.f32.mrb[0].mxu0
        %1758 = vmatprep.mubr.bf16.mxu0 0
        %1759 = vmatmul.mubr.bf16.gmra.mrb[0].mxu0 %v1705
        %v1760 = vpop.f32.mrb[0].mxu0
        %v1761 = vadd.f32 %v1648, %v1760
        %v1762 = vpop.f32.mrb[0].mxu0
        %v1763 = vpop.f32.mrb[0].mxu0
        %v1764 = vadd.f32 %v1651, %v1763
        %v1765 = vpop.f32.mrb[0].mxu0
        %1766 = vmatprep.mubr.bf16.mxu0 0
        %1767 = vmatmul.mubr.bf16.gmra.mrb[0].mxu0 %v1708
        %v1768 = vpop.f32.mrb[0].mxu0
        %v1769 = vadd.f32 %v1656, %v1768
        %v1770 = vpop.f32.mrb[0].mxu0
        %v1771 = vpop.f32.mrb[0].mxu0
        %v1772 = vadd.f32 %v1659, %v1771
        %v1773 = vpop.f32.mrb[0].mxu0
        %1774 = vdwg.mxu0
        %v1775 = vld [vmem:[#allocation4 + $0x8] sm:$0xfc]
        %v1776 = vld [vmem:[#allocation4 + $0x10] sm:$0xff]
        %v1777 = vld [vmem:[#allocation4 + $0x18] sm:$0xff]
        %v1778 = vld [vmem:[#allocation4 + $0x20] sm:$0xff]
        %v1779 = vld [vmem:[#allocation4 + $0x28] sm:$0x3]
        %s1780 = scalar_lea.vmem %s5, 96
        %v1781 = vld [vmem:[%s1780] sm:$0xf]
        %v1782 = vld [vmem:[%s1780 + $0x4] sm:$0xf]
        %v1783 = vld [vmem:[%s1780 + $0x8] sm:$0xf]
        %v1784 = vld [vmem:[%s1780 + $0xc] sm:$0xf]
        %v1785 = vld [vmem:[%s1780 + $0x10] sm:$0xf]
        %v1786 = vld [vmem:[%s1780 + $0x14] sm:$0xf]
        %v1787 = vld [vmem:[%s1780 + $0x18] sm:$0xf]
        %v1788 = vld [vmem:[%s1780 + $0x1c] sm:$0xf]
        %v1789 = vld [vmem:[%s1780 + $0x20] sm:$0xf]
        %v1790 = vld [vmem:[%s1780 + $0x24] sm:$0xf]
        %v1791 = vld [vmem:[%s1780 + $0x28] sm:$0xf]
        %v1792 = vld [vmem:[%s1780 + $0x2c] sm:$0xf]
        %v1798 = vrot.slane %v1775, 2
        %v1799 = vrot.slane %v1776, 2
        %v1800 = vsel %vm1167, %v1798, %v1799
        %v1801 = vrot.slane %v1777, 2
        %v1802 = vsel %vm1167, %v1799, %v1801
        %v1803 = vrot.slane %v1778, 2
        %v1804 = vsel %vm1167, %v1801, %v1803
        %v1805 = vrot.slane %v1779, 2
        %v1806 = vsel %vm1167, %v1803, %v1805
        %v1819 = vunpack.c.l.b16 %v1781
        %v1820 = vunpack.c.l.b16 %v1782
        %v1821 = vunpack.c.l.b16 %v1783
        %v1822 = vunpack.c.l.b16 %v1784
        %v1823 = vunpack.c.l.b16 %v1785
        %v1824 = vunpack.c.l.b16 %v1786
        %v1825 = vunpack.c.l.b16 %v1787
        %v1826 = vunpack.c.l.b16 %v1788
        %v1827 = vunpack.c.l.b16 %v1789
        %v1828 = vunpack.c.l.b16 %v1790
        %v1829 = vunpack.c.l.b16 %v1791
        %v1830 = vunpack.c.l.b16 %v1792
        %v1831 = vpack.c.b16 %v1820, %v1819
        %v1832 = vpack.c.b16 %v1822, %v1821
        %v1833 = vpack.c.b16 %v1824, %v1823
        %v1834 = vpack.c.b16 %v1826, %v1825
        %v1835 = vpack.c.b16 %v1828, %v1827
        %v1836 = vpack.c.b16 %v1830, %v1829
        %v1844 = vsel %vm917, %v1800, 0
        %v1847 = vsel %vm917, %v1802, 0
        %v1850 = vsel %vm917, %v1804, 0
        %v1853 = vsel %vm917, %v1806, 0
        %1855 = vmatprep.subr.bf16.mxu0 0
        %1856 = vmatpush1.bf16.msra.mxu0 %v1831
        %1857 = vmatprep.subr.bf16.mxu0 0
        %1858 = vmatpush1.bf16.msra.mxu0 %v1832
        %1859 = vmatprep.subr.bf16.mxu0 0
        %1860 = vmatpush1.bf16.msra.mxu0 %v1833
        %1861 = vmatprep.subr.bf16.mxu0 0
        %1862 = vmatpush1.bf16.msra.mxu0 %v1834
        %1863 = vmatprep.subr.bf16.mxu0 0
        %1864 = vmatpush1.bf16.msra.mxu0 %v1835
        %1865 = vmatprep.subr.bf16.mxu0 0
        %1866 = vmatpush1.bf16.msra.mxu0 %v1836
        %1867 = vmatprep.subr.bf16.mxu0 0
        %1868 = vmatpush1.bf16.msra.mxu0 0
        %1869 = vmatprep.subr.bf16.mxu0 0
        %1870 = vmatpush1.bf16.msra.mxu0 0
        %1871 = vmatprep.subr.bf16.mxu0 0
        %1872 = vmatpush1.bf16.msra.mxu0 0
        %1873 = vmatprep.subr.bf16.mxu0 0
        %1874 = vmatpush1.bf16.msra.mxu0 0
        %1875 = vmatprep.subr.bf16.mxu0 0
        %1876 = vmatpush1.bf16.msra.mxu0 0
        %1877 = vmatprep.subr.bf16.mxu0 0
        %1878 = vmatpush1.bf16.msra.mxu0 0
        %1879 = vmatprep.subr.bf16.mxu0 0
        %1880 = vmatpush1.bf16.msra.mxu0 0
        %1881 = vmatprep.subr.bf16.mxu0 0
        %1882 = vmatpush1.bf16.msra.mxu0 0
        %1883 = vmatprep.subr.bf16.mxu0 0
        %1884 = vmatpush1.bf16.msra.mxu0 0
        %1885 = vmatprep.subr.bf16.mxu0 0
        %1886 = vmatpush1.bf16.msra.mxu0 0
        %1887 = vmatprep.mubr.bf16.mxu0 0
        %1888 = vmatmul.mubr.bf16.gmra.mrb[0].mxu0 %v1844
        %v1889 = vpop.f32.mrb[0].mxu0
        %v1890 = vadd.f32 0.0, %v1889
        %v1891 = vpop.f32.mrb[0].mxu0
        %v1892 = vpop.f32.mrb[0].mxu0
        %v1893 = vadd.f32 0.0, %v1892
        %v1894 = vpop.f32.mrb[0].mxu0
        %1895 = vmatprep.mubr.bf16.mxu0 0
        %1896 = vmatmul.mubr.bf16.gmra.mrb[0].mxu0 %v1847
        %v1897 = vpop.f32.mrb[0].mxu0
        %v1898 = vadd.f32 0.0, %v1897
        %v1899 = vpop.f32.mrb[0].mxu0
        %v1900 = vpop.f32.mrb[0].mxu0
        %v1901 = vadd.f32 0.0, %v1900
        %v1902 = vpop.f32.mrb[0].mxu0
        %1903 = vmatprep.mubr.bf16.mxu0 0
        %1904 = vmatmul.mubr.bf16.gmra.mrb[0].mxu0 %v1850
        %v1905 = vpop.f32.mrb[0].mxu0
        %v1906 = vadd.f32 0.0, %v1905
        %v1907 = vpop.f32.mrb[0].mxu0
        %v1908 = vpop.f32.mrb[0].mxu0
        %v1909 = vadd.f32 0.0, %v1908
        %v1910 = vpop.f32.mrb[0].mxu0
        %1911 = vmatprep.mubr.bf16.mxu0 0
        %1912 = vmatmul.mubr.bf16.gmra.mrb[0].mxu0 %v1853
        %v1913 = vpop.f32.mrb[0].mxu0
        %v1914 = vadd.f32 0.0, %v1913
        %v1915 = vpop.f32.mrb[0].mxu0
        %v1916 = vpop.f32.mrb[0].mxu0
        %v1917 = vadd.f32 0.0, %v1916
        %v1918 = vpop.f32.mrb[0].mxu0
        %1919 = vdwg.mxu0
        %v1920 = vadd.f32 %v1745, %v1890
        %v1921 = vadd.f32 %v1748, %v1893
        %v1922 = vadd.f32 %v1753, %v1898
        %v1923 = vadd.f32 %v1756, %v1901
        %v1924 = vadd.f32 %v1761, %v1906
        %v1925 = vadd.f32 %v1764, %v1909
        %v1926 = vadd.f32 %v1769, %v1914
        %v1927 = vadd.f32 %v1772, %v1917
        %v1928 = vld [vmem:[%s6] sm:$0x1]
        %v1930 = vlaneseq
        %v1931 = vshrl.u32 %v1930, 7
        %v1932 = vsub.s32 0, %v1931
        %v1933 = vrot.slane %v1928, %v1932
        %v1935 = vadd.f32 %v1920, %v1933
        %v1936 = vadd.f32 %v1921, %v1933
        %v1937 = vadd.f32 %v1922, %v1933
        %v1938 = vadd.f32 %v1923, %v1933
        %v1939 = vadd.f32 %v1924, %v1933
        %v1940 = vadd.f32 %v1925, %v1933
        %v1941 = vadd.f32 %v1926, %v1933
        %v1942 = vadd.f32 %v1927, %v1933
        %v1943 = vmax.f32 %v1935, 0.0
        %v1944 = vmax.f32 %v1936, 0.0
        %v1945 = vmax.f32 %v1937, 0.0
        %v1946 = vmax.f32 %v1938, 0.0
        %v1947 = vmax.f32 %v1939, 0.0
        %v1948 = vmax.f32 %v1940, 0.0
        %v1949 = vmax.f32 %v1941, 0.0
        %v1950 = vmax.f32 %v1942, 0.0
        %v1951 = vpack.c.bf16 %v1944, %v1943
        %v1952 = vpack.c.bf16 %v1946, %v1945
        %v1953 = vpack.c.bf16 %v1948, %v1947
        %v1954 = vpack.c.bf16 %v1950, %v1949
        %1955 = vst.msk [vmem:[#allocation2] sm:$0xff] %vm441, %v1951
        %1956 = vst.msk [vmem:[#allocation2 + $0x8] sm:$0xff] %vm441, %v1952
        %1957 = vst.msk [vmem:[#allocation2 + $0x10] sm:$0xff] %vm441, %v1953
        %1958 = vst.msk [vmem:[#allocation2 + $0x18] sm:$0xff] %vm441, %v1954
        %v1959 = vld [vmem:[#allocation2] sm:$0xff]
        %v1960 = vld [vmem:[#allocation2 + $0x8] sm:$0xff]
        %v1961 = vld [vmem:[#allocation2 + $0x10] sm:$0xff]
        %v1962 = vld [vmem:[#allocation2 + $0x18] sm:$0x3f]
        %1963 = vst.msk [vmem:[#allocation4] sm:$0xff] %vm441, %v1959
        %1964 = vst.msk [vmem:[#allocation4 + $0x8] sm:$0xff] %vm441, %v1960
        %1965 = vst.msk [vmem:[#allocation4 + $0x10] sm:$0xff] %vm441, %v1961
        %1966 = vst.msk [vmem:[#allocation4 + $0x18] sm:$0x3f] %vm673, %v1962
        %v1967 = vld [vmem:[#allocation2] sm:$0xff]
        %v1968 = vld [vmem:[#allocation2 + $0x8] sm:$0xff]
        %v1969 = vld [vmem:[#allocation2 + $0x10] sm:$0xff]
        %v1970 = vld [vmem:[#allocation2 + $0x18] sm:$0x7f]
        %v1972 = vshrl.u32 %v1967, 16
        %v1974 = vshll.u32 %v1967, 16
        %v1976 = vrot.slane %v1974, 1
        %v1977 = vor.u32 %v1972, %v1976
        %v1979 = vshll.u32 %v1968, 16
        %v1981 = vrot.slane %v1979, 1
        %v1982 = vsel %vm682, %v1977, %v1981
        %v1983 = vshrl.u32 %v1968, 16
        %v1985 = vor.u32 %v1983, %v1981
        %v1987 = vshll.u32 %v1969, 16
        %v1989 = vrot.slane %v1987, 1
        %v1990 = vsel %vm682, %v1985, %v1989
        %v1991 = vshrl.u32 %v1969, 16
        %v1993 = vor.u32 %v1991, %v1989
        %v1995 = vshll.u32 %v1970, 16
        %v1997 = vrot.slane %v1995, 1
        %v1998 = vsel %vm682, %v1993, %v1997
        %v1999 = vshrl.u32 %v1970, 16
        %v2001 = vor.u32 %v1999, %v1997
        %2002 = vrot.lane.b32.xlu0 %v1982, 32
        %v2003 = vpop.permute.xlu0 %2002
        %2004 = vrot.lane.b32.xlu0 %v1990, 32
        %v2005 = vpop.permute.xlu0 %2004
        %2006 = vrot.lane.b32.xlu0 %v1998, 32
        %v2007 = vpop.permute.xlu0 %2006
        %2008 = vrot.lane.b32.xlu0 %v2001, 32
        %v2009 = vpop.permute.xlu0 %2008
        %2014 = vst.msk [vmem:[#allocation4] sm:$0xff] %vm759, %v2003
        %2015 = vst.msk [vmem:[#allocation4 + $0x8] sm:$0xff] %vm759, %v2005
        %2016 = vst.msk [vmem:[#allocation4 + $0x10] sm:$0xff] %vm759, %v2007
        %2017 = vst.msk [vmem:[#allocation4 + $0x18] sm:$0x3f] %vm766, %v2009
        %v2018 = vld [vmem:[#allocation2] sm:$0xfe]
        %v2019 = vld [vmem:[#allocation2 + $0x8] sm:$0xff]
        %v2020 = vld [vmem:[#allocation2 + $0x10] sm:$0xff]
        %v2021 = vld [vmem:[#allocation2 + $0x18] sm:$0x7f]
        %v2026 = vrot.slane %v2018, 1
        %v2027 = vrot.slane %v2019, 1
        %v2028 = vsel %vm782, %v2026, %v2027
        %v2029 = vrot.slane %v2020, 1
        %v2030 = vsel %vm782, %v2027, %v2029
        %v2031 = vrot.slane %v2021, 1
        %v2032 = vsel %vm782, %v2029, %v2031
        %2033 = vrot.lane.b32.xlu0 %v2028, 64
        %v2034 = vpop.permute.xlu0 %2033
        %2035 = vrot.lane.b32.xlu0 %v2030, 64
        %v2036 = vpop.permute.xlu0 %2035
        %2037 = vrot.lane.b32.xlu0 %v2032, 64
        %v2038 = vpop.permute.xlu0 %2037
        %2039 = vrot.lane.b32.xlu0 %v2031, 64
        %v2040 = vpop.permute.xlu0 %2039
        %2045 = vst.msk [vmem:[#allocation4] sm:$0xff] %vm817, %v2034
        %2046 = vst.msk [vmem:[#allocation4 + $0x8] sm:$0xff] %vm817, %v2036
        %2047 = vst.msk [vmem:[#allocation4 + $0x10] sm:$0xff] %vm817, %v2038
        %2048 = vst.msk [vmem:[#allocation4 + $0x18] sm:$0x3f] %vm824, %v2040
        %v2049 = vld [vmem:[#allocation4] sm:$0xff]
        %v2050 = vld [vmem:[#allocation4 + $0x8] sm:$0xff]
        %v2051 = vld [vmem:[#allocation4 + $0x10] sm:$0xf]
        %v2052 = vld [vmem:[%s7] sm:$0xf]
        %v2053 = vld [vmem:[%s7 + $0x4] sm:$0xf]
        %v2054 = vld [vmem:[%s7 + $0x8] sm:$0xf]
        %v2055 = vld [vmem:[%s7 + $0xc] sm:$0xf]
        %v2056 = vld [vmem:[%s7 + $0x10] sm:$0xf]
        %v2057 = vld [vmem:[%s7 + $0x14] sm:$0xf]
        %v2058 = vld [vmem:[%s7 + $0x18] sm:$0xf]
        %v2059 = vld [vmem:[%s7 + $0x1c] sm:$0xf]
        %v2060 = vld [vmem:[%s7 + $0x20] sm:$0xf]
        %v2061 = vld [vmem:[%s7 + $0x24] sm:$0xf]
        %v2062 = vld [vmem:[%s7 + $0x28] sm:$0xf]
        %v2063 = vld [vmem:[%s7 + $0x2c] sm:$0xf]
        %v2064 = vld [vmem:[#allocation4] sm:$0xe0]
        %v2065 = vld [vmem:[#allocation4 + $0x10] sm:$0xff]
        %v2066 = vld [vmem:[#allocation4 + $0x18] sm:$0x1]
        %s2067 = scalar_lea.vmem %s7, 48
        %v2068 = vld [vmem:[%s2067] sm:$0xf]
        %v2069 = vld [vmem:[%s2067 + $0x4] sm:$0xf]
        %v2070 = vld [vmem:[%s2067 + $0x8] sm:$0xf]
        %v2071 = vld [vmem:[%s2067 + $0xc] sm:$0xf]
        %v2072 = vld [vmem:[%s2067 + $0x10] sm:$0xf]
        %v2073 = vld [vmem:[%s2067 + $0x14] sm:$0xf]
        %v2074 = vld [vmem:[%s2067 + $0x18] sm:$0xf]
        %v2075 = vld [vmem:[%s2067 + $0x1c] sm:$0xf]
        %v2076 = vld [vmem:[%s2067 + $0x20] sm:$0xf]
        %v2077 = vld [vmem:[%s2067 + $0x24] sm:$0xf]
        %v2078 = vld [vmem:[%s2067 + $0x28] sm:$0xf]
        %v2079 = vld [vmem:[%s2067 + $0x2c] sm:$0xf]
        %v2084 = vrot.slane %v2064, 5
        %v2085 = vrot.slane %v2050, 5
        %v2086 = vsel %vm867, %v2084, %v2085
        %v2087 = vrot.slane %v2065, 5
        %v2088 = vsel %vm867, %v2085, %v2087
        %v2089 = vrot.slane %v2066, 5
        %v2090 = vsel %vm867, %v2087, %v2089
        %v2103 = vunpack.c.l.b16 %v2068
        %v2104 = vunpack.c.l.b16 %v2069
        %v2105 = vunpack.c.l.b16 %v2070
        %v2106 = vunpack.c.l.b16 %v2071
        %v2107 = vunpack.c.l.b16 %v2072
        %v2108 = vunpack.c.l.b16 %v2073
        %v2109 = vunpack.c.l.b16 %v2074
        %v2110 = vunpack.c.l.b16 %v2075
        %v2111 = vunpack.c.l.b16 %v2076
        %v2112 = vunpack.c.l.b16 %v2077
        %v2113 = vunpack.c.l.b16 %v2078
        %v2114 = vunpack.c.l.b16 %v2079
        %v2115 = vpack.c.b16 %v2104, %v2103
        %v2116 = vpack.c.b16 %v2106, %v2105
        %v2117 = vpack.c.b16 %v2108, %v2107
        %v2118 = vpack.c.b16 %v2110, %v2109
        %v2119 = vpack.c.b16 %v2112, %v2111
        %v2120 = vpack.c.b16 %v2114, %v2113
        %v2128 = vsel %vm917, %v2086, 0
        %v2131 = vsel %vm917, %v2088, 0
        %v2134 = vsel %vm917, %v2090, 0
        %2136 = vmatprep.subr.bf16.mxu0 0
        %2137 = vmatpush1.bf16.msra.mxu0 %v2115
        %2138 = vmatprep.subr.bf16.mxu0 0
        %2139 = vmatpush1.bf16.msra.mxu0 %v2116
        %2140 = vmatprep.subr.bf16.mxu0 0
        %2141 = vmatpush1.bf16.msra.mxu0 %v2117
        %2142 = vmatprep.subr.bf16.mxu0 0
        %2143 = vmatpush1.bf16.msra.mxu0 %v2118
        %2144 = vmatprep.subr.bf16.mxu0 0
        %2145 = vmatpush1.bf16.msra.mxu0 %v2119
        %2146 = vmatprep.subr.bf16.mxu0 0
        %2147 = vmatpush1.bf16.msra.mxu0 %v2120
        %2148 = vmatprep.subr.bf16.mxu0 0
        %2149 = vmatpush1.bf16.msra.mxu0 0
        %2150 = vmatprep.subr.bf16.mxu0 0
        %2151 = vmatpush1.bf16.msra.mxu0 0
        %2152 = vmatprep.subr.bf16.mxu0 0
        %2153 = vmatpush1.bf16.msra.mxu0 0
        %2154 = vmatprep.subr.bf16.mxu0 0
        %2155 = vmatpush1.bf16.msra.mxu0 0
        %2156 = vmatprep.subr.bf16.mxu0 0
        %2157 = vmatpush1.bf16.msra.mxu0 0
        %2158 = vmatprep.subr.bf16.mxu0 0
        %2159 = vmatpush1.bf16.msra.mxu0 0
        %2160 = vmatprep.subr.bf16.mxu0 0
        %2161 = vmatpush1.bf16.msra.mxu0 0
        %2162 = vmatprep.subr.bf16.mxu0 0
        %2163 = vmatpush1.bf16.msra.mxu0 0
        %2164 = vmatprep.subr.bf16.mxu0 0
        %2165 = vmatpush1.bf16.msra.mxu0 0
        %2166 = vmatprep.subr.bf16.mxu0 0
        %2167 = vmatpush1.bf16.msra.mxu0 0
        %2168 = vmatprep.mubr.bf16.mxu0 0
        %2169 = vmatmul.mubr.bf16.gmra.mrb[0].mxu0 %v2128
        %v2170 = vpop.f32.mrb[0].mxu0
        %v2171 = vadd.f32 0.0, %v2170
        %v2172 = vpop.f32.mrb[0].mxu0
        %v2173 = vpop.f32.mrb[0].mxu0
        %v2174 = vadd.f32 0.0, %v2173
        %v2175 = vpop.f32.mrb[0].mxu0
        %2176 = vmatprep.mubr.bf16.mxu0 0
        %2177 = vmatmul.mubr.bf16.gmra.mrb[0].mxu0 %v2131
        %v2178 = vpop.f32.mrb[0].mxu0
        %v2179 = vadd.f32 0.0, %v2178
        %v2180 = vpop.f32.mrb[0].mxu0
        %v2181 = vpop.f32.mrb[0].mxu0
        %v2182 = vadd.f32 0.0, %v2181
        %v2183 = vpop.f32.mrb[0].mxu0
        %2184 = vmatprep.mubr.bf16.mxu0 0
        %2185 = vmatmul.mubr.bf16.gmra.mrb[0].mxu0 %v2134
        %v2186 = vpop.f32.mrb[0].mxu0
        %v2187 = vadd.f32 0.0, %v2186
        %v2188 = vpop.f32.mrb[0].mxu0
        %v2189 = vpop.f32.mrb[0].mxu0
        %v2190 = vpop.f32.mrb[0].mxu0
        %2191 = vdwg.mxu0
        %v2204 = vunpack.c.l.b16 %v2052
        %v2205 = vunpack.c.l.b16 %v2053
        %v2206 = vunpack.c.l.b16 %v2054
        %v2207 = vunpack.c.l.b16 %v2055
        %v2208 = vunpack.c.l.b16 %v2056
        %v2209 = vunpack.c.l.b16 %v2057
        %v2210 = vunpack.c.l.b16 %v2058
        %v2211 = vunpack.c.l.b16 %v2059
        %v2212 = vunpack.c.l.b16 %v2060
        %v2213 = vunpack.c.l.b16 %v2061
        %v2214 = vunpack.c.l.b16 %v2062
        %v2215 = vunpack.c.l.b16 %v2063
        %v2216 = vpack.c.b16 %v2205, %v2204
        %v2217 = vpack.c.b16 %v2207, %v2206
        %v2218 = vpack.c.b16 %v2209, %v2208
        %v2219 = vpack.c.b16 %v2211, %v2210
        %v2220 = vpack.c.b16 %v2213, %v2212
        %v2221 = vpack.c.b16 %v2215, %v2214
        %v2229 = vsel %vm917, %v2049, 0
        %v2232 = vsel %vm917, %v2050, 0
        %v2235 = vsel %vm917, %v2051, 0
        %2237 = vmatprep.subr.bf16.mxu0 0
        %2238 = vmatpush1.bf16.msra.mxu0 %v2216
        %2239 = vmatprep.subr.bf16.mxu0 0
        %2240 = vmatpush1.bf16.msra.mxu0 %v2217
        %2241 = vmatprep.subr.bf16.mxu0 0
        %2242 = vmatpush1.bf16.msra.mxu0 %v2218
        %2243 = vmatprep.subr.bf16.mxu0 0
        %2244 = vmatpush1.bf16.msra.mxu0 %v2219
        %2245 = vmatprep.subr.bf16.mxu0 0
        %2246 = vmatpush1.bf16.msra.mxu0 %v2220
        %2247 = vmatprep.subr.bf16.mxu0 0
        %2248 = vmatpush1.bf16.msra.mxu0 %v2221
        %2249 = vmatprep.subr.bf16.mxu0 0
        %2250 = vmatpush1.bf16.msra.mxu0 0
        %2251 = vmatprep.subr.bf16.mxu0 0
        %2252 = vmatpush1.bf16.msra.mxu0 0
        %2253 = vmatprep.subr.bf16.mxu0 0
        %2254 = vmatpush1.bf16.msra.mxu0 0
        %2255 = vmatprep.subr.bf16.mxu0 0
        %2256 = vmatpush1.bf16.msra.mxu0 0
        %2257 = vmatprep.subr.bf16.mxu0 0
        %2258 = vmatpush1.bf16.msra.mxu0 0
        %2259 = vmatprep.subr.bf16.mxu0 0
        %2260 = vmatpush1.bf16.msra.mxu0 0
        %2261 = vmatprep.subr.bf16.mxu0 0
        %2262 = vmatpush1.bf16.msra.mxu0 0
        %2263 = vmatprep.subr.bf16.mxu0 0
        %2264 = vmatpush1.bf16.msra.mxu0 0
        %2265 = vmatprep.subr.bf16.mxu0 0
        %2266 = vmatpush1.bf16.msra.mxu0 0
        %2267 = vmatprep.subr.bf16.mxu0 0
        %2268 = vmatpush1.bf16.msra.mxu0 0
        %2269 = vmatprep.mubr.bf16.mxu0 0
        %2270 = vmatmul.mubr.bf16.gmra.mrb[0].mxu0 %v2229
        %v2271 = vpop.f32.mrb[0].mxu0
        %v2272 = vadd.f32 %v2171, %v2271
        %v2273 = vpop.f32.mrb[0].mxu0
        %v2274 = vpop.f32.mrb[0].mxu0
        %v2275 = vadd.f32 %v2174, %v2274
        %v2276 = vpop.f32.mrb[0].mxu0
        %2277 = vmatprep.mubr.bf16.mxu0 0
        %2278 = vmatmul.mubr.bf16.gmra.mrb[0].mxu0 %v2232
        %v2279 = vpop.f32.mrb[0].mxu0
        %v2280 = vadd.f32 %v2179, %v2279
        %v2281 = vpop.f32.mrb[0].mxu0
        %v2282 = vpop.f32.mrb[0].mxu0
        %v2283 = vadd.f32 %v2182, %v2282
        %v2284 = vpop.f32.mrb[0].mxu0
        %2285 = vmatprep.mubr.bf16.mxu0 0
        %2286 = vmatmul.mubr.bf16.gmra.mrb[0].mxu0 %v2235
        %v2287 = vpop.f32.mrb[0].mxu0
        %v2288 = vadd.f32 %v2187, %v2287
        %v2289 = vpop.f32.mrb[0].mxu0
        %v2290 = vpop.f32.mrb[0].mxu0
        %v2291 = vpop.f32.mrb[0].mxu0
        %2292 = vdwg.mxu0
        %v2293 = vld [vmem:[#allocation4 + $0x8] sm:$0xfc]
        %v2294 = vld [vmem:[#allocation4 + $0x18] sm:$0x3f]
        %s2295 = scalar_lea.vmem %s7, 96
        %v2296 = vld [vmem:[%s2295] sm:$0xf]
        %v2297 = vld [vmem:[%s2295 + $0x4] sm:$0xf]
        %v2298 = vld [vmem:[%s2295 + $0x8] sm:$0xf]
        %v2299 = vld [vmem:[%s2295 + $0xc] sm:$0xf]
        %v2300 = vld [vmem:[%s2295 + $0x10] sm:$0xf]
        %v2301 = vld [vmem:[%s2295 + $0x14] sm:$0xf]
        %v2302 = vld [vmem:[%s2295 + $0x18] sm:$0xf]
        %v2303 = vld [vmem:[%s2295 + $0x1c] sm:$0xf]
        %v2304 = vld [vmem:[%s2295 + $0x20] sm:$0xf]
        %v2305 = vld [vmem:[%s2295 + $0x24] sm:$0xf]
        %v2306 = vld [vmem:[%s2295 + $0x28] sm:$0xf]
        %v2307 = vld [vmem:[%s2295 + $0x2c] sm:$0xf]
        %v2310 = vrot.slane %v2293, 2
        %v2311 = vrot.slane %v2065, 2
        %v2312 = vsel %vm1167, %v2310, %v2311
        %v2313 = vrot.slane %v2294, 2
        %v2314 = vsel %vm1167, %v2311, %v2313
        %v2327 = vunpack.c.l.b16 %v2296
        %v2328 = vunpack.c.l.b16 %v2297
        %v2329 = vunpack.c.l.b16 %v2298
        %v2330 = vunpack.c.l.b16 %v2299
        %v2331 = vunpack.c.l.b16 %v2300
        %v2332 = vunpack.c.l.b16 %v2301
        %v2333 = vunpack.c.l.b16 %v2302
        %v2334 = vunpack.c.l.b16 %v2303
        %v2335 = vunpack.c.l.b16 %v2304
        %v2336 = vunpack.c.l.b16 %v2305
        %v2337 = vunpack.c.l.b16 %v2306
        %v2338 = vunpack.c.l.b16 %v2307
        %v2339 = vpack.c.b16 %v2328, %v2327
        %v2340 = vpack.c.b16 %v2330, %v2329
        %v2341 = vpack.c.b16 %v2332, %v2331
        %v2342 = vpack.c.b16 %v2334, %v2333
        %v2343 = vpack.c.b16 %v2336, %v2335
        %v2344 = vpack.c.b16 %v2338, %v2337
        %v2352 = vsel %vm917, %v2312, 0
        %v2355 = vsel %vm917, %v2314, 0
        %v2358 = vsel %vm917, %v2313, 0
        %2360 = vmatprep.subr.bf16.mxu0 0
        %2361 = vmatpush1.bf16.msra.mxu0 %v2339
        %2362 = vmatprep.subr.bf16.mxu0 0
        %2363 = vmatpush1.bf16.msra.mxu0 %v2340
        %2364 = vmatprep.subr.bf16.mxu0 0
        %2365 = vmatpush1.bf16.msra.mxu0 %v2341
        %2366 = vmatprep.subr.bf16.mxu0 0
        %2367 = vmatpush1.bf16.msra.mxu0 %v2342
        %2368 = vmatprep.subr.bf16.mxu0 0
        %2369 = vmatpush1.bf16.msra.mxu0 %v2343
        %2370 = vmatprep.subr.bf16.mxu0 0
        %2371 = vmatpush1.bf16.msra.mxu0 %v2344
        %2372 = vmatprep.subr.bf16.mxu0 0
        %2373 = vmatpush1.bf16.msra.mxu0 0
        %2374 = vmatprep.subr.bf16.mxu0 0
        %2375 = vmatpush1.bf16.msra.mxu0 0
        %2376 = vmatprep.subr.bf16.mxu0 0
        %2377 = vmatpush1.bf16.msra.mxu0 0
        %2378 = vmatprep.subr.bf16.mxu0 0
        %2379 = vmatpush1.bf16.msra.mxu0 0
        %2380 = vmatprep.subr.bf16.mxu0 0
        %2381 = vmatpush1.bf16.msra.mxu0 0
        %2382 = vmatprep.subr.bf16.mxu0 0
        %2383 = vmatpush1.bf16.msra.mxu0 0
        %2384 = vmatprep.subr.bf16.mxu0 0
        %2385 = vmatpush1.bf16.msra.mxu0 0
        %2386 = vmatprep.subr.bf16.mxu0 0
        %2387 = vmatpush1.bf16.msra.mxu0 0
        %2388 = vmatprep.subr.bf16.mxu0 0
        %2389 = vmatpush1.bf16.msra.mxu0 0
        %2390 = vmatprep.subr.bf16.mxu0 0
        %2391 = vmatpush1.bf16.msra.mxu0 0
        %2392 = vmatprep.mubr.bf16.mxu0 0
        %2393 = vmatmul.mubr.bf16.gmra.mrb[0].mxu0 %v2352
        %v2394 = vpop.f32.mrb[0].mxu0
        %v2395 = vadd.f32 0.0, %v2394
        %v2396 = vpop.f32.mrb[0].mxu0
        %v2397 = vpop.f32.mrb[0].mxu0
        %v2398 = vadd.f32 0.0, %v2397
        %v2399 = vpop.f32.mrb[0].mxu0
        %2400 = vmatprep.mubr.bf16.mxu0 0
        %2401 = vmatmul.mubr.bf16.gmra.mrb[0].mxu0 %v2355
        %v2402 = vpop.f32.mrb[0].mxu0
        %v2403 = vadd.f32 0.0, %v2402
        %v2404 = vpop.f32.mrb[0].mxu0
        %v2405 = vpop.f32.mrb[0].mxu0
        %v2406 = vadd.f32 0.0, %v2405
        %v2407 = vpop.f32.mrb[0].mxu0
        %2408 = vmatprep.mubr.bf16.mxu0 0
        %2409 = vmatmul.mubr.bf16.gmra.mrb[0].mxu0 %v2358
        %v2410 = vpop.f32.mrb[0].mxu0
        %v2411 = vadd.f32 0.0, %v2410
        %v2412 = vpop.f32.mrb[0].mxu0
        %v2413 = vpop.f32.mrb[0].mxu0
        %v2414 = vpop.f32.mrb[0].mxu0
        %2415 = vdwg.mxu0
        %v2416 = vadd.f32 %v2272, %v2395
        %v2417 = vadd.f32 %v2275, %v2398
        %v2418 = vadd.f32 %v2280, %v2403
        %v2419 = vadd.f32 %v2283, %v2406
        %v2420 = vadd.f32 %v2288, %v2411
        %v2421 = vld [vmem:[%s8] sm:$0x1]
        %v2423 = vlaneseq
        %v2424 = vshrl.u32 %v2423, 7
        %v2425 = vsub.s32 0, %v2424
        %v2426 = vrot.slane %v2421, %v2425
        %v2428 = vadd.f32 %v2416, %v2426
        %v2429 = vadd.f32 %v2417, %v2426
        %v2430 = vadd.f32 %v2418, %v2426
        %v2431 = vadd.f32 %v2419, %v2426
        %v2432 = vadd.f32 %v2420, %v2426
        %v2433 = vmax.f32 %v2428, 0.0
        %v2434 = vmax.f32 %v2429, 0.0
        %v2435 = vmax.f32 %v2430, 0.0
        %v2436 = vmax.f32 %v2431, 0.0
        %v2437 = vmax.f32 %v2432, 0.0
        %v2438 = vpack.c.bf16 %v2434, %v2433
        %v2439 = vpack.c.bf16 %v2436, %v2435
        %v2440 = vpack.c.bf16 %v2437, %v2437
        %2441 = vst.msk [vmem:[#allocation3] sm:$0xff] %vm441, %v2438
        %2442 = vst.msk [vmem:[#allocation3 + $0x8] sm:$0xff] %vm441, %v2439
        %2443 = vst.msk [vmem:[#allocation3 + $0x10] sm:$0xf] %vm658, %v2440
        %v2444 = vld [vmem:[#allocation3] sm:$0x1]
        %vm2445 = vcmask 253952
        %vm2446 = vsmask.f32 256
        %vm2447 = vmand %vm2445, %vm2446
        %v2448 = vld [vmem:[#allocation5] sm:$0x1]
        %v2449 = vsel %vm2447, %v2444, %v2448
        %2450 = vst [vmem:[#allocation5] sm:$0x1] %v2449
        %v2451 = vld [vmem:[#allocation3] sm:$0x1]
        %v2454 = vunpack.c.l.s4 1966171168
        %v2455 = vunpack.c.0.s8 %v2454
        %v2456 = vlaneseq
        %v2457 = vshrl.u32 %v2456, 7
        %v2458 = vsub.s32 %v2455, %v2457
        %v2459 = vrot.slane %v2451, %v2458
        %v2461 = vunpack.c.l.s4 1966171168
        %v2462 = vunpack.c.0.s8 %v2461
        %v2463 = vlaneseq
        %v2464 = vshrl.u32 %v2463, 7
        %v2465 = vsub.s32 %v2462, %v2464
        %v2466 = vrot.slane %v2459, %v2465
        %v2468 = vshrl.u32 %v2466, 16
        %v2470 = vrot.slane %v2468, 7
        %v2471 = vrot.slane %v2470, 1
        %2472 = vrot.lane.b32.xlu0 %v2471, 32
        %v2473 = vpop.permute.xlu0 %2472
        %vm2475 = vcmask 516352
        %vm2476 = vmand %vm2475, %vm2446
        %v2477 = vld [vmem:[#allocation5] sm:$0x1]
        %v2478 = vsel %vm2476, %v2473, %v2477
        %2479 = vst [vmem:[#allocation5] sm:$0x1] %v2478
        %v2480 = vld [vmem:[#allocation3] sm:$0x2]
        %v2483 = vunpack.c.l.s4 1966171168
        %v2484 = vunpack.c.0.s8 %v2483
        %v2485 = vlaneseq
        %v2486 = vshrl.u32 %v2485, 7
        %v2487 = vsub.s32 %v2484, %v2486
        %v2488 = vrot.slane %v2480, %v2487
        %v2489 = vcombine.high %v2488, %v2488
        %v2491 = vunpack.c.l.s4 1966171168
        %v2492 = vunpack.c.0.s8 %v2491
        %v2493 = vlaneseq
        %v2494 = vshrl.u32 %v2493, 7
        %v2495 = vsub.s32 %v2492, %v2494
        %v2496 = vrot.slane %v2489, %v2495
        %2497 = vrot.lane.b32.xlu0 %v2496, 64
        %v2498 = vpop.permute.xlu0 %2497
        %vm2500 = vcmask 778752
        %vm2501 = vmand %vm2500, %vm2446
        %v2502 = vld [vmem:[#allocation5] sm:$0x1]
        %v2503 = vsel %vm2501, %v2498, %v2502
        %2504 = vst [vmem:[#allocation5] sm:$0x1] %v2503
        %v2505 = vld [vmem:[#allocation3] sm:$0x2]
        %v2508 = vunpack.c.l.s4 1966171168
        %v2509 = vunpack.c.0.s8 %v2508
        %v2510 = vlaneseq
        %v2511 = vshrl.u32 %v2510, 7
        %v2512 = vsub.s32 %v2509, %v2511
        %v2513 = vrot.slane %v2505, %v2512
        %v2514 = vcombine.high %v2513, %v2513
        %v2516 = vunpack.c.l.s4 1966171168
        %v2517 = vunpack.c.0.s8 %v2516
        %v2518 = vlaneseq
        %v2519 = vshrl.u32 %v2518, 7
        %v2520 = vsub.s32 %v2517, %v2519
        %v2521 = vrot.slane %v2514, %v2520
        %v2523 = vshrl.u32 %v2521, 16
        %v2525 = vrot.slane %v2523, 7
        %v2526 = vrot.slane %v2525, 1
        %2527 = vrot.lane.b32.xlu0 %v2526, 96
        %v2528 = vpop.permute.xlu0 %2527
        %vm2530 = vcmask 1041152
        %vm2531 = vmand %vm2530, %vm2446
        %v2532 = vld [vmem:[#allocation5] sm:$0x1]
        %v2533 = vsel %vm2531, %v2528, %v2532
        %2534 = vst [vmem:[#allocation5] sm:$0x1] %v2533
        %v2535 = vld [vmem:[#allocation3] sm:$0x4]
        %v2538 = vunpack.c.l.s4 1966171168
        %v2539 = vunpack.c.0.s8 %v2538
        %v2540 = vlaneseq
        %v2541 = vshrl.u32 %v2540, 7
        %v2542 = vsub.s32 %v2539, %v2541
        %v2543 = vrot.slane %v2535, %v2542
        %v2545 = vunpack.c.l.s4 1966171168
        %v2546 = vunpack.c.0.s8 %v2545
        %v2547 = vlaneseq
        %v2548 = vshrl.u32 %v2547, 7
        %v2549 = vsub.s32 %v2546, %v2548
        %v2550 = vrot.slane %v2543, %v2549
        %v2551 = vcombine.high %v2550, %v2550
        %v2553 = vld [vmem:[#allocation5 + $0x1] sm:$0x1]
        %v2554 = vsel %vm2447, %v2551, %v2553
        %2555 = vst [vmem:[#allocation5 + $0x1] sm:$0x1] %v2554
        %v2556 = vld [vmem:[#allocation3] sm:$0x4]
        %v2559 = vunpack.c.l.s4 1966171168
        %v2560 = vunpack.c.0.s8 %v2559
        %v2561 = vlaneseq
        %v2562 = vshrl.u32 %v2561, 7
        %v2563 = vsub.s32 %v2560, %v2562
        %v2564 = vrot.slane %v2556, %v2563
        %v2566 = vunpack.c.l.s4 1966171168
        %v2567 = vunpack.c.0.s8 %v2566
        %v2568 = vlaneseq
        %v2569 = vshrl.u32 %v2568, 7
        %v2570 = vsub.s32 %v2567, %v2569
        %v2571 = vrot.slane %v2564, %v2570
        %v2572 = vcombine.high %v2571, %v2571
        %v2574 = vshrl.u32 %v2572, 16
        %v2576 = vrot.slane %v2574, 7
        %v2577 = vrot.slane %v2576, 1
        %2578 = vrot.lane.b32.xlu0 %v2577, 32
        %v2579 = vpop.permute.xlu0 %2578
        %v2581 = vld [vmem:[#allocation5 + $0x1] sm:$0x1]
        %v2582 = vsel %vm2476, %v2579, %v2581
        %2583 = vst [vmem:[#allocation5 + $0x1] sm:$0x1] %v2582
        %v2584 = vld [vmem:[#allocation3] sm:$0x8]
        %v2587 = vunpack.c.l.s4 1966171168
        %v2588 = vunpack.c.0.s8 %v2587
        %v2589 = vlaneseq
        %v2590 = vshrl.u32 %v2589, 7
        %v2591 = vsub.s32 %v2588, %v2590
        %v2592 = vrot.slane %v2584, %v2591
        %v2593 = vcombine.high %v2592, %v2592
        %v2595 = vunpack.c.l.s4 1966171168
        %v2596 = vunpack.c.0.s8 %v2595
        %v2597 = vlaneseq
        %v2598 = vshrl.u32 %v2597, 7
        %v2599 = vsub.s32 %v2596, %v2598
        %v2600 = vrot.slane %v2593, %v2599
        %v2601 = vcombine.high %v2600, %v2600
        %2602 = vrot.lane.b32.xlu0 %v2601, 64
        %v2603 = vpop.permute.xlu0 %2602
        %v2605 = vld [vmem:[#allocation5 + $0x1] sm:$0x1]
        %v2606 = vsel %vm2501, %v2603, %v2605
        %2607 = vst [vmem:[#allocation5 + $0x1] sm:$0x1] %v2606
        %v2608 = vld [vmem:[#allocation3] sm:$0x8]
        %v2611 = vunpack.c.l.s4 1966171168
        %v2612 = vunpack.c.0.s8 %v2611
        %v2613 = vlaneseq
        %v2614 = vshrl.u32 %v2613, 7
        %v2615 = vsub.s32 %v2612, %v2614
        %v2616 = vrot.slane %v2608, %v2615
        %v2617 = vcombine.high %v2616, %v2616
        %v2619 = vunpack.c.l.s4 1966171168
        %v2620 = vunpack.c.0.s8 %v2619
        %v2621 = vlaneseq
        %v2622 = vshrl.u32 %v2621, 7
        %v2623 = vsub.s32 %v2620, %v2622
        %v2624 = vrot.slane %v2617, %v2623
        %v2625 = vcombine.high %v2624, %v2624
        %v2627 = vshrl.u32 %v2625, 16
        %v2629 = vrot.slane %v2627, 7
        %v2630 = vrot.slane %v2629, 1
        %2631 = vrot.lane.b32.xlu0 %v2630, 96
        %v2632 = vpop.permute.xlu0 %2631
        %v2634 = vld [vmem:[#allocation5 + $0x1] sm:$0x1]
        %v2635 = vsel %vm2531, %v2632, %v2634
        %2636 = vst [vmem:[#allocation5 + $0x1] sm:$0x1] %v2635
        %v2637 = vld [vmem:[#allocation5] sm:$0x3]
        %v2638 = vld [vmem:[%s9] sm:$0xf]
        %v2639 = vld [vmem:[%s9 + $0x4] sm:$0xf]
        %v2640 = vld [vmem:[%s9 + $0x8] sm:$0xf]
        %v2641 = vld [vmem:[%s9 + $0xc] sm:$0xf]
        %v2642 = vld [vmem:[%s9 + $0x10] sm:$0xf]
        %v2643 = vld [vmem:[%s9 + $0x14] sm:$0xf]
        %v2644 = vld [vmem:[%s9 + $0x18] sm:$0xf]
        %v2645 = vld [vmem:[%s9 + $0x1c] sm:$0xf]
        %v2646 = vld [vmem:[%s9 + $0x20] sm:$0xf]
        %v2647 = vld [vmem:[%s9 + $0x24] sm:$0xf]
        %v2648 = vld [vmem:[%s9 + $0x28] sm:$0xf]
        %v2649 = vld [vmem:[%s9 + $0x2c] sm:$0xf]
        %v2650 = vld [vmem:[%s9 + $0x30] sm:$0xf]
        %v2651 = vld [vmem:[%s9 + $0x34] sm:$0xf]
        %v2652 = vld [vmem:[%s9 + $0x38] sm:$0xf]
        %v2653 = vld [vmem:[%s9 + $0x3c] sm:$0xf]
        %v2654 = vld [vmem:[%s9 + $0x40] sm:$0xf]
        %v2655 = vld [vmem:[%s9 + $0x44] sm:$0xf]
        %v2656 = vld [vmem:[%s9 + $0x48] sm:$0xf]
        %v2657 = vld [vmem:[%s9 + $0x4c] sm:$0xf]
        %v2658 = vld [vmem:[%s9 + $0x50] sm:$0xf]
        %v2659 = vld [vmem:[%s9 + $0x54] sm:$0xf]
        %v2660 = vld [vmem:[%s9 + $0x58] sm:$0xf]
        %v2661 = vld [vmem:[%s9 + $0x5c] sm:$0xf]
        %v2662 = vld [vmem:[%s9 + $0x60] sm:$0xf]
        %v2663 = vld [vmem:[%s9 + $0x64] sm:$0xf]
        %v2664 = vld [vmem:[%s9 + $0x68] sm:$0xf]
        %v2665 = vld [vmem:[%s9 + $0x6c] sm:$0xf]
        %v2666 = vld [vmem:[%s9 + $0x70] sm:$0xf]
        %v2667 = vld [vmem:[%s9 + $0x74] sm:$0xf]
        %v2668 = vld [vmem:[%s9 + $0x78] sm:$0xf]
        %v2669 = vld [vmem:[%s9 + $0x7c] sm:$0xf]
        %v2670 = vld [vmem:[#allocation3] sm:$0x10]
        %v2672 = vcombine.high %v2670, %v2670
        %v2674 = vunpack.c.l.s4 1966171168
        %v2675 = vunpack.c.0.s8 %v2674
        %v2676 = vlaneseq
        %v2677 = vshrl.u32 %v2676, 7
        %v2678 = vsub.s32 %v2675, %v2677
        %v2679 = vrot.slane %v2672, %v2678
        %v2681 = vunpack.c.l.s4 1966171168
        %v2682 = vunpack.c.0.s8 %v2681
        %v2683 = vlaneseq
        %v2684 = vshrl.u32 %v2683, 7
        %v2685 = vsub.s32 %v2682, %v2684
        %v2686 = vrot.slane %v2679, %v2685
        %v2688 = vld [vmem:[#allocation5] sm:$0x1]
        %v2689 = vsel %vm2447, %v2686, %v2688
        %2690 = vst [vmem:[#allocation5] sm:$0x1] %v2689
        %v2691 = vld [vmem:[#allocation3] sm:$0x10]
        %v2693 = vcombine.high %v2691, %v2691
        %v2695 = vunpack.c.l.s4 1966171168
        %v2696 = vunpack.c.0.s8 %v2695
        %v2697 = vlaneseq
        %v2698 = vshrl.u32 %v2697, 7
        %v2699 = vsub.s32 %v2696, %v2698
        %v2700 = vrot.slane %v2693, %v2699
        %v2702 = vunpack.c.l.s4 1966171168
        %v2703 = vunpack.c.0.s8 %v2702
        %v2704 = vlaneseq
        %v2705 = vshrl.u32 %v2704, 7
        %v2706 = vsub.s32 %v2703, %v2705
        %v2707 = vrot.slane %v2700, %v2706
        %v2709 = vshrl.u32 %v2707, 16
        %v2711 = vrot.slane %v2709, 7
        %v2712 = vrot.slane %v2711, 1
        %2713 = vrot.lane.b32.xlu0 %v2712, 32
        %v2714 = vpop.permute.xlu0 %2713
        %v2716 = vld [vmem:[#allocation5] sm:$0x1]
        %v2717 = vsel %vm2476, %v2714, %v2716
        %2718 = vst [vmem:[#allocation5] sm:$0x1] %v2717
        %v2719 = vld [vmem:[#allocation3] sm:$0x20]
        %v2721 = vcombine.high %v2719, %v2719
        %v2723 = vunpack.c.l.s4 1966171168
        %v2724 = vunpack.c.0.s8 %v2723
        %v2725 = vlaneseq
        %v2726 = vshrl.u32 %v2725, 7
        %v2727 = vsub.s32 %v2724, %v2726
        %v2728 = vrot.slane %v2721, %v2727
        %v2729 = vcombine.high %v2728, %v2728
        %v2731 = vunpack.c.l.s4 1966171168
        %v2732 = vunpack.c.0.s8 %v2731
        %v2733 = vlaneseq
        %v2734 = vshrl.u32 %v2733, 7
        %v2735 = vsub.s32 %v2732, %v2734
        %v2736 = vrot.slane %v2729, %v2735
        %2737 = vrot.lane.b32.xlu0 %v2736, 64
        %v2738 = vpop.permute.xlu0 %2737
        %v2740 = vld [vmem:[#allocation5] sm:$0x1]
        %v2741 = vsel %vm2501, %v2738, %v2740
        %2742 = vst [vmem:[#allocation5] sm:$0x1] %v2741
        %v2743 = vld [vmem:[#allocation3] sm:$0x20]
        %v2745 = vcombine.high %v2743, %v2743
        %v2747 = vunpack.c.l.s4 1966171168
        %v2748 = vunpack.c.0.s8 %v2747
        %v2749 = vlaneseq
        %v2750 = vshrl.u32 %v2749, 7
        %v2751 = vsub.s32 %v2748, %v2750
        %v2752 = vrot.slane %v2745, %v2751
        %v2753 = vcombine.high %v2752, %v2752
        %v2755 = vunpack.c.l.s4 1966171168
        %v2756 = vunpack.c.0.s8 %v2755
        %v2757 = vlaneseq
        %v2758 = vshrl.u32 %v2757, 7
        %v2759 = vsub.s32 %v2756, %v2758
        %v2760 = vrot.slane %v2753, %v2759
        %v2762 = vshrl.u32 %v2760, 16
        %v2764 = vrot.slane %v2762, 7
        %v2765 = vrot.slane %v2764, 1
        %2766 = vrot.lane.b32.xlu0 %v2765, 96
        %v2767 = vpop.permute.xlu0 %2766
        %v2769 = vld [vmem:[#allocation5] sm:$0x1]
        %v2770 = vsel %vm2531, %v2767, %v2769
        %2771 = vst [vmem:[#allocation5] sm:$0x1] %v2770
        %v2772 = vld [vmem:[#allocation3] sm:$0x40]
        %v2774 = vcombine.high %v2772, %v2772
        %v2776 = vunpack.c.l.s4 1966171168
        %v2777 = vunpack.c.0.s8 %v2776
        %v2778 = vlaneseq
        %v2779 = vshrl.u32 %v2778, 7
        %v2780 = vsub.s32 %v2777, %v2779
        %v2781 = vrot.slane %v2774, %v2780
        %v2783 = vunpack.c.l.s4 1966171168
        %v2784 = vunpack.c.0.s8 %v2783
        %v2785 = vlaneseq
        %v2786 = vshrl.u32 %v2785, 7
        %v2787 = vsub.s32 %v2784, %v2786
        %v2788 = vrot.slane %v2781, %v2787
        %v2789 = vcombine.high %v2788, %v2788
        %v2791 = vld [vmem:[#allocation5 + $0x1] sm:$0x1]
        %v2792 = vsel %vm2447, %v2789, %v2791
        %2793 = vst [vmem:[#allocation5 + $0x1] sm:$0x1] %v2792
        %v2794 = vld [vmem:[#allocation3] sm:$0x40]
        %v2796 = vcombine.high %v2794, %v2794
        %v2798 = vunpack.c.l.s4 1966171168
        %v2799 = vunpack.c.0.s8 %v2798
        %v2800 = vlaneseq
        %v2801 = vshrl.u32 %v2800, 7
        %v2802 = vsub.s32 %v2799, %v2801
        %v2803 = vrot.slane %v2796, %v2802
        %v2805 = vunpack.c.l.s4 1966171168
        %v2806 = vunpack.c.0.s8 %v2805
        %v2807 = vlaneseq
        %v2808 = vshrl.u32 %v2807, 7
        %v2809 = vsub.s32 %v2806, %v2808
        %v2810 = vrot.slane %v2803, %v2809
        %v2811 = vcombine.high %v2810, %v2810
        %v2813 = vshrl.u32 %v2811, 16
        %v2815 = vrot.slane %v2813, 7
        %v2816 = vrot.slane %v2815, 1
        %2817 = vrot.lane.b32.xlu0 %v2816, 32
        %v2818 = vpop.permute.xlu0 %2817
        %v2820 = vld [vmem:[#allocation5 + $0x1] sm:$0x1]
        %v2821 = vsel %vm2476, %v2818, %v2820
        %2822 = vst [vmem:[#allocation5 + $0x1] sm:$0x1] %v2821
        %v2823 = vld [vmem:[#allocation3] sm:$0x80]
        %v2825 = vcombine.high %v2823, %v2823
        %v2827 = vunpack.c.l.s4 1966171168
        %v2828 = vunpack.c.0.s8 %v2827
        %v2829 = vlaneseq
        %v2830 = vshrl.u32 %v2829, 7
        %v2831 = vsub.s32 %v2828, %v2830
        %v2832 = vrot.slane %v2825, %v2831
        %v2833 = vcombine.high %v2832, %v2832
        %v2835 = vunpack.c.l.s4 1966171168
        %v2836 = vunpack.c.0.s8 %v2835
        %v2837 = vlaneseq
        %v2838 = vshrl.u32 %v2837, 7
        %v2839 = vsub.s32 %v2836, %v2838
        %v2840 = vrot.slane %v2833, %v2839
        %v2841 = vcombine.high %v2840, %v2840
        %2842 = vrot.lane.b32.xlu0 %v2841, 64
        %v2843 = vpop.permute.xlu0 %2842
        %v2845 = vld [vmem:[#allocation5 + $0x1] sm:$0x1]
        %v2846 = vsel %vm2501, %v2843, %v2845
        %2847 = vst [vmem:[#allocation5 + $0x1] sm:$0x1] %v2846
        %v2848 = vld [vmem:[#allocation3] sm:$0x80]
        %v2850 = vcombine.high %v2848, %v2848
        %v2852 = vunpack.c.l.s4 1966171168
        %v2853 = vunpack.c.0.s8 %v2852
        %v2854 = vlaneseq
        %v2855 = vshrl.u32 %v2854, 7
        %v2856 = vsub.s32 %v2853, %v2855
        %v2857 = vrot.slane %v2850, %v2856
        %v2858 = vcombine.high %v2857, %v2857
        %v2860 = vunpack.c.l.s4 1966171168
        %v2861 = vunpack.c.0.s8 %v2860
        %v2862 = vlaneseq
        %v2863 = vshrl.u32 %v2862, 7
        %v2864 = vsub.s32 %v2861, %v2863
        %v2865 = vrot.slane %v2858, %v2864
        %v2866 = vcombine.high %v2865, %v2865
        %v2868 = vshrl.u32 %v2866, 16
        %v2870 = vrot.slane %v2868, 7
        %v2871 = vrot.slane %v2870, 1
        %2872 = vrot.lane.b32.xlu0 %v2871, 96
        %v2873 = vpop.permute.xlu0 %2872
        %v2875 = vld [vmem:[#allocation5 + $0x1] sm:$0x1]
        %v2876 = vsel %vm2531, %v2873, %v2875
        %2877 = vst [vmem:[#allocation5 + $0x1] sm:$0x1] %v2876
        %v2878 = vld [vmem:[#allocation5] sm:$0x3]
        %s2879 = scalar_lea.vmem %s9, 128
        %v2880 = vld [vmem:[%s2879] sm:$0xf]
        %v2881 = vld [vmem:[%s2879 + $0x4] sm:$0xf]
        %v2882 = vld [vmem:[%s2879 + $0x8] sm:$0xf]
        %v2883 = vld [vmem:[%s2879 + $0xc] sm:$0xf]
        %v2884 = vld [vmem:[%s2879 + $0x10] sm:$0xf]
        %v2885 = vld [vmem:[%s2879 + $0x14] sm:$0xf]
        %v2886 = vld [vmem:[%s2879 + $0x18] sm:$0xf]
        %v2887 = vld [vmem:[%s2879 + $0x1c] sm:$0xf]
        %v2888 = vld [vmem:[%s2879 + $0x20] sm:$0xf]
        %v2889 = vld [vmem:[%s2879 + $0x24] sm:$0xf]
        %v2890 = vld [vmem:[%s2879 + $0x28] sm:$0xf]
        %v2891 = vld [vmem:[%s2879 + $0x2c] sm:$0xf]
        %v2892 = vld [vmem:[%s2879 + $0x30] sm:$0xf]
        %v2893 = vld [vmem:[%s2879 + $0x34] sm:$0xf]
        %v2894 = vld [vmem:[%s2879 + $0x38] sm:$0xf]
        %v2895 = vld [vmem:[%s2879 + $0x3c] sm:$0xf]
        %v2896 = vld [vmem:[%s2879 + $0x40] sm:$0xf]
        %v2897 = vld [vmem:[%s2879 + $0x44] sm:$0xf]
        %v2898 = vld [vmem:[%s2879 + $0x48] sm:$0xf]
        %v2899 = vld [vmem:[%s2879 + $0x4c] sm:$0xf]
        %v2900 = vld [vmem:[%s2879 + $0x50] sm:$0xf]
        %v2901 = vld [vmem:[%s2879 + $0x54] sm:$0xf]
        %v2902 = vld [vmem:[%s2879 + $0x58] sm:$0xf]
        %v2903 = vld [vmem:[%s2879 + $0x5c] sm:$0xf]
        %v2904 = vld [vmem:[%s2879 + $0x60] sm:$0xf]
        %v2905 = vld [vmem:[%s2879 + $0x64] sm:$0xf]
        %v2906 = vld [vmem:[%s2879 + $0x68] sm:$0xf]
        %v2907 = vld [vmem:[%s2879 + $0x6c] sm:$0xf]
        %v2908 = vld [vmem:[%s2879 + $0x70] sm:$0xf]
        %v2909 = vld [vmem:[%s2879 + $0x74] sm:$0xf]
        %v2910 = vld [vmem:[%s2879 + $0x78] sm:$0xf]
        %v2911 = vld [vmem:[%s2879 + $0x7c] sm:$0xf]
        %v2914 = vunpack.c.l.s4 1966171168
        %v2915 = vunpack.c.0.s8 %v2914
        %v2916 = vlaneseq
        %v2917 = vshrl.u32 %v2916, 7
        %v2918 = vsub.s32 %v2915, %v2917
        %v2919 = vrot.slane %v2878, %v2918
        %v2920 = vcombine.high %v2919, %v2919
        %v2922 = vunpack.c.l.s4 1966171168
        %v2923 = vunpack.c.0.s8 %v2922
        %v2924 = vlaneseq
        %v2925 = vshrl.u32 %v2924, 7
        %v2926 = vsub.s32 %v2923, %v2925
        %v2927 = vrot.slane %v2919, %v2926
        %v2929 = vunpack.c.l.s4 1966171168
        %v2930 = vunpack.c.0.s8 %v2929
        %v2931 = vlaneseq
        %v2932 = vshrl.u32 %v2931, 7
        %v2933 = vsub.s32 %v2930, %v2932
        %v2934 = vrot.slane %v2920, %v2933
        %v2969 = vunpack.c.l.b16 %v2880
        %v2970 = vunpack.c.l.b16 %v2881
        %v2971 = vunpack.c.l.b16 %v2882
        %v2972 = vunpack.c.l.b16 %v2883
        %v2973 = vunpack.c.l.b16 %v2884
        %v2974 = vunpack.c.l.b16 %v2885
        %v2975 = vunpack.c.l.b16 %v2886
        %v2976 = vunpack.c.l.b16 %v2887
        %v2977 = vunpack.c.l.b16 %v2888
        %v2978 = vunpack.c.l.b16 %v2889
        %v2979 = vunpack.c.l.b16 %v2890
        %v2980 = vunpack.c.l.b16 %v2891
        %v2981 = vunpack.c.l.b16 %v2892
        %v2982 = vunpack.c.l.b16 %v2893
        %v2983 = vunpack.c.l.b16 %v2894
        %v2984 = vunpack.c.l.b16 %v2895
        %v2985 = vunpack.c.l.b16 %v2896
        %v2986 = vunpack.c.l.b16 %v2897
        %v2987 = vunpack.c.l.b16 %v2898
        %v2988 = vunpack.c.l.b16 %v2899
        %v2989 = vunpack.c.l.b16 %v2900
        %v2990 = vunpack.c.l.b16 %v2901
        %v2991 = vunpack.c.l.b16 %v2902
        %v2992 = vunpack.c.l.b16 %v2903
        %v2993 = vunpack.c.l.b16 %v2904
        %v2994 = vunpack.c.l.b16 %v2905
        %v2995 = vunpack.c.l.b16 %v2906
        %v2996 = vunpack.c.l.b16 %v2907
        %v2997 = vunpack.c.l.b16 %v2908
        %v2998 = vunpack.c.l.b16 %v2909
        %v2999 = vunpack.c.l.b16 %v2910
        %v3000 = vunpack.c.l.b16 %v2911
        %v3001 = vpack.c.b16 %v2970, %v2969
        %v3002 = vpack.c.b16 %v2972, %v2971
        %v3003 = vpack.c.b16 %v2974, %v2973
        %v3004 = vpack.c.b16 %v2976, %v2975
        %v3005 = vpack.c.b16 %v2978, %v2977
        %v3006 = vpack.c.b16 %v2980, %v2979
        %v3007 = vpack.c.b16 %v2982, %v2981
        %v3008 = vpack.c.b16 %v2984, %v2983
        %v3009 = vpack.c.b16 %v2986, %v2985
        %v3010 = vpack.c.b16 %v2988, %v2987
        %v3011 = vpack.c.b16 %v2990, %v2989
        %v3012 = vpack.c.b16 %v2992, %v2991
        %v3013 = vpack.c.b16 %v2994, %v2993
        %v3014 = vpack.c.b16 %v2996, %v2995
        %v3015 = vpack.c.b16 %v2998, %v2997
        %v3016 = vpack.c.b16 %v3000, %v2999
        %3033 = vmatprep.subr.bf16.mxu0 0
        %3034 = vmatpush1.bf16.msra.mxu0 %v3001
        %3035 = vmatprep.subr.bf16.mxu0 0
        %3036 = vmatpush1.bf16.msra.mxu0 %v3002
        %3037 = vmatprep.subr.bf16.mxu0 0
        %3038 = vmatpush1.bf16.msra.mxu0 %v3003
        %3039 = vmatprep.subr.bf16.mxu0 0
        %3040 = vmatpush1.bf16.msra.mxu0 %v3004
        %3041 = vmatprep.subr.bf16.mxu0 0
        %3042 = vmatpush1.bf16.msra.mxu0 %v3005
        %3043 = vmatprep.subr.bf16.mxu0 0
        %3044 = vmatpush1.bf16.msra.mxu0 %v3006
        %3045 = vmatprep.subr.bf16.mxu0 0
        %3046 = vmatpush1.bf16.msra.mxu0 %v3007
        %3047 = vmatprep.subr.bf16.mxu0 0
        %3048 = vmatpush1.bf16.msra.mxu0 %v3008
        %3049 = vmatprep.subr.bf16.mxu0 0
        %3050 = vmatpush1.bf16.msra.mxu0 %v3009
        %3051 = vmatprep.subr.bf16.mxu0 0
        %3052 = vmatpush1.bf16.msra.mxu0 %v3010
        %3053 = vmatprep.subr.bf16.mxu0 0
        %3054 = vmatpush1.bf16.msra.mxu0 %v3011
        %3055 = vmatprep.subr.bf16.mxu0 0
        %3056 = vmatpush1.bf16.msra.mxu0 %v3012
        %3057 = vmatprep.subr.bf16.mxu0 0
        %3058 = vmatpush1.bf16.msra.mxu0 %v3013
        %3059 = vmatprep.subr.bf16.mxu0 0
        %3060 = vmatpush1.bf16.msra.mxu0 %v3014
        %3061 = vmatprep.subr.bf16.mxu0 0
        %3062 = vmatpush1.bf16.msra.mxu0 %v3015
        %3063 = vmatprep.subr.bf16.mxu0 0
        %3064 = vmatpush1.bf16.msra.mxu0 %v3016
        %3065 = vmatprep.mubr.bf16.mxu0 %v2934
        %3066 = vmatmul.mubr.bf16.gmra.mrb[0].mxu0 %v2927
        %v3067 = vpop.f32.mrb[0].mxu0
        %v3068 = vadd.f32 0.0, %v3067
        %v3069 = vpop.f32.mrb[0].mxu0
        %v3070 = vpop.f32.mrb[0].mxu0
        %v3071 = vpop.f32.mrb[0].mxu0
        %3072 = vdwg.mxu0
        %v3075 = vunpack.c.l.s4 1966171168
        %v3076 = vunpack.c.0.s8 %v3075
        %v3077 = vlaneseq
        %v3078 = vshrl.u32 %v3077, 7
        %v3079 = vsub.s32 %v3076, %v3078
        %v3080 = vrot.slane %v2637, %v3079
        %v3081 = vcombine.high %v3080, %v3080
        %v3083 = vunpack.c.l.s4 1966171168
        %v3084 = vunpack.c.0.s8 %v3083
        %v3085 = vlaneseq
        %v3086 = vshrl.u32 %v3085, 7
        %v3087 = vsub.s32 %v3084, %v3086
        %v3088 = vrot.slane %v3080, %v3087
        %v3090 = vunpack.c.l.s4 1966171168
        %v3091 = vunpack.c.0.s8 %v3090
        %v3092 = vlaneseq
        %v3093 = vshrl.u32 %v3092, 7
        %v3094 = vsub.s32 %v3091, %v3093
        %v3095 = vrot.slane %v3081, %v3094
        %v3130 = vunpack.c.l.b16 %v2638
        %v3131 = vunpack.c.l.b16 %v2639
        %v3132 = vunpack.c.l.b16 %v2640
        %v3133 = vunpack.c.l.b16 %v2641
        %v3134 = vunpack.c.l.b16 %v2642
        %v3135 = vunpack.c.l.b16 %v2643
        %v3136 = vunpack.c.l.b16 %v2644
        %v3137 = vunpack.c.l.b16 %v2645
        %v3138 = vunpack.c.l.b16 %v2646
        %v3139 = vunpack.c.l.b16 %v2647
        %v3140 = vunpack.c.l.b16 %v2648
        %v3141 = vunpack.c.l.b16 %v2649
        %v3142 = vunpack.c.l.b16 %v2650
        %v3143 = vunpack.c.l.b16 %v2651
        %v3144 = vunpack.c.l.b16 %v2652
        %v3145 = vunpack.c.l.b16 %v2653
        %v3146 = vunpack.c.l.b16 %v2654
        %v3147 = vunpack.c.l.b16 %v2655
        %v3148 = vunpack.c.l.b16 %v2656
        %v3149 = vunpack.c.l.b16 %v2657
        %v3150 = vunpack.c.l.b16 %v2658
        %v3151 = vunpack.c.l.b16 %v2659
        %v3152 = vunpack.c.l.b16 %v2660
        %v3153 = vunpack.c.l.b16 %v2661
        %v3154 = vunpack.c.l.b16 %v2662
        %v3155 = vunpack.c.l.b16 %v2663
        %v3156 = vunpack.c.l.b16 %v2664
        %v3157 = vunpack.c.l.b16 %v2665
        %v3158 = vunpack.c.l.b16 %v2666
        %v3159 = vunpack.c.l.b16 %v2667
        %v3160 = vunpack.c.l.b16 %v2668
        %v3161 = vunpack.c.l.b16 %v2669
        %v3162 = vpack.c.b16 %v3131, %v3130
        %v3163 = vpack.c.b16 %v3133, %v3132
        %v3164 = vpack.c.b16 %v3135, %v3134
        %v3165 = vpack.c.b16 %v3137, %v3136
        %v3166 = vpack.c.b16 %v3139, %v3138
        %v3167 = vpack.c.b16 %v3141, %v3140
        %v3168 = vpack.c.b16 %v3143, %v3142
        %v3169 = vpack.c.b16 %v3145, %v3144
        %v3170 = vpack.c.b16 %v3147, %v3146
        %v3171 = vpack.c.b16 %v3149, %v3148
        %v3172 = vpack.c.b16 %v3151, %v3150
        %v3173 = vpack.c.b16 %v3153, %v3152
        %v3174 = vpack.c.b16 %v3155, %v3154
        %v3175 = vpack.c.b16 %v3157, %v3156
        %v3176 = vpack.c.b16 %v3159, %v3158
        %v3177 = vpack.c.b16 %v3161, %v3160
        %3194 = vmatprep.subr.bf16.mxu0 0
        %3195 = vmatpush1.bf16.msra.mxu0 %v3162
        %3196 = vmatprep.subr.bf16.mxu0 0
        %3197 = vmatpush1.bf16.msra.mxu0 %v3163
        %3198 = vmatprep.subr.bf16.mxu0 0
        %3199 = vmatpush1.bf16.msra.mxu0 %v3164
        %3200 = vmatprep.subr.bf16.mxu0 0
        %3201 = vmatpush1.bf16.msra.mxu0 %v3165
        %3202 = vmatprep.subr.bf16.mxu0 0
        %3203 = vmatpush1.bf16.msra.mxu0 %v3166
        %3204 = vmatprep.subr.bf16.mxu0 0
        %3205 = vmatpush1.bf16.msra.mxu0 %v3167
        %3206 = vmatprep.subr.bf16.mxu0 0
        %3207 = vmatpush1.bf16.msra.mxu0 %v3168
        %3208 = vmatprep.subr.bf16.mxu0 0
        %3209 = vmatpush1.bf16.msra.mxu0 %v3169
        %3210 = vmatprep.subr.bf16.mxu0 0
        %3211 = vmatpush1.bf16.msra.mxu0 %v3170
        %3212 = vmatprep.subr.bf16.mxu0 0
        %3213 = vmatpush1.bf16.msra.mxu0 %v3171
        %3214 = vmatprep.subr.bf16.mxu0 0
        %3215 = vmatpush1.bf16.msra.mxu0 %v3172
        %3216 = vmatprep.subr.bf16.mxu0 0
        %3217 = vmatpush1.bf16.msra.mxu0 %v3173
        %3218 = vmatprep.subr.bf16.mxu0 0
        %3219 = vmatpush1.bf16.msra.mxu0 %v3174
        %3220 = vmatprep.subr.bf16.mxu0 0
        %3221 = vmatpush1.bf16.msra.mxu0 %v3175
        %3222 = vmatprep.subr.bf16.mxu0 0
        %3223 = vmatpush1.bf16.msra.mxu0 %v3176
        %3224 = vmatprep.subr.bf16.mxu0 0
        %3225 = vmatpush1.bf16.msra.mxu0 %v3177
        %3226 = vmatprep.mubr.bf16.mxu0 %v3095
        %3227 = vmatmul.mubr.bf16.gmra.mrb[0].mxu0 %v3088
        %v3228 = vpop.f32.mrb[0].mxu0
        %v3229 = vadd.f32 %v3068, %v3228
        %v3230 = vpop.f32.mrb[0].mxu0
        %v3231 = vpop.f32.mrb[0].mxu0
        %v3232 = vpop.f32.mrb[0].mxu0
        %3233 = vdwg.mxu0
        %v3234 = vld [vmem:[#allocation3 + $0x8] sm:$0x1]
        %v3235 = vld [vmem:[#allocation5] sm:$0x1]
        %v3236 = vsel %vm2447, %v3234, %v3235
        %3237 = vst [vmem:[#allocation5] sm:$0x1] %v3236
        %v3238 = vld [vmem:[#allocation3 + $0x8] sm:$0x1]
        %v3241 = vunpack.c.l.s4 1966171168
        %v3242 = vunpack.c.0.s8 %v3241
        %v3243 = vlaneseq
        %v3244 = vshrl.u32 %v3243, 7
        %v3245 = vsub.s32 %v3242, %v3244
        %v3246 = vrot.slane %v3238, %v3245
        %v3248 = vunpack.c.l.s4 1966171168
        %v3249 = vunpack.c.0.s8 %v3248
        %v3250 = vlaneseq
        %v3251 = vshrl.u32 %v3250, 7
        %v3252 = vsub.s32 %v3249, %v3251
        %v3253 = vrot.slane %v3246, %v3252
        %v3255 = vshrl.u32 %v3253, 16
        %v3257 = vrot.slane %v3255, 7
        %v3258 = vrot.slane %v3257, 1
        %3259 = vrot.lane.b32.xlu0 %v3258, 32
        %v3260 = vpop.permute.xlu0 %3259
        %v3262 = vld [vmem:[#allocation5] sm:$0x1]
        %v3263 = vsel %vm2476, %v3260, %v3262
        %3264 = vst [vmem:[#allocation5] sm:$0x1] %v3263
        %v3265 = vld [vmem:[#allocation3 + $0x8] sm:$0x2]
        %v3268 = vunpack.c.l.s4 1966171168
        %v3269 = vunpack.c.0.s8 %v3268
        %v3270 = vlaneseq
        %v3271 = vshrl.u32 %v3270, 7
        %v3272 = vsub.s32 %v3269, %v3271
        %v3273 = vrot.slane %v3265, %v3272
        %v3274 = vcombine.high %v3273, %v3273
        %v3276 = vunpack.c.l.s4 1966171168
        %v3277 = vunpack.c.0.s8 %v3276
        %v3278 = vlaneseq
        %v3279 = vshrl.u32 %v3278, 7
        %v3280 = vsub.s32 %v3277, %v3279
        %v3281 = vrot.slane %v3274, %v3280
        %3282 = vrot.lane.b32.xlu0 %v3281, 64
        %v3283 = vpop.permute.xlu0 %3282
        %v3285 = vld [vmem:[#allocation5] sm:$0x1]
        %v3286 = vsel %vm2501, %v3283, %v3285
        %3287 = vst [vmem:[#allocation5] sm:$0x1] %v3286
        %v3288 = vld [vmem:[#allocation3 + $0x8] sm:$0x2]
        %v3291 = vunpack.c.l.s4 1966171168
        %v3292 = vunpack.c.0.s8 %v3291
        %v3293 = vlaneseq
        %v3294 = vshrl.u32 %v3293, 7
        %v3295 = vsub.s32 %v3292, %v3294
        %v3296 = vrot.slane %v3288, %v3295
        %v3297 = vcombine.high %v3296, %v3296
        %v3299 = vunpack.c.l.s4 1966171168
        %v3300 = vunpack.c.0.s8 %v3299
        %v3301 = vlaneseq
        %v3302 = vshrl.u32 %v3301, 7
        %v3303 = vsub.s32 %v3300, %v3302
        %v3304 = vrot.slane %v3297, %v3303
        %v3306 = vshrl.u32 %v3304, 16
        %v3308 = vrot.slane %v3306, 7
        %v3309 = vrot.slane %v3308, 1
        %3310 = vrot.lane.b32.xlu0 %v3309, 96
        %v3311 = vpop.permute.xlu0 %3310
        %v3313 = vld [vmem:[#allocation5] sm:$0x1]
        %v3314 = vsel %vm2531, %v3311, %v3313
        %3315 = vst [vmem:[#allocation5] sm:$0x1] %v3314
        %v3316 = vld [vmem:[#allocation3 + $0x8] sm:$0x4]
        %v3319 = vunpack.c.l.s4 1966171168
        %v3320 = vunpack.c.0.s8 %v3319
        %v3321 = vlaneseq
        %v3322 = vshrl.u32 %v3321, 7
        %v3323 = vsub.s32 %v3320, %v3322
        %v3324 = vrot.slane %v3316, %v3323
        %v3326 = vunpack.c.l.s4 1966171168
        %v3327 = vunpack.c.0.s8 %v3326
        %v3328 = vlaneseq
        %v3329 = vshrl.u32 %v3328, 7
        %v3330 = vsub.s32 %v3327, %v3329
        %v3331 = vrot.slane %v3324, %v3330
        %v3332 = vcombine.high %v3331, %v3331
        %v3334 = vld [vmem:[#allocation5 + $0x1] sm:$0x1]
        %v3335 = vsel %vm2447, %v3332, %v3334
        %3336 = vst [vmem:[#allocation5 + $0x1] sm:$0x1] %v3335
        %v3337 = vld [vmem:[#allocation3 + $0x8] sm:$0x4]
        %v3340 = vunpack.c.l.s4 1966171168
        %v3341 = vunpack.c.0.s8 %v3340
        %v3342 = vlaneseq
        %v3343 = vshrl.u32 %v3342, 7
        %v3344 = vsub.s32 %v3341, %v3343
        %v3345 = vrot.slane %v3337, %v3344
        %v3347 = vunpack.c.l.s4 1966171168
        %v3348 = vunpack.c.0.s8 %v3347
        %v3349 = vlaneseq
        %v3350 = vshrl.u32 %v3349, 7
        %v3351 = vsub.s32 %v3348, %v3350
        %v3352 = vrot.slane %v3345, %v3351
        %v3353 = vcombine.high %v3352, %v3352
        %v3355 = vshrl.u32 %v3353, 16
        %v3357 = vrot.slane %v3355, 7
        %v3358 = vrot.slane %v3357, 1
        %3359 = vrot.lane.b32.xlu0 %v3358, 32
        %v3360 = vpop.permute.xlu0 %3359
        %v3362 = vld [vmem:[#allocation5 + $0x1] sm:$0x1]
        %v3363 = vsel %vm2476, %v3360, %v3362
        %3364 = vst [vmem:[#allocation5 + $0x1] sm:$0x1] %v3363
        %v3365 = vld [vmem:[#allocation3 + $0x8] sm:$0x8]
        %v3368 = vunpack.c.l.s4 1966171168
        %v3369 = vunpack.c.0.s8 %v3368
        %v3370 = vlaneseq
        %v3371 = vshrl.u32 %v3370, 7
        %v3372 = vsub.s32 %v3369, %v3371
        %v3373 = vrot.slane %v3365, %v3372
        %v3374 = vcombine.high %v3373, %v3373
        %v3376 = vunpack.c.l.s4 1966171168
        %v3377 = vunpack.c.0.s8 %v3376
        %v3378 = vlaneseq
        %v3379 = vshrl.u32 %v3378, 7
        %v3380 = vsub.s32 %v3377, %v3379
        %v3381 = vrot.slane %v3374, %v3380
        %v3382 = vcombine.high %v3381, %v3381
        %3383 = vrot.lane.b32.xlu0 %v3382, 64
        %v3384 = vpop.permute.xlu0 %3383
        %v3386 = vld [vmem:[#allocation5 + $0x1] sm:$0x1]
        %v3387 = vsel %vm2501, %v3384, %v3386
        %3388 = vst [vmem:[#allocation5 + $0x1] sm:$0x1] %v3387
        %v3389 = vld [vmem:[#allocation3 + $0x8] sm:$0x8]
        %v3392 = vunpack.c.l.s4 1966171168
        %v3393 = vunpack.c.0.s8 %v3392
        %v3394 = vlaneseq
        %v3395 = vshrl.u32 %v3394, 7
        %v3396 = vsub.s32 %v3393, %v3395
        %v3397 = vrot.slane %v3389, %v3396
        %v3398 = vcombine.high %v3397, %v3397
        %v3400 = vunpack.c.l.s4 1966171168
        %v3401 = vunpack.c.0.s8 %v3400
        %v3402 = vlaneseq
        %v3403 = vshrl.u32 %v3402, 7
        %v3404 = vsub.s32 %v3401, %v3403
        %v3405 = vrot.slane %v3398, %v3404
        %v3406 = vcombine.high %v3405, %v3405
        %v3408 = vshrl.u32 %v3406, 16
        %v3410 = vrot.slane %v3408, 7
        %v3411 = vrot.slane %v3410, 1
        %3412 = vrot.lane.b32.xlu0 %v3411, 96
        %v3413 = vpop.permute.xlu0 %3412
        %v3415 = vld [vmem:[#allocation5 + $0x1] sm:$0x1]
        %v3416 = vsel %vm2531, %v3413, %v3415
        %3417 = vst [vmem:[#allocation5 + $0x1] sm:$0x1] %v3416
        %v3418 = vld [vmem:[#allocation5] sm:$0x3]
        %s3419 = scalar_lea.vmem %s9, 256
        %v3420 = vld [vmem:[%s3419] sm:$0xf]
        %v3421 = vld [vmem:[%s3419 + $0x4] sm:$0xf]
        %v3422 = vld [vmem:[%s3419 + $0x8] sm:$0xf]
        %v3423 = vld [vmem:[%s3419 + $0xc] sm:$0xf]
        %v3424 = vld [vmem:[%s3419 + $0x10] sm:$0xf]
        %v3425 = vld [vmem:[%s3419 + $0x14] sm:$0xf]
        %v3426 = vld [vmem:[%s3419 + $0x18] sm:$0xf]
        %v3427 = vld [vmem:[%s3419 + $0x1c] sm:$0xf]
        %v3428 = vld [vmem:[%s3419 + $0x20] sm:$0xf]
        %v3429 = vld [vmem:[%s3419 + $0x24] sm:$0xf]
        %v3430 = vld [vmem:[%s3419 + $0x28] sm:$0xf]
        %v3431 = vld [vmem:[%s3419 + $0x2c] sm:$0xf]
        %v3432 = vld [vmem:[%s3419 + $0x30] sm:$0xf]
        %v3433 = vld [vmem:[%s3419 + $0x34] sm:$0xf]
        %v3434 = vld [vmem:[%s3419 + $0x38] sm:$0xf]
        %v3435 = vld [vmem:[%s3419 + $0x3c] sm:$0xf]
        %v3436 = vld [vmem:[%s3419 + $0x40] sm:$0xf]
        %v3437 = vld [vmem:[%s3419 + $0x44] sm:$0xf]
        %v3438 = vld [vmem:[%s3419 + $0x48] sm:$0xf]
        %v3439 = vld [vmem:[%s3419 + $0x4c] sm:$0xf]
        %v3440 = vld [vmem:[%s3419 + $0x50] sm:$0xf]
        %v3441 = vld [vmem:[%s3419 + $0x54] sm:$0xf]
        %v3442 = vld [vmem:[%s3419 + $0x58] sm:$0xf]
        %v3443 = vld [vmem:[%s3419 + $0x5c] sm:$0xf]
        %v3444 = vld [vmem:[%s3419 + $0x60] sm:$0xf]
        %v3445 = vld [vmem:[%s3419 + $0x64] sm:$0xf]
        %v3446 = vld [vmem:[%s3419 + $0x68] sm:$0xf]
        %v3447 = vld [vmem:[%s3419 + $0x6c] sm:$0xf]
        %v3448 = vld [vmem:[%s3419 + $0x70] sm:$0xf]
        %v3449 = vld [vmem:[%s3419 + $0x74] sm:$0xf]
        %v3450 = vld [vmem:[%s3419 + $0x78] sm:$0xf]
        %v3451 = vld [vmem:[%s3419 + $0x7c] sm:$0xf]
        %v3454 = vunpack.c.l.s4 1966171168
        %v3455 = vunpack.c.0.s8 %v3454
        %v3456 = vlaneseq
        %v3457 = vshrl.u32 %v3456, 7
        %v3458 = vsub.s32 %v3455, %v3457
        %v3459 = vrot.slane %v3418, %v3458
        %v3460 = vcombine.high %v3459, %v3459
        %v3462 = vunpack.c.l.s4 1966171168
        %v3463 = vunpack.c.0.s8 %v3462
        %v3464 = vlaneseq
        %v3465 = vshrl.u32 %v3464, 7
        %v3466 = vsub.s32 %v3463, %v3465
        %v3467 = vrot.slane %v3459, %v3466
        %v3469 = vunpack.c.l.s4 1966171168
        %v3470 = vunpack.c.0.s8 %v3469
        %v3471 = vlaneseq
        %v3472 = vshrl.u32 %v3471, 7
        %v3473 = vsub.s32 %v3470, %v3472
        %v3474 = vrot.slane %v3460, %v3473
        %v3509 = vunpack.c.l.b16 %v3420
        %v3510 = vunpack.c.l.b16 %v3421
        %v3511 = vunpack.c.l.b16 %v3422
        %v3512 = vunpack.c.l.b16 %v3423
        %v3513 = vunpack.c.l.b16 %v3424
        %v3514 = vunpack.c.l.b16 %v3425
        %v3515 = vunpack.c.l.b16 %v3426
        %v3516 = vunpack.c.l.b16 %v3427
        %v3517 = vunpack.c.l.b16 %v3428
        %v3518 = vunpack.c.l.b16 %v3429
        %v3519 = vunpack.c.l.b16 %v3430
        %v3520 = vunpack.c.l.b16 %v3431
        %v3521 = vunpack.c.l.b16 %v3432
        %v3522 = vunpack.c.l.b16 %v3433
        %v3523 = vunpack.c.l.b16 %v3434
        %v3524 = vunpack.c.l.b16 %v3435
        %v3525 = vunpack.c.l.b16 %v3436
        %v3526 = vunpack.c.l.b16 %v3437
        %v3527 = vunpack.c.l.b16 %v3438
        %v3528 = vunpack.c.l.b16 %v3439
        %v3529 = vunpack.c.l.b16 %v3440
        %v3530 = vunpack.c.l.b16 %v3441
        %v3531 = vunpack.c.l.b16 %v3442
        %v3532 = vunpack.c.l.b16 %v3443
        %v3533 = vunpack.c.l.b16 %v3444
        %v3534 = vunpack.c.l.b16 %v3445
        %v3535 = vunpack.c.l.b16 %v3446
        %v3536 = vunpack.c.l.b16 %v3447
        %v3537 = vunpack.c.l.b16 %v3448
        %v3538 = vunpack.c.l.b16 %v3449
        %v3539 = vunpack.c.l.b16 %v3450
        %v3540 = vunpack.c.l.b16 %v3451
        %v3541 = vpack.c.b16 %v3510, %v3509
        %v3542 = vpack.c.b16 %v3512, %v3511
        %v3543 = vpack.c.b16 %v3514, %v3513
        %v3544 = vpack.c.b16 %v3516, %v3515
        %v3545 = vpack.c.b16 %v3518, %v3517
        %v3546 = vpack.c.b16 %v3520, %v3519
        %v3547 = vpack.c.b16 %v3522, %v3521
        %v3548 = vpack.c.b16 %v3524, %v3523
        %v3549 = vpack.c.b16 %v3526, %v3525
        %v3550 = vpack.c.b16 %v3528, %v3527
        %v3551 = vpack.c.b16 %v3530, %v3529
        %v3552 = vpack.c.b16 %v3532, %v3531
        %v3553 = vpack.c.b16 %v3534, %v3533
        %v3554 = vpack.c.b16 %v3536, %v3535
        %v3555 = vpack.c.b16 %v3538, %v3537
        %v3556 = vpack.c.b16 %v3540, %v3539
        %3573 = vmatprep.subr.bf16.mxu0 0
        %3574 = vmatpush1.bf16.msra.mxu0 %v3541
        %3575 = vmatprep.subr.bf16.mxu0 0
        %3576 = vmatpush1.bf16.msra.mxu0 %v3542
        %3577 = vmatprep.subr.bf16.mxu0 0
        %3578 = vmatpush1.bf16.msra.mxu0 %v3543
        %3579 = vmatprep.subr.bf16.mxu0 0
        %3580 = vmatpush1.bf16.msra.mxu0 %v3544
        %3581 = vmatprep.subr.bf16.mxu0 0
        %3582 = vmatpush1.bf16.msra.mxu0 %v3545
        %3583 = vmatprep.subr.bf16.mxu0 0
        %3584 = vmatpush1.bf16.msra.mxu0 %v3546
        %3585 = vmatprep.subr.bf16.mxu0 0
        %3586 = vmatpush1.bf16.msra.mxu0 %v3547
        %3587 = vmatprep.subr.bf16.mxu0 0
        %3588 = vmatpush1.bf16.msra.mxu0 %v3548
        %3589 = vmatprep.subr.bf16.mxu0 0
        %3590 = vmatpush1.bf16.msra.mxu0 %v3549
        %3591 = vmatprep.subr.bf16.mxu0 0
        %3592 = vmatpush1.bf16.msra.mxu0 %v3550
        %3593 = vmatprep.subr.bf16.mxu0 0
        %3594 = vmatpush1.bf16.msra.mxu0 %v3551
        %3595 = vmatprep.subr.bf16.mxu0 0
        %3596 = vmatpush1.bf16.msra.mxu0 %v3552
        %3597 = vmatprep.subr.bf16.mxu0 0
        %3598 = vmatpush1.bf16.msra.mxu0 %v3553
        %3599 = vmatprep.subr.bf16.mxu0 0
        %3600 = vmatpush1.bf16.msra.mxu0 %v3554
        %3601 = vmatprep.subr.bf16.mxu0 0
        %3602 = vmatpush1.bf16.msra.mxu0 %v3555
        %3603 = vmatprep.subr.bf16.mxu0 0
        %3604 = vmatpush1.bf16.msra.mxu0 %v3556
        %3605 = vmatprep.mubr.bf16.mxu0 %v3474
        %3606 = vmatmul.mubr.bf16.gmra.mrb[0].mxu0 %v3467
        %v3607 = vpop.f32.mrb[0].mxu0
        %v3608 = vadd.f32 0.0, %v3607
        %v3609 = vpop.f32.mrb[0].mxu0
        %v3610 = vpop.f32.mrb[0].mxu0
        %v3611 = vpop.f32.mrb[0].mxu0
        %3612 = vdwg.mxu0
        %v3613 = vadd.f32 %v3229, %v3608
        %v3614 = vld [vmem:[#allocation3 + $0x8] sm:$0x10]
        %v3616 = vcombine.high %v3614, %v3614
        %v3618 = vunpack.c.l.s4 1966171168
        %v3619 = vunpack.c.0.s8 %v3618
        %v3620 = vlaneseq
        %v3621 = vshrl.u32 %v3620, 7
        %v3622 = vsub.s32 %v3619, %v3621
        %v3623 = vrot.slane %v3616, %v3622
        %v3625 = vunpack.c.l.s4 1966171168
        %v3626 = vunpack.c.0.s8 %v3625
        %v3627 = vlaneseq
        %v3628 = vshrl.u32 %v3627, 7
        %v3629 = vsub.s32 %v3626, %v3628
        %v3630 = vrot.slane %v3623, %v3629
        %v3632 = vld [vmem:[#allocation5] sm:$0x1]
        %v3633 = vsel %vm2447, %v3630, %v3632
        %3634 = vst [vmem:[#allocation5] sm:$0x1] %v3633
        %v3635 = vld [vmem:[#allocation3 + $0x8] sm:$0x10]
        %v3637 = vcombine.high %v3635, %v3635
        %v3639 = vunpack.c.l.s4 1966171168
        %v3640 = vunpack.c.0.s8 %v3639
        %v3641 = vlaneseq
        %v3642 = vshrl.u32 %v3641, 7
        %v3643 = vsub.s32 %v3640, %v3642
        %v3644 = vrot.slane %v3637, %v3643
        %v3646 = vunpack.c.l.s4 1966171168
        %v3647 = vunpack.c.0.s8 %v3646
        %v3648 = vlaneseq
        %v3649 = vshrl.u32 %v3648, 7
        %v3650 = vsub.s32 %v3647, %v3649
        %v3651 = vrot.slane %v3644, %v3650
        %v3653 = vshrl.u32 %v3651, 16
        %v3655 = vrot.slane %v3653, 7
        %v3656 = vrot.slane %v3655, 1
        %3657 = vrot.lane.b32.xlu0 %v3656, 32
        %v3658 = vpop.permute.xlu0 %3657
        %v3660 = vld [vmem:[#allocation5] sm:$0x1]
        %v3661 = vsel %vm2476, %v3658, %v3660
        %3662 = vst [vmem:[#allocation5] sm:$0x1] %v3661
        %v3663 = vld [vmem:[#allocation3 + $0x8] sm:$0x20]
        %v3665 = vcombine.high %v3663, %v3663
        %v3667 = vunpack.c.l.s4 1966171168
        %v3668 = vunpack.c.0.s8 %v3667
        %v3669 = vlaneseq
        %v3670 = vshrl.u32 %v3669, 7
        %v3671 = vsub.s32 %v3668, %v3670
        %v3672 = vrot.slane %v3665, %v3671
        %v3673 = vcombine.high %v3672, %v3672
        %v3675 = vunpack.c.l.s4 1966171168
        %v3676 = vunpack.c.0.s8 %v3675
        %v3677 = vlaneseq
        %v3678 = vshrl.u32 %v3677, 7
        %v3679 = vsub.s32 %v3676, %v3678
        %v3680 = vrot.slane %v3673, %v3679
        %3681 = vrot.lane.b32.xlu0 %v3680, 64
        %v3682 = vpop.permute.xlu0 %3681
        %v3684 = vld [vmem:[#allocation5] sm:$0x1]
        %v3685 = vsel %vm2501, %v3682, %v3684
        %3686 = vst [vmem:[#allocation5] sm:$0x1] %v3685
        %v3687 = vld [vmem:[#allocation3 + $0x8] sm:$0x20]
        %v3689 = vcombine.high %v3687, %v3687
        %v3691 = vunpack.c.l.s4 1966171168
        %v3692 = vunpack.c.0.s8 %v3691
        %v3693 = vlaneseq
        %v3694 = vshrl.u32 %v3693, 7
        %v3695 = vsub.s32 %v3692, %v3694
        %v3696 = vrot.slane %v3689, %v3695
        %v3697 = vcombine.high %v3696, %v3696
        %v3699 = vunpack.c.l.s4 1966171168
        %v3700 = vunpack.c.0.s8 %v3699
        %v3701 = vlaneseq
        %v3702 = vshrl.u32 %v3701, 7
        %v3703 = vsub.s32 %v3700, %v3702
        %v3704 = vrot.slane %v3697, %v3703
        %v3706 = vshrl.u32 %v3704, 16
        %v3708 = vrot.slane %v3706, 7
        %v3709 = vrot.slane %v3708, 1
        %3710 = vrot.lane.b32.xlu0 %v3709, 96
        %v3711 = vpop.permute.xlu0 %3710
        %v3713 = vld [vmem:[#allocation5] sm:$0x1]
        %v3714 = vsel %vm2531, %v3711, %v3713
        %3715 = vst [vmem:[#allocation5] sm:$0x1] %v3714
        %v3716 = vld [vmem:[#allocation3 + $0x8] sm:$0x40]
        %v3718 = vcombine.high %v3716, %v3716
        %v3720 = vunpack.c.l.s4 1966171168
        %v3721 = vunpack.c.0.s8 %v3720
        %v3722 = vlaneseq
        %v3723 = vshrl.u32 %v3722, 7
        %v3724 = vsub.s32 %v3721, %v3723
        %v3725 = vrot.slane %v3718, %v3724
        %v3727 = vunpack.c.l.s4 1966171168
        %v3728 = vunpack.c.0.s8 %v3727
        %v3729 = vlaneseq
        %v3730 = vshrl.u32 %v3729, 7
        %v3731 = vsub.s32 %v3728, %v3730
        %v3732 = vrot.slane %v3725, %v3731
        %v3733 = vcombine.high %v3732, %v3732
        %v3735 = vld [vmem:[#allocation5 + $0x1] sm:$0x1]
        %v3736 = vsel %vm2447, %v3733, %v3735
        %3737 = vst [vmem:[#allocation5 + $0x1] sm:$0x1] %v3736
        %v3738 = vld [vmem:[#allocation3 + $0x8] sm:$0x40]
        %v3740 = vcombine.high %v3738, %v3738
        %v3742 = vunpack.c.l.s4 1966171168
        %v3743 = vunpack.c.0.s8 %v3742
        %v3744 = vlaneseq
        %v3745 = vshrl.u32 %v3744, 7
        %v3746 = vsub.s32 %v3743, %v3745
        %v3747 = vrot.slane %v3740, %v3746
        %v3749 = vunpack.c.l.s4 1966171168
        %v3750 = vunpack.c.0.s8 %v3749
        %v3751 = vlaneseq
        %v3752 = vshrl.u32 %v3751, 7
        %v3753 = vsub.s32 %v3750, %v3752
        %v3754 = vrot.slane %v3747, %v3753
        %v3755 = vcombine.high %v3754, %v3754
        %v3757 = vshrl.u32 %v3755, 16
        %v3759 = vrot.slane %v3757, 7
        %v3760 = vrot.slane %v3759, 1
        %3761 = vrot.lane.b32.xlu0 %v3760, 32
        %v3762 = vpop.permute.xlu0 %3761
        %v3764 = vld [vmem:[#allocation5 + $0x1] sm:$0x1]
        %v3765 = vsel %vm2476, %v3762, %v3764
        %3766 = vst [vmem:[#allocation5 + $0x1] sm:$0x1] %v3765
        %v3767 = vld [vmem:[#allocation3 + $0x8] sm:$0x80]
        %v3769 = vcombine.high %v3767, %v3767
        %v3771 = vunpack.c.l.s4 1966171168
        %v3772 = vunpack.c.0.s8 %v3771
        %v3773 = vlaneseq
        %v3774 = vshrl.u32 %v3773, 7
        %v3775 = vsub.s32 %v3772, %v3774
        %v3776 = vrot.slane %v3769, %v3775
        %v3777 = vcombine.high %v3776, %v3776
        %v3779 = vunpack.c.l.s4 1966171168
        %v3780 = vunpack.c.0.s8 %v3779
        %v3781 = vlaneseq
        %v3782 = vshrl.u32 %v3781, 7
        %v3783 = vsub.s32 %v3780, %v3782
        %v3784 = vrot.slane %v3777, %v3783
        %v3785 = vcombine.high %v3784, %v3784
        %3786 = vrot.lane.b32.xlu0 %v3785, 64
        %v3787 = vpop.permute.xlu0 %3786
        %v3789 = vld [vmem:[#allocation5 + $0x1] sm:$0x1]
        %v3790 = vsel %vm2501, %v3787, %v3789
        %3791 = vst [vmem:[#allocation5 + $0x1] sm:$0x1] %v3790
        %v3792 = vld [vmem:[#allocation3 + $0x8] sm:$0x80]
        %v3794 = vcombine.high %v3792, %v3792
        %v3796 = vunpack.c.l.s4 1966171168
        %v3797 = vunpack.c.0.s8 %v3796
        %v3798 = vlaneseq
        %v3799 = vshrl.u32 %v3798, 7
        %v3800 = vsub.s32 %v3797, %v3799
        %v3801 = vrot.slane %v3794, %v3800
        %v3802 = vcombine.high %v3801, %v3801
        %v3804 = vunpack.c.l.s4 1966171168
        %v3805 = vunpack.c.0.s8 %v3804
        %v3806 = vlaneseq
        %v3807 = vshrl.u32 %v3806, 7
        %v3808 = vsub.s32 %v3805, %v3807
        %v3809 = vrot.slane %v3802, %v3808
        %v3810 = vcombine.high %v3809, %v3809
        %v3812 = vshrl.u32 %v3810, 16
        %v3814 = vrot.slane %v3812, 7
        %v3815 = vrot.slane %v3814, 1
        %3816 = vrot.lane.b32.xlu0 %v3815, 96
        %v3817 = vpop.permute.xlu0 %3816
        %v3819 = vld [vmem:[#allocation5 + $0x1] sm:$0x1]
        %v3820 = vsel %vm2531, %v3817, %v3819
        %3821 = vst [vmem:[#allocation5 + $0x1] sm:$0x1] %v3820
        %v3822 = vld [vmem:[#allocation5] sm:$0x3]
        %s3823 = scalar_lea.vmem %s9, 384
        %v3824 = vld [vmem:[%s3823] sm:$0xf]
        %v3825 = vld [vmem:[%s3823 + $0x4] sm:$0xf]
        %v3826 = vld [vmem:[%s3823 + $0x8] sm:$0xf]
        %v3827 = vld [vmem:[%s3823 + $0xc] sm:$0xf]
        %v3828 = vld [vmem:[%s3823 + $0x10] sm:$0xf]
        %v3829 = vld [vmem:[%s3823 + $0x14] sm:$0xf]
        %v3830 = vld [vmem:[%s3823 + $0x18] sm:$0xf]
        %v3831 = vld [vmem:[%s3823 + $0x1c] sm:$0xf]
        %v3832 = vld [vmem:[%s3823 + $0x20] sm:$0xf]
        %v3833 = vld [vmem:[%s3823 + $0x24] sm:$0xf]
        %v3834 = vld [vmem:[%s3823 + $0x28] sm:$0xf]
        %v3835 = vld [vmem:[%s3823 + $0x2c] sm:$0xf]
        %v3836 = vld [vmem:[%s3823 + $0x30] sm:$0xf]
        %v3837 = vld [vmem:[%s3823 + $0x34] sm:$0xf]
        %v3838 = vld [vmem:[%s3823 + $0x38] sm:$0xf]
        %v3839 = vld [vmem:[%s3823 + $0x3c] sm:$0xf]
        %v3840 = vld [vmem:[%s3823 + $0x40] sm:$0xf]
        %v3841 = vld [vmem:[%s3823 + $0x44] sm:$0xf]
        %v3842 = vld [vmem:[%s3823 + $0x48] sm:$0xf]
        %v3843 = vld [vmem:[%s3823 + $0x4c] sm:$0xf]
        %v3844 = vld [vmem:[%s3823 + $0x50] sm:$0xf]
        %v3845 = vld [vmem:[%s3823 + $0x54] sm:$0xf]
        %v3846 = vld [vmem:[%s3823 + $0x58] sm:$0xf]
        %v3847 = vld [vmem:[%s3823 + $0x5c] sm:$0xf]
        %v3848 = vld [vmem:[%s3823 + $0x60] sm:$0xf]
        %v3849 = vld [vmem:[%s3823 + $0x64] sm:$0xf]
        %v3850 = vld [vmem:[%s3823 + $0x68] sm:$0xf]
        %v3851 = vld [vmem:[%s3823 + $0x6c] sm:$0xf]
        %v3852 = vld [vmem:[%s3823 + $0x70] sm:$0xf]
        %v3853 = vld [vmem:[%s3823 + $0x74] sm:$0xf]
        %v3854 = vld [vmem:[%s3823 + $0x78] sm:$0xf]
        %v3855 = vld [vmem:[%s3823 + $0x7c] sm:$0xf]
        %v3858 = vunpack.c.l.s4 1966171168
        %v3859 = vunpack.c.0.s8 %v3858
        %v3860 = vlaneseq
        %v3861 = vshrl.u32 %v3860, 7
        %v3862 = vsub.s32 %v3859, %v3861
        %v3863 = vrot.slane %v3822, %v3862
        %v3864 = vcombine.high %v3863, %v3863
        %v3866 = vunpack.c.l.s4 1966171168
        %v3867 = vunpack.c.0.s8 %v3866
        %v3868 = vlaneseq
        %v3869 = vshrl.u32 %v3868, 7
        %v3870 = vsub.s32 %v3867, %v3869
        %v3871 = vrot.slane %v3863, %v3870
        %v3873 = vunpack.c.l.s4 1966171168
        %v3874 = vunpack.c.0.s8 %v3873
        %v3875 = vlaneseq
        %v3876 = vshrl.u32 %v3875, 7
        %v3877 = vsub.s32 %v3874, %v3876
        %v3878 = vrot.slane %v3864, %v3877
        %v3913 = vunpack.c.l.b16 %v3824
        %v3914 = vunpack.c.l.b16 %v3825
        %v3915 = vunpack.c.l.b16 %v3826
        %v3916 = vunpack.c.l.b16 %v3827
        %v3917 = vunpack.c.l.b16 %v3828
        %v3918 = vunpack.c.l.b16 %v3829
        %v3919 = vunpack.c.l.b16 %v3830
        %v3920 = vunpack.c.l.b16 %v3831
        %v3921 = vunpack.c.l.b16 %v3832
        %v3922 = vunpack.c.l.b16 %v3833
        %v3923 = vunpack.c.l.b16 %v3834
        %v3924 = vunpack.c.l.b16 %v3835
        %v3925 = vunpack.c.l.b16 %v3836
        %v3926 = vunpack.c.l.b16 %v3837
        %v3927 = vunpack.c.l.b16 %v3838
        %v3928 = vunpack.c.l.b16 %v3839
        %v3929 = vunpack.c.l.b16 %v3840
        %v3930 = vunpack.c.l.b16 %v3841
        %v3931 = vunpack.c.l.b16 %v3842
        %v3932 = vunpack.c.l.b16 %v3843
        %v3933 = vunpack.c.l.b16 %v3844
        %v3934 = vunpack.c.l.b16 %v3845
        %v3935 = vunpack.c.l.b16 %v3846
        %v3936 = vunpack.c.l.b16 %v3847
        %v3937 = vunpack.c.l.b16 %v3848
        %v3938 = vunpack.c.l.b16 %v3849
        %v3939 = vunpack.c.l.b16 %v3850
        %v3940 = vunpack.c.l.b16 %v3851
        %v3941 = vunpack.c.l.b16 %v3852
        %v3942 = vunpack.c.l.b16 %v3853
        %v3943 = vunpack.c.l.b16 %v3854
        %v3944 = vunpack.c.l.b16 %v3855
        %v3945 = vpack.c.b16 %v3914, %v3913
        %v3946 = vpack.c.b16 %v3916, %v3915
        %v3947 = vpack.c.b16 %v3918, %v3917
        %v3948 = vpack.c.b16 %v3920, %v3919
        %v3949 = vpack.c.b16 %v3922, %v3921
        %v3950 = vpack.c.b16 %v3924, %v3923
        %v3951 = vpack.c.b16 %v3926, %v3925
        %v3952 = vpack.c.b16 %v3928, %v3927
        %v3953 = vpack.c.b16 %v3930, %v3929
        %v3954 = vpack.c.b16 %v3932, %v3931
        %v3955 = vpack.c.b16 %v3934, %v3933
        %v3956 = vpack.c.b16 %v3936, %v3935
        %v3957 = vpack.c.b16 %v3938, %v3937
        %v3958 = vpack.c.b16 %v3940, %v3939
        %v3959 = vpack.c.b16 %v3942, %v3941
        %v3960 = vpack.c.b16 %v3944, %v3943
        %3977 = vmatprep.subr.bf16.mxu0 0
        %3978 = vmatpush1.bf16.msra.mxu0 %v3945
        %3979 = vmatprep.subr.bf16.mxu0 0
        %3980 = vmatpush1.bf16.msra.mxu0 %v3946
        %3981 = vmatprep.subr.bf16.mxu0 0
        %3982 = vmatpush1.bf16.msra.mxu0 %v3947
        %3983 = vmatprep.subr.bf16.mxu0 0
        %3984 = vmatpush1.bf16.msra.mxu0 %v3948
        %3985 = vmatprep.subr.bf16.mxu0 0
        %3986 = vmatpush1.bf16.msra.mxu0 %v3949
        %3987 = vmatprep.subr.bf16.mxu0 0
        %3988 = vmatpush1.bf16.msra.mxu0 %v3950
        %3989 = vmatprep.subr.bf16.mxu0 0
        %3990 = vmatpush1.bf16.msra.mxu0 %v3951
        %3991 = vmatprep.subr.bf16.mxu0 0
        %3992 = vmatpush1.bf16.msra.mxu0 %v3952
        %3993 = vmatprep.subr.bf16.mxu0 0
        %3994 = vmatpush1.bf16.msra.mxu0 %v3953
        %3995 = vmatprep.subr.bf16.mxu0 0
        %3996 = vmatpush1.bf16.msra.mxu0 %v3954
        %3997 = vmatprep.subr.bf16.mxu0 0
        %3998 = vmatpush1.bf16.msra.mxu0 %v3955
        %3999 = vmatprep.subr.bf16.mxu0 0
        %4000 = vmatpush1.bf16.msra.mxu0 %v3956
        %4001 = vmatprep.subr.bf16.mxu0 0
        %4002 = vmatpush1.bf16.msra.mxu0 %v3957
        %4003 = vmatprep.subr.bf16.mxu0 0
        %4004 = vmatpush1.bf16.msra.mxu0 %v3958
        %4005 = vmatprep.subr.bf16.mxu0 0
        %4006 = vmatpush1.bf16.msra.mxu0 %v3959
        %4007 = vmatprep.subr.bf16.mxu0 0
        %4008 = vmatpush1.bf16.msra.mxu0 %v3960
        %4009 = vmatprep.mubr.bf16.mxu0 %v3878
        %4010 = vmatmul.mubr.bf16.gmra.mrb[0].mxu0 %v3871
        %v4011 = vpop.f32.mrb[0].mxu0
        %v4012 = vadd.f32 0.0, %v4011
        %v4013 = vpop.f32.mrb[0].mxu0
        %v4014 = vpop.f32.mrb[0].mxu0
        %v4015 = vpop.f32.mrb[0].mxu0
        %4016 = vdwg.mxu0
        %v4017 = vadd.f32 %v3613, %v4012
        %v4018 = vld [vmem:[#allocation3 + $0x10] sm:$0x1]
        %v4019 = vld [vmem:[#allocation5] sm:$0x1]
        %v4020 = vsel %vm2447, %v4018, %v4019
        %4021 = vst [vmem:[#allocation5] sm:$0x1] %v4020
        %v4022 = vld [vmem:[#allocation3 + $0x10] sm:$0x1]
        %v4025 = vunpack.c.l.s4 1966171168
        %v4026 = vunpack.c.0.s8 %v4025
        %v4027 = vlaneseq
        %v4028 = vshrl.u32 %v4027, 7
        %v4029 = vsub.s32 %v4026, %v4028
        %v4030 = vrot.slane %v4022, %v4029
        %v4032 = vunpack.c.l.s4 1966171168
        %v4033 = vunpack.c.0.s8 %v4032
        %v4034 = vlaneseq
        %v4035 = vshrl.u32 %v4034, 7
        %v4036 = vsub.s32 %v4033, %v4035
        %v4037 = vrot.slane %v4030, %v4036
        %v4039 = vshrl.u32 %v4037, 16
        %v4041 = vrot.slane %v4039, 7
        %v4042 = vrot.slane %v4041, 1
        %4043 = vrot.lane.b32.xlu0 %v4042, 32
        %v4044 = vpop.permute.xlu0 %4043
        %v4046 = vld [vmem:[#allocation5] sm:$0x1]
        %v4047 = vsel %vm2476, %v4044, %v4046
        %4048 = vst [vmem:[#allocation5] sm:$0x1] %v4047
        %v4049 = vld [vmem:[#allocation3 + $0x10] sm:$0x2]
        %v4052 = vunpack.c.l.s4 1966171168
        %v4053 = vunpack.c.0.s8 %v4052
        %v4054 = vlaneseq
        %v4055 = vshrl.u32 %v4054, 7
        %v4056 = vsub.s32 %v4053, %v4055
        %v4057 = vrot.slane %v4049, %v4056
        %v4058 = vcombine.high %v4057, %v4057
        %v4060 = vunpack.c.l.s4 1966171168
        %v4061 = vunpack.c.0.s8 %v4060
        %v4062 = vlaneseq
        %v4063 = vshrl.u32 %v4062, 7
        %v4064 = vsub.s32 %v4061, %v4063
        %v4065 = vrot.slane %v4058, %v4064
        %4066 = vrot.lane.b32.xlu0 %v4065, 64
        %v4067 = vpop.permute.xlu0 %4066
        %v4069 = vld [vmem:[#allocation5] sm:$0x1]
        %v4070 = vsel %vm2501, %v4067, %v4069
        %4071 = vst [vmem:[#allocation5] sm:$0x1] %v4070
        %v4072 = vld [vmem:[#allocation3 + $0x10] sm:$0x2]
        %v4075 = vunpack.c.l.s4 1966171168
        %v4076 = vunpack.c.0.s8 %v4075
        %v4077 = vlaneseq
        %v4078 = vshrl.u32 %v4077, 7
        %v4079 = vsub.s32 %v4076, %v4078
        %v4080 = vrot.slane %v4072, %v4079
        %v4081 = vcombine.high %v4080, %v4080
        %v4083 = vunpack.c.l.s4 1966171168
        %v4084 = vunpack.c.0.s8 %v4083
        %v4085 = vlaneseq
        %v4086 = vshrl.u32 %v4085, 7
        %v4087 = vsub.s32 %v4084, %v4086
        %v4088 = vrot.slane %v4081, %v4087
        %v4090 = vshrl.u32 %v4088, 16
        %v4092 = vrot.slane %v4090, 7
        %v4093 = vrot.slane %v4092, 1
        %4094 = vrot.lane.b32.xlu0 %v4093, 96
        %v4095 = vpop.permute.xlu0 %4094
        %v4097 = vld [vmem:[#allocation5] sm:$0x1]
        %v4098 = vsel %vm2531, %v4095, %v4097
        %4099 = vst [vmem:[#allocation5] sm:$0x1] %v4098
        %v4100 = vld [vmem:[#allocation3 + $0x10] sm:$0x4]
        %v4103 = vunpack.c.l.s4 1966171168
        %v4104 = vunpack.c.0.s8 %v4103
        %v4105 = vlaneseq
        %v4106 = vshrl.u32 %v4105, 7
        %v4107 = vsub.s32 %v4104, %v4106
        %v4108 = vrot.slane %v4100, %v4107
        %v4110 = vunpack.c.l.s4 1966171168
        %v4111 = vunpack.c.0.s8 %v4110
        %v4112 = vlaneseq
        %v4113 = vshrl.u32 %v4112, 7
        %v4114 = vsub.s32 %v4111, %v4113
        %v4115 = vrot.slane %v4108, %v4114
        %v4116 = vcombine.high %v4115, %v4115
        %v4118 = vld [vmem:[#allocation5 + $0x1] sm:$0x1]
        %v4119 = vsel %vm2447, %v4116, %v4118
        %4120 = vst [vmem:[#allocation5 + $0x1] sm:$0x1] %v4119
        %v4121 = vld [vmem:[#allocation3 + $0x10] sm:$0x4]
        %v4124 = vunpack.c.l.s4 1966171168
        %v4125 = vunpack.c.0.s8 %v4124
        %v4126 = vlaneseq
        %v4127 = vshrl.u32 %v4126, 7
        %v4128 = vsub.s32 %v4125, %v4127
        %v4129 = vrot.slane %v4121, %v4128
        %v4131 = vunpack.c.l.s4 1966171168
        %v4132 = vunpack.c.0.s8 %v4131
        %v4133 = vlaneseq
        %v4134 = vshrl.u32 %v4133, 7
        %v4135 = vsub.s32 %v4132, %v4134
        %v4136 = vrot.slane %v4129, %v4135
        %v4137 = vcombine.high %v4136, %v4136
        %v4139 = vshrl.u32 %v4137, 16
        %v4141 = vrot.slane %v4139, 7
        %v4142 = vrot.slane %v4141, 1
        %4143 = vrot.lane.b32.xlu0 %v4142, 32
        %v4144 = vpop.permute.xlu0 %4143
        %v4146 = vld [vmem:[#allocation5 + $0x1] sm:$0x1]
        %v4147 = vsel %vm2476, %v4144, %v4146
        %4148 = vst [vmem:[#allocation5 + $0x1] sm:$0x1] %v4147
        %v4149 = vld [vmem:[#allocation3 + $0x10] sm:$0x8]
        %v4152 = vunpack.c.l.s4 1966171168
        %v4153 = vunpack.c.0.s8 %v4152
        %v4154 = vlaneseq
        %v4155 = vshrl.u32 %v4154, 7
        %v4156 = vsub.s32 %v4153, %v4155
        %v4157 = vrot.slane %v4149, %v4156
        %v4158 = vcombine.high %v4157, %v4157
        %v4160 = vunpack.c.l.s4 1966171168
        %v4161 = vunpack.c.0.s8 %v4160
        %v4162 = vlaneseq
        %v4163 = vshrl.u32 %v4162, 7
        %v4164 = vsub.s32 %v4161, %v4163
        %v4165 = vrot.slane %v4158, %v4164
        %v4166 = vcombine.high %v4165, %v4165
        %4167 = vrot.lane.b32.xlu0 %v4166, 64
        %v4168 = vpop.permute.xlu0 %4167
        %v4170 = vld [vmem:[#allocation5 + $0x1] sm:$0x1]
        %v4171 = vsel %vm2501, %v4168, %v4170
        %4172 = vst [vmem:[#allocation5 + $0x1] sm:$0x1] %v4171
        %v4173 = vld [vmem:[#allocation3 + $0x10] sm:$0x8]
        %v4176 = vunpack.c.l.s4 1966171168
        %v4177 = vunpack.c.0.s8 %v4176
        %v4178 = vlaneseq
        %v4179 = vshrl.u32 %v4178, 7
        %v4180 = vsub.s32 %v4177, %v4179
        %v4181 = vrot.slane %v4173, %v4180
        %v4182 = vcombine.high %v4181, %v4181
        %v4184 = vunpack.c.l.s4 1966171168
        %v4185 = vunpack.c.0.s8 %v4184
        %v4186 = vlaneseq
        %v4187 = vshrl.u32 %v4186, 7
        %v4188 = vsub.s32 %v4185, %v4187
        %v4189 = vrot.slane %v4182, %v4188
        %v4190 = vcombine.high %v4189, %v4189
        %v4192 = vshrl.u32 %v4190, 16
        %v4194 = vrot.slane %v4192, 7
        %v4195 = vrot.slane %v4194, 1
        %4196 = vrot.lane.b32.xlu0 %v4195, 96
        %v4197 = vpop.permute.xlu0 %4196
        %v4199 = vld [vmem:[#allocation5 + $0x1] sm:$0x1]
        %v4200 = vsel %vm2531, %v4197, %v4199
        %4201 = vst [vmem:[#allocation5 + $0x1] sm:$0x1] %v4200
        %v4202 = vld [vmem:[#allocation5] sm:$0x3]
        %s4203 = scalar_lea.vmem %s9, 512
        %v4204 = vld [vmem:[%s4203] sm:$0xf]
        %v4205 = vld [vmem:[%s4203 + $0x4] sm:$0xf]
        %v4206 = vld [vmem:[%s4203 + $0x8] sm:$0xf]
        %v4207 = vld [vmem:[%s4203 + $0xc] sm:$0xf]
        %v4208 = vld [vmem:[%s4203 + $0x10] sm:$0xf]
        %v4209 = vld [vmem:[%s4203 + $0x14] sm:$0xf]
        %v4210 = vld [vmem:[%s4203 + $0x18] sm:$0xf]
        %v4211 = vld [vmem:[%s4203 + $0x1c] sm:$0xf]
        %v4212 = vld [vmem:[%s4203 + $0x20] sm:$0xf]
        %v4213 = vld [vmem:[%s4203 + $0x24] sm:$0xf]
        %v4214 = vld [vmem:[%s4203 + $0x28] sm:$0xf]
        %v4215 = vld [vmem:[%s4203 + $0x2c] sm:$0xf]
        %v4216 = vld [vmem:[%s4203 + $0x30] sm:$0xf]
        %v4217 = vld [vmem:[%s4203 + $0x34] sm:$0xf]
        %v4218 = vld [vmem:[%s4203 + $0x38] sm:$0xf]
        %v4219 = vld [vmem:[%s4203 + $0x3c] sm:$0xf]
        %v4220 = vld [vmem:[%s4203 + $0x40] sm:$0xf]
        %v4221 = vld [vmem:[%s4203 + $0x44] sm:$0xf]
        %v4222 = vld [vmem:[%s4203 + $0x48] sm:$0xf]
        %v4223 = vld [vmem:[%s4203 + $0x4c] sm:$0xf]
        %v4224 = vld [vmem:[%s4203 + $0x50] sm:$0xf]
        %v4225 = vld [vmem:[%s4203 + $0x54] sm:$0xf]
        %v4226 = vld [vmem:[%s4203 + $0x58] sm:$0xf]
        %v4227 = vld [vmem:[%s4203 + $0x5c] sm:$0xf]
        %v4228 = vld [vmem:[%s4203 + $0x60] sm:$0xf]
        %v4229 = vld [vmem:[%s4203 + $0x64] sm:$0xf]
        %v4230 = vld [vmem:[%s4203 + $0x68] sm:$0xf]
        %v4231 = vld [vmem:[%s4203 + $0x6c] sm:$0xf]
        %v4232 = vld [vmem:[%s4203 + $0x70] sm:$0xf]
        %v4233 = vld [vmem:[%s4203 + $0x74] sm:$0xf]
        %v4234 = vld [vmem:[%s4203 + $0x78] sm:$0xf]
        %v4235 = vld [vmem:[%s4203 + $0x7c] sm:$0xf]
        %v4238 = vunpack.c.l.s4 1966171168
        %v4239 = vunpack.c.0.s8 %v4238
        %v4240 = vlaneseq
        %v4241 = vshrl.u32 %v4240, 7
        %v4242 = vsub.s32 %v4239, %v4241
        %v4243 = vrot.slane %v4202, %v4242
        %v4244 = vcombine.high %v4243, %v4243
        %v4246 = vunpack.c.l.s4 1966171168
        %v4247 = vunpack.c.0.s8 %v4246
        %v4248 = vlaneseq
        %v4249 = vshrl.u32 %v4248, 7
        %v4250 = vsub.s32 %v4247, %v4249
        %v4251 = vrot.slane %v4243, %v4250
        %v4253 = vunpack.c.l.s4 1966171168
        %v4254 = vunpack.c.0.s8 %v4253
        %v4255 = vlaneseq
        %v4256 = vshrl.u32 %v4255, 7
        %v4257 = vsub.s32 %v4254, %v4256
        %v4258 = vrot.slane %v4244, %v4257
        %v4293 = vunpack.c.l.b16 %v4204
        %v4294 = vunpack.c.l.b16 %v4205
        %v4295 = vunpack.c.l.b16 %v4206
        %v4296 = vunpack.c.l.b16 %v4207
        %v4297 = vunpack.c.l.b16 %v4208
        %v4298 = vunpack.c.l.b16 %v4209
        %v4299 = vunpack.c.l.b16 %v4210
        %v4300 = vunpack.c.l.b16 %v4211
        %v4301 = vunpack.c.l.b16 %v4212
        %v4302 = vunpack.c.l.b16 %v4213
        %v4303 = vunpack.c.l.b16 %v4214
        %v4304 = vunpack.c.l.b16 %v4215
        %v4305 = vunpack.c.l.b16 %v4216
        %v4306 = vunpack.c.l.b16 %v4217
        %v4307 = vunpack.c.l.b16 %v4218
        %v4308 = vunpack.c.l.b16 %v4219
        %v4309 = vunpack.c.l.b16 %v4220
        %v4310 = vunpack.c.l.b16 %v4221
        %v4311 = vunpack.c.l.b16 %v4222
        %v4312 = vunpack.c.l.b16 %v4223
        %v4313 = vunpack.c.l.b16 %v4224
        %v4314 = vunpack.c.l.b16 %v4225
        %v4315 = vunpack.c.l.b16 %v4226
        %v4316 = vunpack.c.l.b16 %v4227
        %v4317 = vunpack.c.l.b16 %v4228
        %v4318 = vunpack.c.l.b16 %v4229
        %v4319 = vunpack.c.l.b16 %v4230
        %v4320 = vunpack.c.l.b16 %v4231
        %v4321 = vunpack.c.l.b16 %v4232
        %v4322 = vunpack.c.l.b16 %v4233
        %v4323 = vunpack.c.l.b16 %v4234
        %v4324 = vunpack.c.l.b16 %v4235
        %v4325 = vpack.c.b16 %v4294, %v4293
        %v4326 = vpack.c.b16 %v4296, %v4295
        %v4327 = vpack.c.b16 %v4298, %v4297
        %v4328 = vpack.c.b16 %v4300, %v4299
        %v4329 = vpack.c.b16 %v4302, %v4301
        %v4330 = vpack.c.b16 %v4304, %v4303
        %v4331 = vpack.c.b16 %v4306, %v4305
        %v4332 = vpack.c.b16 %v4308, %v4307
        %v4333 = vpack.c.b16 %v4310, %v4309
        %v4334 = vpack.c.b16 %v4312, %v4311
        %v4335 = vpack.c.b16 %v4314, %v4313
        %v4336 = vpack.c.b16 %v4316, %v4315
        %v4337 = vpack.c.b16 %v4318, %v4317
        %v4338 = vpack.c.b16 %v4320, %v4319
        %v4339 = vpack.c.b16 %v4322, %v4321
        %v4340 = vpack.c.b16 %v4324, %v4323
        %4357 = vmatprep.subr.bf16.mxu0 0
        %4358 = vmatpush1.bf16.msra.mxu0 %v4325
        %4359 = vmatprep.subr.bf16.mxu0 0
        %4360 = vmatpush1.bf16.msra.mxu0 %v4326
        %4361 = vmatprep.subr.bf16.mxu0 0
        %4362 = vmatpush1.bf16.msra.mxu0 %v4327
        %4363 = vmatprep.subr.bf16.mxu0 0
        %4364 = vmatpush1.bf16.msra.mxu0 %v4328
        %4365 = vmatprep.subr.bf16.mxu0 0
        %4366 = vmatpush1.bf16.msra.mxu0 %v4329
        %4367 = vmatprep.subr.bf16.mxu0 0
        %4368 = vmatpush1.bf16.msra.mxu0 %v4330
        %4369 = vmatprep.subr.bf16.mxu0 0
        %4370 = vmatpush1.bf16.msra.mxu0 %v4331
        %4371 = vmatprep.subr.bf16.mxu0 0
        %4372 = vmatpush1.bf16.msra.mxu0 %v4332
        %4373 = vmatprep.subr.bf16.mxu0 0
        %4374 = vmatpush1.bf16.msra.mxu0 %v4333
        %4375 = vmatprep.subr.bf16.mxu0 0
        %4376 = vmatpush1.bf16.msra.mxu0 %v4334
        %4377 = vmatprep.subr.bf16.mxu0 0
        %4378 = vmatpush1.bf16.msra.mxu0 %v4335
        %4379 = vmatprep.subr.bf16.mxu0 0
        %4380 = vmatpush1.bf16.msra.mxu0 %v4336
        %4381 = vmatprep.subr.bf16.mxu0 0
        %4382 = vmatpush1.bf16.msra.mxu0 %v4337
        %4383 = vmatprep.subr.bf16.mxu0 0
        %4384 = vmatpush1.bf16.msra.mxu0 %v4338
        %4385 = vmatprep.subr.bf16.mxu0 0
        %4386 = vmatpush1.bf16.msra.mxu0 %v4339
        %4387 = vmatprep.subr.bf16.mxu0 0
        %4388 = vmatpush1.bf16.msra.mxu0 %v4340
        %4389 = vmatprep.mubr.bf16.mxu0 %v4258
        %4390 = vmatmul.mubr.bf16.gmra.mrb[0].mxu0 %v4251
        %v4391 = vpop.f32.mrb[0].mxu0
        %v4392 = vadd.f32 0.0, %v4391
        %v4393 = vpop.f32.mrb[0].mxu0
        %v4394 = vpop.f32.mrb[0].mxu0
        %v4395 = vpop.f32.mrb[0].mxu0
        %4396 = vdwg.mxu0
        %v4397 = vadd.f32 %v4017, %v4392
        %v4398 = vld [vmem:[%s10] sm:$0x1]
        %v4399 = vadd.f32 %v4397, %v4398
        %vm4400 = vcmask 1040384
        %v4401 = vsel %vm4400, %v4399, 0.0
        %4402 = vadd.xlane.f32.xlu0 %v4401
        %v4403 = vpop.xlane.xlu0 %4402
        %v4404 = vmul.f32 %v4403, 0.03125
        %v4405 = vsub.f32 %v4399, %v4404
        %v4406 = vmul.f32 %v4405, %v4405
        %v4407 = vsel %vm4400, %v4406, 0.0
        %4408 = vadd.xlane.f32.xlu0 %v4407
        %v4409 = vpop.xlane.xlu0 %4408
        %v4410 = vmul.f32 %v4404, %v4404
        %v4411 = vmul.f32 %v4410, 96.0
        %v4412 = vsub.f32 %v4409, %v4411
        %v4413 = vmul.f32 %v4412, 0.03125
        %v4414 = vadd.f32 %v4413, 1e-05
        %v4415 = vrsqrt.pop %v4414
        %v4416 = vmul.f32 %v4405, %v4415
        %v4417 = vld [vmem:[%s11] sm:$0x1]
        %v4418 = vmul.f32 %v4416, %v4417
        %v4419 = vld [vmem:[%s12] sm:$0x1]
        %v4420 = vadd.f32 %v4418, %v4419
        %v4421 = vtanh.pop %v4420
        %4422 = vst [vmem:[%s432] sm:$0x1] %v4421
        %s4423 = sand.u32 %s313, 1
        %s4424 = scalar_lea.sflag [#allocation7], %s4423
        %s4425 = sand.u32 %s313, 1
        %s4426 = scalar_lea.vmem [#allocation6], %s4425
        // Predicated region
        $region73: #{_lambda_.1} parent=71 // pred_check
          %p4427 = pneg %p323
        $region74: #{_lambda_.1} parent=71 // pred_check_branch
          %4429 = sbr.rel (%p4427) target = $region76
        $region75: #{_lambda_.1} parent=71 // pred_region
          %s4431 = ssub.s32 16, 16
          %4432 = vsyncadd %s4424, %s4431
          %s4433 = smul.addr %s27, 16
          %s4434 = scalar_lea.hbm %s13, %s4433
          %s4436 = sshll.u32 %s4426, 4
          %s4437 = int_to_ptr.vmem [resolvable:$true] %s4436
          %4439 = dma.vmem_to_hbm [thread:$0]  %s4437, 16, %s4434, %s4424
        $region76: #{_lambda_.1} parent=71 // pred_fallthru
          _
      $region72: #{_lambda_.1} parent=5 // pred_fallthru
        _
      %p4440 = scmp.le.s32.totalorder 2, %s22
      // Predicated region
      $region77: #{_lambda_.1} parent=5 // pred_check
        %p4441 = pneg %p4440
      $region78: #{_lambda_.1} parent=5 // pred_check_branch
        %4443 = sbr.rel (%p4441) target = $region80
      $region79: #{_lambda_.1} parent=5 // pred_region
        %s4444 = ssub.s32 %s22, 2
        // Predicated region
        $region81: #{_lambda_.1} parent=79 // pred_check
          %p4445 = pneg %p329
        $region82: #{_lambda_.1} parent=79 // pred_check_branch
          %4447 = sbr.rel (%p4445) target = $region84
        $region83: #{_lambda_.1} parent=79 // pred_region
          %s4448 = sand.u32 %s314, 1
          %s4449 = scalar_lea.sflag [#allocation7], %s4448
          %s4450 = sand.u32 %s314, 1
          %s4451 = scalar_lea.vmem [#allocation6], %s4450
          %4452 = dma.done %s4449, 16
        $region84: #{_lambda_.1} parent=79 // pred_fallthru
          _
      $region80: #{_lambda_.1} parent=5 // pred_fallthru
        _
    $region6: #{_lambda_.1} parent=1 // loop_footer
      %s26 = sadd.s32 1, %s22
    $region7: #{_lambda_.1} parent=1 // loop_footer_branch
      %21 = sbr.rel target = $region3
    $region8: #{_lambda_.1} parent=1 // loop_exit
      _
    %4453 = vsyncpa [#allocation7], 1
    %s4454 = scalar_lea.sflag [#allocation7], 1
    %4455 = vsyncpa %s4454, 1

</llo_original>
